<compile_context>
chip_gen: v6e
topology: v6e:2x2x1
jax: 0.10.0
libtpu: 0.0.40
codegen_flags: <defaults>
</compile_context>

<pallas_src>
import functools

import jax
import jax.numpy as jnp
from jax.experimental import pallas as pl
from jax.experimental.pallas import tpu as pltpu


def _elu(x, exp_dtype):
    # ELU(x) = x if x > 0 else exp(x) - 1   (alpha = 1)
    neg = jnp.exp(jnp.minimum(x, 0.0).astype(exp_dtype)).astype(jnp.float32) - 1.0
    return jnp.where(x > 0, x, neg)


# ----------------------------------------------------------------------------
# Fused Pallas kernel: GAT layer 1 (4 heads) -> ELU -> GAT layer 2 (1 head,
# mean) -> ELU -> global_mean_pool -> Linear
# ----------------------------------------------------------------------------
def _fused_gat_kernel(x_ref, mask_ref, w1_ref, att1_ref, b1_ref,
                      w2_ref, att2_ref, b2_ref, pool_ref, wfc_ref, bfc_ref,
                      o_ref, h1_sc, *, heads, feat, exp_dtype):
    f32 = jnp.float32
    bf16 = jnp.bfloat16

    # ---- layer 1: GATConv(in, feat, heads, concat=True) + bias + ELU --------
    h = jnp.dot(x_ref[...].astype(bf16), w1_ref[...].astype(bf16),
                preferred_element_type=f32)                  # [N, H*F]
    h_bf = h.astype(bf16)

    # All-head attention logits with one bf16 MXU matmul against a
    # block-diagonal [H*F, 2H] matrix: cols [0:H]=alpha_src, cols [H:2H]=alpha_dst.
    alphas = jnp.dot(h_bf, att1_ref[...].astype(bf16),
                     preferred_element_type=f32)             # [N, 2H]
    # Single hoisted XLU transpose instead of one [N,1]->[1,N] per head.
    alphas_src_t = alphas[:, :heads].T                       # [H, N]

    for hd in range(heads):
        # e[i, j] = LeakyReLU(alpha_dst[i] + alpha_src[j]), negative_slope=0.2
        e = alphas[:, heads + hd:heads + hd + 1] + alphas_src_t[hd:hd + 1, :]
        e = jnp.maximum(e, 0.2 * e)                          # LeakyReLU, slope < 1
        e = e + mask_ref[...]                                # additive -1e30 mask
        e = e - jnp.max(e, axis=-1, keepdims=True)
        p = jnp.exp(e.astype(exp_dtype))                     # masked entries -> 0
        denom = jnp.sum(p.astype(f32), axis=-1, keepdims=True)
        # Deferred normalization: scale the [N, F] result, not the [N, N] probs.
        out_hd = jnp.dot(p.astype(bf16), h_bf[:, hd * feat:(hd + 1) * feat],
                         preferred_element_type=f32)
        h1_sc[:, hd * feat:(hd + 1) * feat] = (
            out_hd * pl.reciprocal(denom, approx=True))

    h1 = _elu(h1_sc[...] + b1_ref[...], exp_dtype)

    # ---- layer 2: GATConv(H*F, feat, heads=1, concat=False) + bias + ELU ----
    h2 = jnp.dot(h1.astype(bf16), w2_ref[...].astype(bf16),
                 preferred_element_type=f32)                 # [N, F]
    h2_bf = h2.astype(bf16)
    alphas2 = jnp.dot(h2_bf, att2_ref[...].astype(bf16),
                      preferred_element_type=f32)            # [N, 2]
    e2 = alphas2[:, 1:2] + alphas2[:, 0:1].T
    e2 = jnp.maximum(e2, 0.2 * e2)
    e2 = e2 + mask_ref[...]
    e2 = e2 - jnp.max(e2, axis=-1, keepdims=True)
    p2 = jnp.exp(e2.astype(exp_dtype))
    denom2 = jnp.sum(p2.astype(f32), axis=-1, keepdims=True)
    out2 = (jnp.dot(p2.astype(bf16), h2_bf, preferred_element_type=f32)
            * pl.reciprocal(denom2, approx=True) + b2_ref[...])
    out2 = _elu(out2, exp_dtype)

    # ---- global_mean_pool + fc ----------------------------------------------
    pooled = jnp.dot(pool_ref[...], out2, preferred_element_type=f32)   # [G, F]
    o_ref[...] = (jnp.dot(pooled, wfc_ref[...], preferred_element_type=f32)
                  + bfc_ref[...]).astype(o_ref.dtype)


# ----------------------------------------------------------------------------
# Wrapper
# ----------------------------------------------------------------------------
_VMEM = pl.BlockSpec(memory_space=pltpu.MemorySpace.VMEM)


def _pick_exp_dtype():
    # bf16 EUP exists on v6e/v7x; keep f32 exp on v5e / older / unknown chips.
    try:
        kind = jax.devices()[0].device_kind.lower()
    except Exception:
        return jnp.float32
    return jnp.bfloat16 if ("v6" in kind or "v7" in kind) else jnp.float32


def simple_gat_forward(params, x, addmask, pool_mat):
    # NOTE: `addmask` must come from an adjacency that includes self-loops on
    # every row; a fully masked row would otherwise silently become a uniform
    # softmax over all nodes.
    heads, feat = params["heads"], params["hidden"]
    n = x.shape[0]
    g = pool_mat.shape[0]
    o = params["w_fc"].shape[1]
    kernel = functools.partial(_fused_gat_kernel, heads=heads, feat=feat,
                               exp_dtype=_pick_exp_dtype())
    return pl.pallas_call(
        kernel,
        out_shape=jax.ShapeDtypeStruct((g, o), jnp.float32),
        in_specs=[_VMEM] * 11,
        out_specs=_VMEM,
        scratch_shapes=[pltpu.VMEM((n, heads * feat), jnp.float32)],
    )(x, addmask, params["w1"], params["att1"], params["b1"],
      params["w2"], params["att2"], params["b2"],
      pool_mat, params["w_fc"], params["b_fc"])


# ----------------------------------------------------------------------------
# Main
# ----------------------------------------------------------------------------
if __name__ == "__main__":
    input_dim, hidden_dim, output_dim, heads = 32, 32, 8, 4
    num_graphs, nodes_per_graph = 2, 8
    n_real = num_graphs * nodes_per_graph
    n_pad = 128                      # lane-dense node dimension (multiple of 128)

    key = jax.random.PRNGKey(0)
    keys = jax.random.split(key, 10)

    emb = jax.random.normal(keys[0], (1, input_dim), jnp.float32)
    w1 = jax.random.normal(keys[1], (input_dim, heads * hidden_dim), jnp.float32) * 0.1
    a_src1 = jax.random.normal(keys[2], (heads, hidden_dim), jnp.float32) * 0.1
    a_dst1 = jax.random.normal(keys[3], (heads, hidden_dim), jnp.float32) * 0.1
    w2 = jax.random.normal(keys[4], (heads * hidden_dim, hidden_dim), jnp.float32) * 0.1
    a_src2 = jax.random.normal(keys[5], (1, hidden_dim), jnp.float32) * 0.1
    a_dst2 = jax.random.normal(keys[6], (1, hidden_dim), jnp.float32) * 0.1
    w_fc = jax.random.normal(keys[7], (hidden_dim, output_dim), jnp.float32) * 0.1

    # Block-diagonal attention matrices: one MXU matmul yields all per-head
    # alpha_src (cols [0:H]) and alpha_dst (cols [H:2H]) scores.
    att1 = jnp.zeros((heads * hidden_dim, 2 * heads), jnp.float32)
    for hd in range(heads):
        att1 = att1.at[hd * hidden_dim:(hd + 1) * hidden_dim, hd].set(a_src1[hd])
        att1 = att1.at[hd * hidden_dim:(hd + 1) * hidden_dim, heads + hd].set(a_dst1[hd])
    att2 = jnp.stack([a_src2[0], a_dst2[0]], axis=1)          # [hidden, 2]

    params = {
        "heads": heads, "hidden": hidden_dim,
        "w1": w1, "att1": att1,
        "b1": jnp.zeros((1, heads * hidden_dim), jnp.float32),
        "w2": w2, "att2": att2,
        "b2": jnp.zeros((1, hidden_dim), jnp.float32),
        "w_fc": w_fc, "b_fc": jnp.zeros((1, output_dim), jnp.float32),
    }

    # data.x: one token index per node; Embedding(1, D) -> every node is row 0.
    # Padded nodes also use row 0 (they are masked out of pooling). (glue)
    node_idx = jnp.zeros((n_pad,), jnp.int32)
    x = emb[node_idx]                                         # [n_pad, input_dim]

    # data.edge_index: bidirectional ring within each graph.
    src_list, dst_list = [], []
    for g in range(num_graphs):
        base = g * nodes_per_graph
        for i in range(nodes_per_graph):
            j = (i + 1) % nodes_per_graph
            src_list += [base + i, base + j]
            dst_list += [base + j, base + i]
    edge_index = jnp.array([src_list, dst_list], jnp.int32)    # [2, E]

    # Dense adjacency adj[dst, src] = 1 plus self-loops for ALL rows (incl.
    # padded nodes, so every softmax row has >= 1 valid entry -> no NaN),
    # converted once to an additive mask consumed directly by the kernel.
    adj = jnp.zeros((n_pad, n_pad), jnp.float32)
    adj = adj.at[edge_index[1], edge_index[0]].set(1.0)
    adj = jnp.maximum(adj, jnp.eye(n_pad, dtype=jnp.float32))
    addmask = (adj - 1.0) * jnp.float32(1e30)

    # global_mean_pool over real nodes only (padded columns are zero).
    batch = jnp.full((n_pad,), -1, jnp.int32)
    batch = batch.at[:n_real].set(
        jnp.repeat(jnp.arange(num_graphs, dtype=jnp.int32), nodes_per_graph))
    one_hot = (batch[None, :] == jnp.arange(num_graphs)[:, None]).astype(jnp.float32)
    pool_mat = one_hot / jnp.sum(one_hot, axis=1, keepdims=True)

    out = simple_gat_forward(params, x, addmask, pool_mat)
    out = jax.block_until_ready(out)
    assert out.shape == (num_graphs, output_dim)
    assert bool(jnp.all(jnp.isfinite(out)))
    print("KERNEL_OK")
</pallas_src>

<mosaic_0001>
module attributes {stable_mosaic.version = 11 : i64} {
  func.func @_fused_gat_kernel(%arg0: memref<128x32xf32, #tpu.memory_space<vmem>>, %arg1: memref<128x128xf32, #tpu.memory_space<vmem>>, %arg2: memref<32x128xf32, #tpu.memory_space<vmem>>, %arg3: memref<128x8xf32, #tpu.memory_space<vmem>>, %arg4: memref<1x128xf32, #tpu.memory_space<vmem>>, %arg5: memref<128x32xf32, #tpu.memory_space<vmem>>, %arg6: memref<32x2xf32, #tpu.memory_space<vmem>>, %arg7: memref<1x32xf32, #tpu.memory_space<vmem>>, %arg8: memref<2x128xf32, #tpu.memory_space<vmem>>, %arg9: memref<32x8xf32, #tpu.memory_space<vmem>>, %arg10: memref<1x8xf32, #tpu.memory_space<vmem>>, %arg11: memref<2x8xf32, #tpu.memory_space<vmem>>, %arg12: memref<128x128xf32, #tpu.memory_space<vmem>>) attributes {dimension_semantics = [], scalar_prefetch = 0 : i64, scratch_operands = 1 : i64, tpu.core_type = #tpu.core_type<tc>} {
    %c0 = arith.constant 0 : index
    %c0_0 = arith.constant 0 : index
    %0 = vector.load %arg0[%c0, %c0_0] : memref<128x32xf32, #tpu.memory_space<vmem>>, vector<128x32xf32>
    %1 = arith.truncf %0 : vector<128x32xf32> to vector<128x32xbf16>
    %c0_1 = arith.constant 0 : index
    %c0_2 = arith.constant 0 : index
    %2 = vector.load %arg2[%c0_1, %c0_2] : memref<32x128xf32, #tpu.memory_space<vmem>>, vector<32x128xf32>
    %3 = arith.truncf %2 : vector<32x128xf32> to vector<32x128xbf16>
    %cst = arith.constant dense<0.000000e+00> : vector<128x128xf32>
    %4 = tpu.matmul %1, %3, %cst {dimension_numbers = #tpu.dot_dimension_numbers<[1], [0], [0], [1], [0, 0, 1, 1], [], []>} : vector<128x32xbf16>, vector<32x128xbf16>, vector<128x128xf32> -> vector<128x128xf32>
    %5 = arith.truncf %4 : vector<128x128xf32> to vector<128x128xbf16>
    %c0_3 = arith.constant 0 : index
    %c0_4 = arith.constant 0 : index
    %6 = vector.load %arg3[%c0_3, %c0_4] : memref<128x8xf32, #tpu.memory_space<vmem>>, vector<128x8xf32>
    %7 = arith.truncf %6 : vector<128x8xf32> to vector<128x8xbf16>
    %cst_5 = arith.constant dense<0.000000e+00> : vector<128x8xf32>
    %8 = tpu.matmul %5, %7, %cst_5 {dimension_numbers = #tpu.dot_dimension_numbers<[1], [0], [0], [1], [0, 0, 1, 1], [], []>} : vector<128x128xbf16>, vector<128x8xbf16>, vector<128x8xf32> -> vector<128x8xf32>
    %9 = vector.extract_strided_slice %8 {offsets = [0, 0], sizes = [128, 4], strides = [1, 1]} : vector<128x8xf32> to vector<128x4xf32>
    %10 = tpu.transpose %9, [1, 0] : vector<128x4xf32> -> vector<4x128xf32>
    %11 = vector.extract_strided_slice %8 {offsets = [0, 4], sizes = [128, 1], strides = [1, 1]} : vector<128x8xf32> to vector<128x1xf32>
    %12 = vector.extract_strided_slice %10 {offsets = [0, 0], sizes = [1, 128], strides = [1, 1]} : vector<4x128xf32> to vector<1x128xf32>
    %13 = vector.broadcast %11 : vector<128x1xf32> to vector<128x128xf32>
    %14 = vector.broadcast %12 : vector<1x128xf32> to vector<128x128xf32>
    %15 = arith.addf %13, %14 : vector<128x128xf32>
    %cst_6 = arith.constant 2.000000e-01 : f32
    %16 = vector.broadcast %cst_6 : f32 to vector<128x128xf32>
    %17 = arith.mulf %16, %15 : vector<128x128xf32>
    %18 = arith.maximumf %15, %17 : vector<128x128xf32>
    %c0_7 = arith.constant 0 : index
    %c0_8 = arith.constant 0 : index
    %19 = vector.load %arg1[%c0_7, %c0_8] : memref<128x128xf32, #tpu.memory_space<vmem>>, vector<128x128xf32>
    %20 = arith.addf %18, %19 : vector<128x128xf32>
    %cst_9 = arith.constant dense<0xFF800000> : vector<128xf32>
    %21 = vector.multi_reduction <maximumf>, %20, %cst_9 [1] : vector<128x128xf32> to vector<128xf32>
    %22 = vector.shape_cast %21 : vector<128xf32> to vector<128x1xf32>
    %23 = vector.broadcast %22 : vector<128x1xf32> to vector<128x128xf32>
    %24 = arith.subf %20, %23 : vector<128x128xf32>
    %25 = math.exp %24 : vector<128x128xf32>
    %cst_10 = arith.constant dense<0.000000e+00> : vector<128xf32>
    %26 = vector.multi_reduction <add>, %25, %cst_10 [1] : vector<128x128xf32> to vector<128xf32>
    %27 = vector.shape_cast %26 : vector<128xf32> to vector<128x1xf32>
    %28 = arith.truncf %25 : vector<128x128xf32> to vector<128x128xbf16>
    %29 = vector.extract_strided_slice %5 {offsets = [0, 0], sizes = [128, 32], strides = [1, 1]} : vector<128x128xbf16> to vector<128x32xbf16>
    %cst_11 = arith.constant dense<0.000000e+00> : vector<128x32xf32>
    %30 = tpu.matmul %28, %29, %cst_11 {dimension_numbers = #tpu.dot_dimension_numbers<[1], [0], [0], [1], [0, 0, 1, 1], [], []>} : vector<128x128xbf16>, vector<128x32xbf16>, vector<128x32xf32> -> vector<128x32xf32>
    %31 = tpu.reciprocal %27 {approx = true} : vector<128x1xf32> -> vector<128x1xf32>
    %32 = vector.broadcast %31 : vector<128x1xf32> to vector<128x32xf32>
    %33 = arith.mulf %30, %32 : vector<128x32xf32>
    %c0_12 = arith.constant 0 : index
    %c0_13 = arith.constant 0 : index
    %34 = vector.load %arg12[%c0_12, %c0_13] : memref<128x128xf32, #tpu.memory_space<vmem>>, vector<128x32xf32>
    tpu.vector_store %arg12[%c0_12, %c0_13], %33 {strides = array<i32>} : memref<128x128xf32, #tpu.memory_space<vmem>>, vector<128x32xf32>,
    %35 = vector.extract_strided_slice %8 {offsets = [0, 5], sizes = [128, 1], strides = [1, 1]} : vector<128x8xf32> to vector<128x1xf32>
    %36 = vector.extract_strided_slice %10 {offsets = [1, 0], sizes = [1, 128], strides = [1, 1]} : vector<4x128xf32> to vector<1x128xf32>
    %37 = vector.broadcast %35 : vector<128x1xf32> to vector<128x128xf32>
    %38 = vector.broadcast %36 : vector<1x128xf32> to vector<128x128xf32>
    %39 = arith.addf %37, %38 : vector<128x128xf32>
    %cst_14 = arith.constant 2.000000e-01 : f32
    %40 = vector.broadcast %cst_14 : f32 to vector<128x128xf32>
    %41 = arith.mulf %40, %39 : vector<128x128xf32>
    %42 = arith.maximumf %39, %41 : vector<128x128xf32>
    %c0_15 = arith.constant 0 : index
    %c0_16 = arith.constant 0 : index
    %43 = vector.load %arg1[%c0_15, %c0_16] : memref<128x128xf32, #tpu.memory_space<vmem>>, vector<128x128xf32>
    %44 = arith.addf %42, %43 : vector<128x128xf32>
    %cst_17 = arith.constant dense<0xFF800000> : vector<128xf32>
    %45 = vector.multi_reduction <maximumf>, %44, %cst_17 [1] : vector<128x128xf32> to vector<128xf32>
    %46 = vector.shape_cast %45 : vector<128xf32> to vector<128x1xf32>
    %47 = vector.broadcast %46 : vector<128x1xf32> to vector<128x128xf32>
    %48 = arith.subf %44, %47 : vector<128x128xf32>
    %49 = math.exp %48 : vector<128x128xf32>
    %cst_18 = arith.constant dense<0.000000e+00> : vector<128xf32>
    %50 = vector.multi_reduction <add>, %49, %cst_18 [1] : vector<128x128xf32> to vector<128xf32>
    %51 = vector.shape_cast %50 : vector<128xf32> to vector<128x1xf32>
    %52 = arith.truncf %49 : vector<128x128xf32> to vector<128x128xbf16>
    %53 = vector.extract_strided_slice %5 {offsets = [0, 32], sizes = [128, 32], strides = [1, 1]} : vector<128x128xbf16> to vector<128x32xbf16>
    %cst_19 = arith.constant dense<0.000000e+00> : vector<128x32xf32>
    %54 = tpu.matmul %52, %53, %cst_19 {dimension_numbers = #tpu.dot_dimension_numbers<[1], [0], [0], [1], [0, 0, 1, 1], [], []>} : vector<128x128xbf16>, vector<128x32xbf16>, vector<128x32xf32> -> vector<128x32xf32>
    %55 = tpu.reciprocal %51 {approx = true} : vector<128x1xf32> -> vector<128x1xf32>
    %56 = vector.broadcast %55 : vector<128x1xf32> to vector<128x32xf32>
    %57 = arith.mulf %54, %56 : vector<128x32xf32>
    %c0_20 = arith.constant 0 : index
    %c32 = arith.constant 32 : index
    %58 = vector.load %arg12[%c0_20, %c32] : memref<128x128xf32, #tpu.memory_space<vmem>>, vector<128x32xf32>
    tpu.vector_store %arg12[%c0_20, %c32], %57 {strides = array<i32>} : memref<128x128xf32, #tpu.memory_space<vmem>>, vector<128x32xf32>,
    %59 = vector.extract_strided_slice %8 {offsets = [0, 6], sizes = [128, 1], strides = [1, 1]} : vector<128x8xf32> to vector<128x1xf32>
    %60 = vector.extract_strided_slice %10 {offsets = [2, 0], sizes = [1, 128], strides = [1, 1]} : vector<4x128xf32> to vector<1x128xf32>
    %61 = vector.broadcast %59 : vector<128x1xf32> to vector<128x128xf32>
    %62 = vector.broadcast %60 : vector<1x128xf32> to vector<128x128xf32>
    %63 = arith.addf %61, %62 : vector<128x128xf32>
    %cst_21 = arith.constant 2.000000e-01 : f32
    %64 = vector.broadcast %cst_21 : f32 to vector<128x128xf32>
    %65 = arith.mulf %64, %63 : vector<128x128xf32>
    %66 = arith.maximumf %63, %65 : vector<128x128xf32>
    %c0_22 = arith.constant 0 : index
    %c0_23 = arith.constant 0 : index
    %67 = vector.load %arg1[%c0_22, %c0_23] : memref<128x128xf32, #tpu.memory_space<vmem>>, vector<128x128xf32>
    %68 = arith.addf %66, %67 : vector<128x128xf32>
    %cst_24 = arith.constant dense<0xFF800000> : vector<128xf32>
    %69 = vector.multi_reduction <maximumf>, %68, %cst_24 [1] : vector<128x128xf32> to vector<128xf32>
    %70 = vector.shape_cast %69 : vector<128xf32> to vector<128x1xf32>
    %71 = vector.broadcast %70 : vector<128x1xf32> to vector<128x128xf32>
    %72 = arith.subf %68, %71 : vector<128x128xf32>
    %73 = math.exp %72 : vector<128x128xf32>
    %cst_25 = arith.constant dense<0.000000e+00> : vector<128xf32>
    %74 = vector.multi_reduction <add>, %73, %cst_25 [1] : vector<128x128xf32> to vector<128xf32>
    %75 = vector.shape_cast %74 : vector<128xf32> to vector<128x1xf32>
    %76 = arith.truncf %73 : vector<128x128xf32> to vector<128x128xbf16>
    %77 = vector.extract_strided_slice %5 {offsets = [0, 64], sizes = [128, 32], strides = [1, 1]} : vector<128x128xbf16> to vector<128x32xbf16>
    %cst_26 = arith.constant dense<0.000000e+00> : vector<128x32xf32>
    %78 = tpu.matmul %76, %77, %cst_26 {dimension_numbers = #tpu.dot_dimension_numbers<[1], [0], [0], [1], [0, 0, 1, 1], [], []>} : vector<128x128xbf16>, vector<128x32xbf16>, vector<128x32xf32> -> vector<128x32xf32>
    %79 = tpu.reciprocal %75 {approx = true} : vector<128x1xf32> -> vector<128x1xf32>
    %80 = vector.broadcast %79 : vector<128x1xf32> to vector<128x32xf32>
    %81 = arith.mulf %78, %80 : vector<128x32xf32>
    %c0_27 = arith.constant 0 : index
    %c64 = arith.constant 64 : index
    %82 = vector.load %arg12[%c0_27, %c64] : memref<128x128xf32, #tpu.memory_space<vmem>>, vector<128x32xf32>
    tpu.vector_store %arg12[%c0_27, %c64], %81 {strides = array<i32>} : memref<128x128xf32, #tpu.memory_space<vmem>>, vector<128x32xf32>,
    %83 = vector.extract_strided_slice %8 {offsets = [0, 7], sizes = [128, 1], strides = [1, 1]} : vector<128x8xf32> to vector<128x1xf32>
    %84 = vector.extract_strided_slice %10 {offsets = [3, 0], sizes = [1, 128], strides = [1, 1]} : vector<4x128xf32> to vector<1x128xf32>
    %85 = vector.broadcast %83 : vector<128x1xf32> to vector<128x128xf32>
    %86 = vector.broadcast %84 : vector<1x128xf32> to vector<128x128xf32>
    %87 = arith.addf %85, %86 : vector<128x128xf32>
    %cst_28 = arith.constant 2.000000e-01 : f32
    %88 = vector.broadcast %cst_28 : f32 to vector<128x128xf32>
    %89 = arith.mulf %88, %87 : vector<128x128xf32>
    %90 = arith.maximumf %87, %89 : vector<128x128xf32>
    %c0_29 = arith.constant 0 : index
    %c0_30 = arith.constant 0 : index
    %91 = vector.load %arg1[%c0_29, %c0_30] : memref<128x128xf32, #tpu.memory_space<vmem>>, vector<128x128xf32>
    %92 = arith.addf %90, %91 : vector<128x128xf32>
    %cst_31 = arith.constant dense<0xFF800000> : vector<128xf32>
    %93 = vector.multi_reduction <maximumf>, %92, %cst_31 [1] : vector<128x128xf32> to vector<128xf32>
    %94 = vector.shape_cast %93 : vector<128xf32> to vector<128x1xf32>
    %95 = vector.broadcast %94 : vector<128x1xf32> to vector<128x128xf32>
    %96 = arith.subf %92, %95 : vector<128x128xf32>
    %97 = math.exp %96 : vector<128x128xf32>
    %cst_32 = arith.constant dense<0.000000e+00> : vector<128xf32>
    %98 = vector.multi_reduction <add>, %97, %cst_32 [1] : vector<128x128xf32> to vector<128xf32>
    %99 = vector.shape_cast %98 : vector<128xf32> to vector<128x1xf32>
    %100 = arith.truncf %97 : vector<128x128xf32> to vector<128x128xbf16>
    %101 = vector.extract_strided_slice %5 {offsets = [0, 96], sizes = [128, 32], strides = [1, 1]} : vector<128x128xbf16> to vector<128x32xbf16>
    %cst_33 = arith.constant dense<0.000000e+00> : vector<128x32xf32>
    %102 = tpu.matmul %100, %101, %cst_33 {dimension_numbers = #tpu.dot_dimension_numbers<[1], [0], [0], [1], [0, 0, 1, 1], [], []>} : vector<128x128xbf16>, vector<128x32xbf16>, vector<128x32xf32> -> vector<128x32xf32>
    %103 = tpu.reciprocal %99 {approx = true} : vector<128x1xf32> -> vector<128x1xf32>
    %104 = vector.broadcast %103 : vector<128x1xf32> to vector<128x32xf32>
    %105 = arith.mulf %102, %104 : vector<128x32xf32>
    %c0_34 = arith.constant 0 : index
    %c96 = arith.constant 96 : index
    %106 = vector.load %arg12[%c0_34, %c96] : memref<128x128xf32, #tpu.memory_space<vmem>>, vector<128x32xf32>
    tpu.vector_store %arg12[%c0_34, %c96], %105 {strides = array<i32>} : memref<128x128xf32, #tpu.memory_space<vmem>>, vector<128x32xf32>,
    %c0_35 = arith.constant 0 : index
    %c0_36 = arith.constant 0 : index
    %107 = vector.load %arg12[%c0_35, %c0_36] : memref<128x128xf32, #tpu.memory_space<vmem>>, vector<128x128xf32>
    %c0_37 = arith.constant 0 : index
    %c0_38 = arith.constant 0 : index
    %108 = vector.load %arg4[%c0_37, %c0_38] : memref<1x128xf32, #tpu.memory_space<vmem>>, vector<1x128xf32>
    %109 = vector.broadcast %108 : vector<1x128xf32> to vector<128x128xf32>
    %110 = arith.addf %107, %109 : vector<128x128xf32>
    %cst_39 = arith.constant 0.000000e+00 : f32
    %111 = vector.broadcast %cst_39 : f32 to vector<128x128xf32>
    %112 = arith.minimumf %110, %111 : vector<128x128xf32>
    %113 = math.exp %112 : vector<128x128xf32>
    %cst_40 = arith.constant 1.000000e+00 : f32
    %114 = vector.broadcast %cst_40 : f32 to vector<128x128xf32>
    %115 = arith.subf %113, %114 : vector<128x128xf32>
    %cst_41 = arith.constant 0.000000e+00 : f32
    %116 = vector.broadcast %cst_41 : f32 to vector<128x128xf32>
    %117 = arith.cmpf ogt, %110, %116 : vector<128x128xf32>
    %118 = arith.select %117, %110, %115 : vector<128x128xi1>, vector<128x128xf32>
    %119 = arith.truncf %118 : vector<128x128xf32> to vector<128x128xbf16>
    %c0_42 = arith.constant 0 : index
    %c0_43 = arith.constant 0 : index
    %120 = vector.load %arg5[%c0_42, %c0_43] : memref<128x32xf32, #tpu.memory_space<vmem>>, vector<128x32xf32>
    %121 = arith.truncf %120 : vector<128x32xf32> to vector<128x32xbf16>
    %cst_44 = arith.constant dense<0.000000e+00> : vector<128x32xf32>
    %122 = tpu.matmul %119, %121, %cst_44 {dimension_numbers = #tpu.dot_dimension_numbers<[1], [0], [0], [1], [0, 0, 1, 1], [], []>} : vector<128x128xbf16>, vector<128x32xbf16>, vector<128x32xf32> -> vector<128x32xf32>
    %123 = arith.truncf %122 : vector<128x32xf32> to vector<128x32xbf16>
    %c0_45 = arith.constant 0 : index
    %c0_46 = arith.constant 0 : index
    %124 = vector.load %arg6[%c0_45, %c0_46] : memref<32x2xf32, #tpu.memory_space<vmem>>, vector<32x2xf32>
    %125 = arith.truncf %124 : vector<32x2xf32> to vector<32x2xbf16>
    %cst_47 = arith.constant dense<0.000000e+00> : vector<128x2xf32>
    %126 = tpu.matmul %123, %125, %cst_47 {dimension_numbers = #tpu.dot_dimension_numbers<[1], [0], [0], [1], [0, 0, 1, 1], [], []>} : vector<128x32xbf16>, vector<32x2xbf16>, vector<128x2xf32> -> vector<128x2xf32>
    %127 = vector.extract_strided_slice %126 {offsets = [0, 1], sizes = [128, 1], strides = [1, 1]} : vector<128x2xf32> to vector<128x1xf32>
    %128 = vector.extract_strided_slice %126 {offsets = [0, 0], sizes = [128, 1], strides = [1, 1]} : vector<128x2xf32> to vector<128x1xf32>
    %129 = tpu.transpose %128, [1, 0] : vector<128x1xf32> -> vector<1x128xf32>
    %130 = vector.broadcast %127 : vector<128x1xf32> to vector<128x128xf32>
    %131 = vector.broadcast %129 : vector<1x128xf32> to vector<128x128xf32>
    %132 = arith.addf %130, %131 : vector<128x128xf32>
    %cst_48 = arith.constant 2.000000e-01 : f32
    %133 = vector.broadcast %cst_48 : f32 to vector<128x128xf32>
    %134 = arith.mulf %133, %132 : vector<128x128xf32>
    %135 = arith.maximumf %132, %134 : vector<128x128xf32>
    %c0_49 = arith.constant 0 : index
    %c0_50 = arith.constant 0 : index
    %136 = vector.load %arg1[%c0_49, %c0_50] : memref<128x128xf32, #tpu.memory_space<vmem>>, vector<128x128xf32>
    %137 = arith.addf %135, %136 : vector<128x128xf32>
    %cst_51 = arith.constant dense<0xFF800000> : vector<128xf32>
    %138 = vector.multi_reduction <maximumf>, %137, %cst_51 [1] : vector<128x128xf32> to vector<128xf32>
    %139 = vector.shape_cast %138 : vector<128xf32> to vector<128x1xf32>
    %140 = vector.broadcast %139 : vector<128x1xf32> to vector<128x128xf32>
    %141 = arith.subf %137, %140 : vector<128x128xf32>
    %142 = math.exp %141 : vector<128x128xf32>
    %cst_52 = arith.constant dense<0.000000e+00> : vector<128xf32>
    %143 = vector.multi_reduction <add>, %142, %cst_52 [1] : vector<128x128xf32> to vector<128xf32>
    %144 = vector.shape_cast %143 : vector<128xf32> to vector<128x1xf32>
    %145 = arith.truncf %142 : vector<128x128xf32> to vector<128x128xbf16>
    %cst_53 = arith.constant dense<0.000000e+00> : vector<128x32xf32>
    %146 = tpu.matmul %145, %123, %cst_53 {dimension_numbers = #tpu.dot_dimension_numbers<[1], [0], [0], [1], [0, 0, 1, 1], [], []>} : vector<128x128xbf16>, vector<128x32xbf16>, vector<128x32xf32> -> vector<128x32xf32>
    %147 = tpu.reciprocal %144 {approx = true} : vector<128x1xf32> -> vector<128x1xf32>
    %148 = vector.broadcast %147 : vector<128x1xf32> to vector<128x32xf32>
    %149 = arith.mulf %146, %148 : vector<128x32xf32>
    %c0_54 = arith.constant 0 : index
    %c0_55 = arith.constant 0 : index
    %150 = vector.load %arg7[%c0_54, %c0_55] : memref<1x32xf32, #tpu.memory_space<vmem>>, vector<1x32xf32>
    %151 = vector.broadcast %150 : vector<1x32xf32> to vector<128x32xf32>
    %152 = arith.addf %149, %151 : vector<128x32xf32>
    %cst_56 = arith.constant 0.000000e+00 : f32
    %153 = vector.broadcast %cst_56 : f32 to vector<128x32xf32>
    %154 = arith.minimumf %152, %153 : vector<128x32xf32>
    %155 = math.exp %154 : vector<128x32xf32>
    %cst_57 = arith.constant 1.000000e+00 : f32
    %156 = vector.broadcast %cst_57 : f32 to vector<128x32xf32>
    %157 = arith.subf %155, %156 : vector<128x32xf32>
    %cst_58 = arith.constant 0.000000e+00 : f32
    %158 = vector.broadcast %cst_58 : f32 to vector<128x32xf32>
    %159 = arith.cmpf ogt, %152, %158 : vector<128x32xf32>
    %160 = arith.select %159, %152, %157 : vector<128x32xi1>, vector<128x32xf32>
    %c0_59 = arith.constant 0 : index
    %c0_60 = arith.constant 0 : index
    %161 = vector.load %arg8[%c0_59, %c0_60] : memref<2x128xf32, #tpu.memory_space<vmem>>, vector<2x128xf32>
    %cst_61 = arith.constant dense<0.000000e+00> : vector<2x32xf32>
    %162 = tpu.matmul %161, %160, %cst_61 {dimension_numbers = #tpu.dot_dimension_numbers<[1], [0], [0], [1], [0, 0, 1, 1], [], []>} : vector<2x128xf32>, vector<128x32xf32>, vector<2x32xf32> -> vector<2x32xf32>
    %c0_62 = arith.constant 0 : index
    %c0_63 = arith.constant 0 : index
    %163 = vector.load %arg9[%c0_62, %c0_63] : memref<32x8xf32, #tpu.memory_space<vmem>>, vector<32x8xf32>
    %cst_64 = arith.constant dense<0.000000e+00> : vector<2x8xf32>
    %164 = tpu.matmul %162, %163, %cst_64 {dimension_numbers = #tpu.dot_dimension_numbers<[1], [0], [0], [1], [0, 0, 1, 1], [], []>} : vector<2x32xf32>, vector<32x8xf32>, vector<2x8xf32> -> vector<2x8xf32>
    %c0_65 = arith.constant 0 : index
    %c0_66 = arith.constant 0 : index
    %165 = vector.load %arg10[%c0_65, %c0_66] : memref<1x8xf32, #tpu.memory_space<vmem>>, vector<1x8xf32>
    %166 = vector.broadcast %165 : vector<1x8xf32> to vector<2x8xf32>
    %167 = arith.addf %164, %166 : vector<2x8xf32>
    %c0_67 = arith.constant 0 : index
    %c0_68 = arith.constant 0 : index
    %168 = vector.load %arg11[%c0_67, %c0_68] : memref<2x8xf32, #tpu.memory_space<vmem>>, vector<2x8xf32>
    tpu.vector_store %arg11[%c0_67, %c0_68], %167 {strides = array<i32>} : memref<2x8xf32, #tpu.memory_space<vmem>>, vector<2x8xf32>,
    return
  }
}

</mosaic_0001>

<llo_original>
// kernel: tpu_custom_call.1
$region0: #{tpu_custom_call.1}
  #allocation0 [shape = 'u32[]', space=smem, size = 0x4, offset = 0x4, fixed_abs, tag = 'smem constant byte address 0x4 - core index']
  #allocation1 [shape = 'u32[144,128]{1,0:T(1,128)}', space=vmem, size = 0x12000, scoped, tag = 'internal scratch']
  #allocation2 [shape = 'f32[128,128]{1,0:T(8,128)}', space=vmem, size = 0x10000, scoped, tag = 'scratch operand']
  %s0 = inlined_call_operand.vmem [shape: f32[128,32], index: 0, kind: input, shape index: {}]
  %s1 = inlined_call_operand.vmem [shape: f32[128,128], index: 1, kind: input, shape index: {}]
  %s2 = inlined_call_operand.vmem [shape: f32[32,128], index: 2, kind: input, shape index: {}]
  %s3 = inlined_call_operand.vmem [shape: f32[128,8], index: 3, kind: input, shape index: {}]
  %s4 = inlined_call_operand.vmem [shape: f32[1,128], index: 4, kind: input, shape index: {}]
  %s5 = inlined_call_operand.vmem [shape: f32[128,32], index: 5, kind: input, shape index: {}]
  %s6 = inlined_call_operand.vmem [shape: f32[32,2], index: 6, kind: input, shape index: {}]
  %s7 = inlined_call_operand.vmem [shape: f32[1,32], index: 7, kind: input, shape index: {}]
  %s8 = inlined_call_operand.vmem [shape: f32[2,128], index: 8, kind: input, shape index: {}]
  %s9 = inlined_call_operand.vmem [shape: f32[32,8], index: 9, kind: input, shape index: {}]
  %s10 = inlined_call_operand.vmem [shape: f32[1,8], index: 10, kind: input, shape index: {}]
  %s11 = inlined_call_operand.hbm [shape: f32[2,8], index: 11, kind: output, shape index: {}]
  %s12 = sld [smem:[#allocation0]]
  $region54: #{tpu_custom_call.1} parent=0
    _
  %s14 = ssub.s32 1, %s12
  %s15 = scalar_select 0, %s14, %s12
  $region1: #{tpu_custom_call.1} parent=0
    #allocation3 [shape = 'u8[1024]{0}', space=vmem, size = 0x400, scoped, tag = 'output window, operand 0, single buffered']
    #allocation4 [shape = 's32[1]{0}', space=sflag, size = 0x4, scoped, tag = 'scoped memory for tpu_custom_call.1']
    %16 = vsyncpa [#allocation4], 0
    // Predicated region
    $region2: #{tpu_custom_call.1} parent=1 // pred_check
      _
    $region3: #{tpu_custom_call.1} parent=1 // pred_check_branch
      %18 = sbr.rel (0) target = $region5
    $region4: #{tpu_custom_call.1} parent=1 // pred_region
      _
    $region5: #{tpu_custom_call.1} parent=1 // pred_fallthru
      _
    // Predicated region
    $region6: #{tpu_custom_call.1} parent=1 // pred_check
      _
    $region7: #{tpu_custom_call.1} parent=1 // pred_check_branch
      %20 = sbr.rel (0) target = $region9
    $region8: #{tpu_custom_call.1} parent=1 // pred_region
      _
    $region9: #{tpu_custom_call.1} parent=1 // pred_fallthru
      _
    // Predicated region
    $region10: #{tpu_custom_call.1} parent=1 // pred_check
      _
    $region11: #{tpu_custom_call.1} parent=1 // pred_check_branch
      %22 = sbr.rel (0) target = $region13
    $region12: #{tpu_custom_call.1} parent=1 // pred_region
      _
    $region13: #{tpu_custom_call.1} parent=1 // pred_fallthru
      _
    // Predicated region
    $region14: #{tpu_custom_call.1} parent=1 // pred_check
      _
    $region15: #{tpu_custom_call.1} parent=1 // pred_check_branch
      %24 = sbr.rel (0) target = $region17
    $region16: #{tpu_custom_call.1} parent=1 // pred_region
      _
    $region17: #{tpu_custom_call.1} parent=1 // pred_fallthru
      _
    // Predicated region
    $region18: #{tpu_custom_call.1} parent=1 // pred_check
      _
    $region19: #{tpu_custom_call.1} parent=1 // pred_check_branch
      %26 = sbr.rel (0) target = $region21
    $region20: #{tpu_custom_call.1} parent=1 // pred_region
      _
    $region21: #{tpu_custom_call.1} parent=1 // pred_fallthru
      _
    // Predicated region
    $region22: #{tpu_custom_call.1} parent=1 // pred_check
      _
    $region23: #{tpu_custom_call.1} parent=1 // pred_check_branch
      %28 = sbr.rel (0) target = $region25
    $region24: #{tpu_custom_call.1} parent=1 // pred_region
      _
    $region25: #{tpu_custom_call.1} parent=1 // pred_fallthru
      _
    // Predicated region
    $region26: #{tpu_custom_call.1} parent=1 // pred_check
      _
    $region27: #{tpu_custom_call.1} parent=1 // pred_check_branch
      %30 = sbr.rel (0) target = $region29
    $region28: #{tpu_custom_call.1} parent=1 // pred_region
      _
    $region29: #{tpu_custom_call.1} parent=1 // pred_fallthru
      _
    // Predicated region
    $region30: #{tpu_custom_call.1} parent=1 // pred_check
      _
    $region31: #{tpu_custom_call.1} parent=1 // pred_check_branch
      %32 = sbr.rel (0) target = $region33
    $region32: #{tpu_custom_call.1} parent=1 // pred_region
      _
    $region33: #{tpu_custom_call.1} parent=1 // pred_fallthru
      _
    // Predicated region
    $region34: #{tpu_custom_call.1} parent=1 // pred_check
      _
    $region35: #{tpu_custom_call.1} parent=1 // pred_check_branch
      %34 = sbr.rel (0) target = $region37
    $region36: #{tpu_custom_call.1} parent=1 // pred_region
      _
    $region37: #{tpu_custom_call.1} parent=1 // pred_fallthru
      _
    // Predicated region
    $region38: #{tpu_custom_call.1} parent=1 // pred_check
      _
    $region39: #{tpu_custom_call.1} parent=1 // pred_check_branch
      %36 = sbr.rel (0) target = $region41
    $region40: #{tpu_custom_call.1} parent=1 // pred_region
      _
    $region41: #{tpu_custom_call.1} parent=1 // pred_fallthru
      _
    // Predicated region
    $region42: #{tpu_custom_call.1} parent=1 // pred_check
      _
    $region43: #{tpu_custom_call.1} parent=1 // pred_check_branch
      %38 = sbr.rel (0) target = $region45
    $region44: #{tpu_custom_call.1} parent=1 // pred_region
      _
    $region45: #{tpu_custom_call.1} parent=1 // pred_fallthru
      _
    %v40 = vld [vmem:[%s0] sm:$0xff]
    %v41 = vld [vmem:[%s0 + $0x8] sm:$0xff]
    %v42 = vld [vmem:[%s0 + $0x10] sm:$0xff]
    %v43 = vld [vmem:[%s0 + $0x18] sm:$0xff]
    %v44 = vld [vmem:[%s0 + $0x20] sm:$0xff]
    %v45 = vld [vmem:[%s0 + $0x28] sm:$0xff]
    %v46 = vld [vmem:[%s0 + $0x30] sm:$0xff]
    %v47 = vld [vmem:[%s0 + $0x38] sm:$0xff]
    %v48 = vld [vmem:[%s0 + $0x40] sm:$0xff]
    %v49 = vld [vmem:[%s0 + $0x48] sm:$0xff]
    %v50 = vld [vmem:[%s0 + $0x50] sm:$0xff]
    %v51 = vld [vmem:[%s0 + $0x58] sm:$0xff]
    %v52 = vld [vmem:[%s0 + $0x60] sm:$0xff]
    %v53 = vld [vmem:[%s0 + $0x68] sm:$0xff]
    %v54 = vld [vmem:[%s0 + $0x70] sm:$0xff]
    %v55 = vld [vmem:[%s0 + $0x78] sm:$0xff]
    %v56 = vpack.c.bf16 %v41, %v40
    %v57 = vpack.c.bf16 %v43, %v42
    %v58 = vpack.c.bf16 %v45, %v44
    %v59 = vpack.c.bf16 %v47, %v46
    %v60 = vpack.c.bf16 %v49, %v48
    %v61 = vpack.c.bf16 %v51, %v50
    %v62 = vpack.c.bf16 %v53, %v52
    %v63 = vpack.c.bf16 %v55, %v54
    %v64 = vld [vmem:[%s2] sm:$0xff]
    %v65 = vld [vmem:[%s2 + $0x8] sm:$0xff]
    %v66 = vld [vmem:[%s2 + $0x10] sm:$0xff]
    %v67 = vld [vmem:[%s2 + $0x18] sm:$0xff]
    %v68 = vpack.c.bf16 %v65, %v64
    %v69 = vpack.c.bf16 %v67, %v66
    %vm70 = vcmask 261120
    %v72 = vsel %vm70, %v56, 0
    %v75 = vsel %vm70, %v57, 0
    %v78 = vsel %vm70, %v58, 0
    %v81 = vsel %vm70, %v59, 0
    %v84 = vsel %vm70, %v60, 0
    %v87 = vsel %vm70, %v61, 0
    %v90 = vsel %vm70, %v62, 0
    %v93 = vsel %vm70, %v63, 0
    %95 = vmatprep.subr.bf16.mxu0 0
    %96 = vmatpush1.bf16.msra.mxu0 0
    %97 = vmatprep.subr.bf16.mxu0 0
    %98 = vmatpush1.bf16.msra.mxu0 0
    %99 = vmatprep.subr.bf16.mxu0 0
    %100 = vmatpush1.bf16.msra.mxu0 0
    %101 = vmatprep.subr.bf16.mxu0 0
    %102 = vmatpush1.bf16.msra.mxu0 0
    %103 = vmatprep.subr.bf16.mxu0 0
    %104 = vmatpush1.bf16.msra.mxu0 0
    %105 = vmatprep.subr.bf16.mxu0 0
    %106 = vmatpush1.bf16.msra.mxu0 0
    %107 = vmatprep.subr.bf16.mxu0 0
    %108 = vmatpush1.bf16.msra.mxu0 %v69
    %109 = vmatprep.subr.bf16.mxu0 0
    %110 = vmatpush1.bf16.msra.mxu0 %v68
    %111 = vmatprep.subr.bf16.mxu0 0
    %112 = vmatpush2.bf16.msra.mxu0 0
    %113 = vmatprep.subr.bf16.mxu0 0
    %114 = vmatpush2.bf16.msra.mxu0 0
    %115 = vmatprep.subr.bf16.mxu0 0
    %116 = vmatpush2.bf16.msra.mxu0 0
    %117 = vmatprep.subr.bf16.mxu0 0
    %118 = vmatpush2.bf16.msra.mxu0 0
    %119 = vmatprep.subr.bf16.mxu0 0
    %120 = vmatpush2.bf16.msra.mxu0 0
    %121 = vmatprep.subr.bf16.mxu0 0
    %122 = vmatpush2.bf16.msra.mxu0 0
    %123 = vmatprep.subr.bf16.mxu0 0
    %124 = vmatpush2.bf16.msra.mxu0 0
    %125 = vmatprep.subr.bf16.mxu0 0
    %126 = vmatpush2.bf16.msra.mxu0 0
    %127 = vmatprep.mubr.bf16.mxu0 0
    %128 = vmatmul.mubr.bf16.gmra.mxu0 %v72
    %v129 = vpop.f32.mrf.mxu0
    %v130 = vadd.f32 0.0, %v129
    %v131 = vpop.f32.mrf.mxu0
    %v132 = vpop.f32.mrf.mxu0
    %v133 = vadd.f32 0.0, %v132
    %v134 = vpop.f32.mrf.mxu0
    %135 = vmatprep.mubr.bf16.mxu0 0
    %136 = vmatmul.mubr.bf16.gmra.mxu0 %v75
    %v137 = vpop.f32.mrf.mxu0
    %v138 = vadd.f32 0.0, %v137
    %v139 = vpop.f32.mrf.mxu0
    %v140 = vpop.f32.mrf.mxu0
    %v141 = vadd.f32 0.0, %v140
    %v142 = vpop.f32.mrf.mxu0
    %143 = vmatprep.mubr.bf16.mxu0 0
    %144 = vmatmul.mubr.bf16.gmra.mxu0 %v78
    %v145 = vpop.f32.mrf.mxu0
    %v146 = vadd.f32 0.0, %v145
    %v147 = vpop.f32.mrf.mxu0
    %v148 = vpop.f32.mrf.mxu0
    %v149 = vadd.f32 0.0, %v148
    %v150 = vpop.f32.mrf.mxu0
    %151 = vmatprep.mubr.bf16.mxu0 0
    %152 = vmatmul.mubr.bf16.gmra.mxu0 %v81
    %v153 = vpop.f32.mrf.mxu0
    %v154 = vadd.f32 0.0, %v153
    %v155 = vpop.f32.mrf.mxu0
    %v156 = vpop.f32.mrf.mxu0
    %v157 = vadd.f32 0.0, %v156
    %v158 = vpop.f32.mrf.mxu0
    %159 = vmatprep.mubr.bf16.mxu0 0
    %160 = vmatmul.mubr.bf16.gmra.mxu0 %v84
    %v161 = vpop.f32.mrf.mxu0
    %v162 = vadd.f32 0.0, %v161
    %v163 = vpop.f32.mrf.mxu0
    %v164 = vpop.f32.mrf.mxu0
    %v165 = vadd.f32 0.0, %v164
    %v166 = vpop.f32.mrf.mxu0
    %167 = vmatprep.mubr.bf16.mxu0 0
    %168 = vmatmul.mubr.bf16.gmra.mxu0 %v87
    %v169 = vpop.f32.mrf.mxu0
    %v170 = vadd.f32 0.0, %v169
    %v171 = vpop.f32.mrf.mxu0
    %v172 = vpop.f32.mrf.mxu0
    %v173 = vadd.f32 0.0, %v172
    %v174 = vpop.f32.mrf.mxu0
    %175 = vmatprep.mubr.bf16.mxu0 0
    %176 = vmatmul.mubr.bf16.gmra.mxu0 %v90
    %v177 = vpop.f32.mrf.mxu0
    %v178 = vadd.f32 0.0, %v177
    %v179 = vpop.f32.mrf.mxu0
    %v180 = vpop.f32.mrf.mxu0
    %v181 = vadd.f32 0.0, %v180
    %v182 = vpop.f32.mrf.mxu0
    %183 = vmatprep.mubr.bf16.mxu0 0
    %184 = vmatmul.mubr.bf16.gmra.mxu0 %v93
    %v185 = vpop.f32.mrf.mxu0
    %v186 = vadd.f32 0.0, %v185
    %v187 = vpop.f32.mrf.mxu0
    %v188 = vpop.f32.mrf.mxu0
    %v189 = vadd.f32 0.0, %v188
    %v190 = vpop.f32.mrf.mxu0
    %191 = vdwg.mxu0
    %v192 = vpack.c.bf16 %v133, %v130
    %v193 = vpack.c.bf16 %v141, %v138
    %v194 = vpack.c.bf16 %v149, %v146
    %v195 = vpack.c.bf16 %v157, %v154
    %v196 = vpack.c.bf16 %v165, %v162
    %v197 = vpack.c.bf16 %v173, %v170
    %v198 = vpack.c.bf16 %v181, %v178
    %v199 = vpack.c.bf16 %v189, %v186
    %v200 = vld [vmem:[%s3] sm:$0xff]
    %v201 = vld [vmem:[%s3 + $0x8] sm:$0xff]
    %v202 = vld [vmem:[%s3 + $0x10] sm:$0xff]
    %v203 = vld [vmem:[%s3 + $0x18] sm:$0xff]
    %v204 = vld [vmem:[%s3 + $0x20] sm:$0xff]
    %v205 = vld [vmem:[%s3 + $0x28] sm:$0xff]
    %v206 = vld [vmem:[%s3 + $0x30] sm:$0xff]
    %v207 = vld [vmem:[%s3 + $0x38] sm:$0xff]
    %v208 = vld [vmem:[%s3 + $0x40] sm:$0xff]
    %v209 = vld [vmem:[%s3 + $0x48] sm:$0xff]
    %v210 = vld [vmem:[%s3 + $0x50] sm:$0xff]
    %v211 = vld [vmem:[%s3 + $0x58] sm:$0xff]
    %v212 = vld [vmem:[%s3 + $0x60] sm:$0xff]
    %v213 = vld [vmem:[%s3 + $0x68] sm:$0xff]
    %v214 = vld [vmem:[%s3 + $0x70] sm:$0xff]
    %v215 = vld [vmem:[%s3 + $0x78] sm:$0xff]
    %v216 = vpack.c.bf16 %v201, %v200
    %v217 = vpack.c.bf16 %v203, %v202
    %v218 = vpack.c.bf16 %v205, %v204
    %v219 = vpack.c.bf16 %v207, %v206
    %v220 = vpack.c.bf16 %v209, %v208
    %v221 = vpack.c.bf16 %v211, %v210
    %v222 = vpack.c.bf16 %v213, %v212
    %v223 = vpack.c.bf16 %v215, %v214
    %224 = vmatprep.subr.bf16.mxu0 0
    %225 = vmatpush1.bf16.msra.mxu0 %v223
    %226 = vmatprep.subr.bf16.mxu0 0
    %227 = vmatpush1.bf16.msra.mxu0 %v222
    %228 = vmatprep.subr.bf16.mxu0 0
    %229 = vmatpush1.bf16.msra.mxu0 %v221
    %230 = vmatprep.subr.bf16.mxu0 0
    %231 = vmatpush1.bf16.msra.mxu0 %v220
    %232 = vmatprep.subr.bf16.mxu0 0
    %233 = vmatpush1.bf16.msra.mxu0 %v219
    %234 = vmatprep.subr.bf16.mxu0 0
    %235 = vmatpush1.bf16.msra.mxu0 %v218
    %236 = vmatprep.subr.bf16.mxu0 0
    %237 = vmatpush1.bf16.msra.mxu0 %v217
    %238 = vmatprep.subr.bf16.mxu0 0
    %239 = vmatpush1.bf16.msra.mxu0 %v216
    %240 = vmatprep.subr.bf16.mxu0 0
    %241 = vmatpush2.bf16.msra.mxu0 0
    %242 = vmatprep.subr.bf16.mxu0 0
    %243 = vmatpush2.bf16.msra.mxu0 0
    %244 = vmatprep.subr.bf16.mxu0 0
    %245 = vmatpush2.bf16.msra.mxu0 0
    %246 = vmatprep.subr.bf16.mxu0 0
    %247 = vmatpush2.bf16.msra.mxu0 0
    %248 = vmatprep.subr.bf16.mxu0 0
    %249 = vmatpush2.bf16.msra.mxu0 0
    %250 = vmatprep.subr.bf16.mxu0 0
    %251 = vmatpush2.bf16.msra.mxu0 0
    %252 = vmatprep.subr.bf16.mxu0 0
    %253 = vmatpush2.bf16.msra.mxu0 0
    %254 = vmatprep.subr.bf16.mxu0 0
    %255 = vmatpush2.bf16.msra.mxu0 0
    %256 = vmatprep.mubr.bf16.mxu0 0
    %257 = vmatmul.mubr.bf16.gmra.mxu0 %v192
    %v258 = vpop.f32.mrf.mxu0
    %v259 = vadd.f32 0.0, %v258
    %v260 = vpop.f32.mrf.mxu0
    %v261 = vpop.f32.mrf.mxu0
    %v262 = vadd.f32 0.0, %v261
    %v263 = vpop.f32.mrf.mxu0
    %264 = vmatprep.mubr.bf16.mxu0 0
    %265 = vmatmul.mubr.bf16.gmra.mxu0 %v193
    %v266 = vpop.f32.mrf.mxu0
    %v267 = vadd.f32 0.0, %v266
    %v268 = vpop.f32.mrf.mxu0
    %v269 = vpop.f32.mrf.mxu0
    %v270 = vadd.f32 0.0, %v269
    %v271 = vpop.f32.mrf.mxu0
    %272 = vmatprep.mubr.bf16.mxu0 0
    %273 = vmatmul.mubr.bf16.gmra.mxu0 %v194
    %v274 = vpop.f32.mrf.mxu0
    %v275 = vadd.f32 0.0, %v274
    %v276 = vpop.f32.mrf.mxu0
    %v277 = vpop.f32.mrf.mxu0
    %v278 = vadd.f32 0.0, %v277
    %v279 = vpop.f32.mrf.mxu0
    %280 = vmatprep.mubr.bf16.mxu0 0
    %281 = vmatmul.mubr.bf16.gmra.mxu0 %v195
    %v282 = vpop.f32.mrf.mxu0
    %v283 = vadd.f32 0.0, %v282
    %v284 = vpop.f32.mrf.mxu0
    %v285 = vpop.f32.mrf.mxu0
    %v286 = vadd.f32 0.0, %v285
    %v287 = vpop.f32.mrf.mxu0
    %288 = vmatprep.mubr.bf16.mxu0 0
    %289 = vmatmul.mubr.bf16.gmra.mxu0 %v196
    %v290 = vpop.f32.mrf.mxu0
    %v291 = vadd.f32 0.0, %v290
    %v292 = vpop.f32.mrf.mxu0
    %v293 = vpop.f32.mrf.mxu0
    %v294 = vadd.f32 0.0, %v293
    %v295 = vpop.f32.mrf.mxu0
    %296 = vmatprep.mubr.bf16.mxu0 0
    %297 = vmatmul.mubr.bf16.gmra.mxu0 %v197
    %v298 = vpop.f32.mrf.mxu0
    %v299 = vadd.f32 0.0, %v298
    %v300 = vpop.f32.mrf.mxu0
    %v301 = vpop.f32.mrf.mxu0
    %v302 = vadd.f32 0.0, %v301
    %v303 = vpop.f32.mrf.mxu0
    %304 = vmatprep.mubr.bf16.mxu0 0
    %305 = vmatmul.mubr.bf16.gmra.mxu0 %v198
    %v306 = vpop.f32.mrf.mxu0
    %v307 = vadd.f32 0.0, %v306
    %v308 = vpop.f32.mrf.mxu0
    %v309 = vpop.f32.mrf.mxu0
    %v310 = vadd.f32 0.0, %v309
    %v311 = vpop.f32.mrf.mxu0
    %312 = vmatprep.mubr.bf16.mxu0 0
    %313 = vmatmul.mubr.bf16.gmra.mxu0 %v199
    %v314 = vpop.f32.mrf.mxu0
    %v315 = vadd.f32 0.0, %v314
    %v316 = vpop.f32.mrf.mxu0
    %v317 = vpop.f32.mrf.mxu0
    %v318 = vadd.f32 0.0, %v317
    %v319 = vpop.f32.mrf.mxu0
    %320 = vdwg.mxu0
    %321 = vxpose.xlu0.b32.start [1/16] %v259, 128
    %322 = vxpose.xlu0.b32.cont [2/16] %v262, 128
    %323 = vxpose.xlu0.b32.cont [3/16] %v267, 128
    %324 = vxpose.xlu0.b32.cont [4/16] %v270, 128
    %325 = vxpose.xlu0.b32.cont [5/16] %v275, 128
    %326 = vxpose.xlu0.b32.cont [6/16] %v278, 128
    %327 = vxpose.xlu0.b32.cont [7/16] %v283, 128
    %328 = vxpose.xlu0.b32.cont [8/16] %v286, 128
    %329 = vxpose.xlu0.b32.cont [9/16] %v291, 128
    %330 = vxpose.xlu0.b32.cont [10/16] %v294, 128
    %331 = vxpose.xlu0.b32.cont [11/16] %v299, 128
    %332 = vxpose.xlu0.b32.cont [12/16] %v302, 128
    %333 = vxpose.xlu0.b32.cont [13/16] %v307, 128
    %334 = vxpose.xlu0.b32.cont [14/16] %v310, 128
    %335 = vxpose.xlu0.b32.cont [15/16] %v315, 128
    %336 = vxpose.xlu0.b32.end [16/16] %v318, 128
    %v337 = vpop.trf.xlu0
    %v338 = vpop.trf.xlu0
    %v339 = vpop.trf.xlu0
    %v340 = vpop.trf.xlu0
    %v341 = vpop.trf.xlu0
    %v342 = vpop.trf.xlu0
    %v343 = vpop.trf.xlu0
    %v344 = vpop.trf.xlu0
    %v345 = vpop.trf.xlu0
    %v346 = vpop.trf.xlu0
    %v347 = vpop.trf.xlu0
    %v348 = vpop.trf.xlu0
    %v349 = vpop.trf.xlu0
    %v350 = vpop.trf.xlu0
    %v351 = vpop.trf.xlu0
    %v352 = vpop.trf.xlu0
    %354 = vset.pattern.permute.xlu0 4
    %355 = vperm.xlu0 %354, %v259
    %v356 = vpop.permute.xlu0 %355
    %359 = vset.pattern.permute.xlu0 4
    %360 = vperm.xlu0 %359, %v262
    %v361 = vpop.permute.xlu0 %360
    %364 = vset.pattern.permute.xlu0 4
    %365 = vperm.xlu0 %364, %v267
    %v366 = vpop.permute.xlu0 %365
    %369 = vset.pattern.permute.xlu0 4
    %370 = vperm.xlu0 %369, %v270
    %v371 = vpop.permute.xlu0 %370
    %374 = vset.pattern.permute.xlu0 4
    %375 = vperm.xlu0 %374, %v275
    %v376 = vpop.permute.xlu0 %375
    %379 = vset.pattern.permute.xlu0 4
    %380 = vperm.xlu0 %379, %v278
    %v381 = vpop.permute.xlu0 %380
    %384 = vset.pattern.permute.xlu0 4
    %385 = vperm.xlu0 %384, %v283
    %v386 = vpop.permute.xlu0 %385
    %389 = vset.pattern.permute.xlu0 4
    %390 = vperm.xlu0 %389, %v286
    %v391 = vpop.permute.xlu0 %390
    %394 = vset.pattern.permute.xlu0 4
    %395 = vperm.xlu0 %394, %v291
    %v396 = vpop.permute.xlu0 %395
    %399 = vset.pattern.permute.xlu0 4
    %400 = vperm.xlu0 %399, %v294
    %v401 = vpop.permute.xlu0 %400
    %404 = vset.pattern.permute.xlu0 4
    %405 = vperm.xlu0 %404, %v299
    %v406 = vpop.permute.xlu0 %405
    %409 = vset.pattern.permute.xlu0 4
    %410 = vperm.xlu0 %409, %v302
    %v411 = vpop.permute.xlu0 %410
    %414 = vset.pattern.permute.xlu0 4
    %415 = vperm.xlu0 %414, %v307
    %v416 = vpop.permute.xlu0 %415
    %419 = vset.pattern.permute.xlu0 4
    %420 = vperm.xlu0 %419, %v310
    %v421 = vpop.permute.xlu0 %420
    %424 = vset.pattern.permute.xlu0 4
    %425 = vperm.xlu0 %424, %v315
    %v426 = vpop.permute.xlu0 %425
    %429 = vset.pattern.permute.xlu0 4
    %430 = vperm.xlu0 %429, %v318
    %v431 = vpop.permute.xlu0 %430
    %v433 = vlaneseq
    %v434 = vshrl.u32 %v433, 7
    %v435 = vsub.s32 0, %v434
    %v436 = vrot.slane %v337, %v435
    %v437 = vadd.f32 %v356, %v436
    %v438 = vadd.f32 %v361, %v436
    %v439 = vadd.f32 %v366, %v436
    %v440 = vadd.f32 %v371, %v436
    %v441 = vadd.f32 %v376, %v436
    %v442 = vadd.f32 %v381, %v436
    %v443 = vadd.f32 %v386, %v436
    %v444 = vadd.f32 %v391, %v436
    %v445 = vadd.f32 %v396, %v436
    %v446 = vadd.f32 %v401, %v436
    %v447 = vadd.f32 %v406, %v436
    %v448 = vadd.f32 %v411, %v436
    %v449 = vadd.f32 %v416, %v436
    %v450 = vadd.f32 %v421, %v436
    %v451 = vadd.f32 %v426, %v436
    %v452 = vadd.f32 %v431, %v436
    %v453 = vmul.f32 %v437, 0.2
    %v454 = vmul.f32 %v438, 0.2
    %v455 = vmul.f32 %v439, 0.2
    %v456 = vmul.f32 %v440, 0.2
    %v457 = vmul.f32 %v441, 0.2
    %v458 = vmul.f32 %v442, 0.2
    %v459 = vmul.f32 %v443, 0.2
    %v460 = vmul.f32 %v444, 0.2
    %v461 = vmul.f32 %v445, 0.2
    %v462 = vmul.f32 %v446, 0.2
    %v463 = vmul.f32 %v447, 0.2
    %v464 = vmul.f32 %v448, 0.2
    %v465 = vmul.f32 %v449, 0.2
    %v466 = vmul.f32 %v450, 0.2
    %v467 = vmul.f32 %v451, 0.2
    %v468 = vmul.f32 %v452, 0.2
    %v469 = vmax.f32 %v437, %v453
    %v470 = vmax.f32 %v438, %v454
    %v471 = vmax.f32 %v439, %v455
    %v472 = vmax.f32 %v440, %v456
    %v473 = vmax.f32 %v441, %v457
    %v474 = vmax.f32 %v442, %v458
    %v475 = vmax.f32 %v443, %v459
    %v476 = vmax.f32 %v444, %v460
    %v477 = vmax.f32 %v445, %v461
    %v478 = vmax.f32 %v446, %v462
    %v479 = vmax.f32 %v447, %v463
    %v480 = vmax.f32 %v448, %v464
    %v481 = vmax.f32 %v449, %v465
    %v482 = vmax.f32 %v450, %v466
    %v483 = vmax.f32 %v451, %v467
    %v484 = vmax.f32 %v452, %v468
    %v485 = vld [vmem:[%s1] sm:$0xff]
    %v486 = vld [vmem:[%s1 + $0x8] sm:$0xff]
    %v487 = vld [vmem:[%s1 + $0x10] sm:$0xff]
    %v488 = vld [vmem:[%s1 + $0x18] sm:$0xff]
    %v489 = vld [vmem:[%s1 + $0x20] sm:$0xff]
    %v490 = vld [vmem:[%s1 + $0x28] sm:$0xff]
    %v491 = vld [vmem:[%s1 + $0x30] sm:$0xff]
    %v492 = vld [vmem:[%s1 + $0x38] sm:$0xff]
    %v493 = vld [vmem:[%s1 + $0x40] sm:$0xff]
    %v494 = vld [vmem:[%s1 + $0x48] sm:$0xff]
    %v495 = vld [vmem:[%s1 + $0x50] sm:$0xff]
    %v496 = vld [vmem:[%s1 + $0x58] sm:$0xff]
    %v497 = vld [vmem:[%s1 + $0x60] sm:$0xff]
    %v498 = vld [vmem:[%s1 + $0x68] sm:$0xff]
    %v499 = vld [vmem:[%s1 + $0x70] sm:$0xff]
    %v500 = vld [vmem:[%s1 + $0x78] sm:$0xff]
    %v501 = vadd.f32 %v469, %v485
    %v502 = vadd.f32 %v470, %v486
    %v503 = vadd.f32 %v471, %v487
    %v504 = vadd.f32 %v472, %v488
    %v505 = vadd.f32 %v473, %v489
    %v506 = vadd.f32 %v474, %v490
    %v507 = vadd.f32 %v475, %v491
    %v508 = vadd.f32 %v476, %v492
    %v509 = vadd.f32 %v477, %v493
    %v510 = vadd.f32 %v478, %v494
    %v511 = vadd.f32 %v479, %v495
    %v512 = vadd.f32 %v480, %v496
    %v513 = vadd.f32 %v481, %v497
    %v514 = vadd.f32 %v482, %v498
    %v515 = vadd.f32 %v483, %v499
    %v516 = vadd.f32 %v484, %v500
    %517 = vmax.xlane.f32.xlu0 %v501
    %v518 = vpop.xlane.xlu0 %517
    %519 = vmax.xlane.f32.xlu0 %v502
    %v520 = vpop.xlane.xlu0 %519
    %521 = vmax.xlane.f32.xlu0 %v503
    %v522 = vpop.xlane.xlu0 %521
    %523 = vmax.xlane.f32.xlu0 %v504
    %v524 = vpop.xlane.xlu0 %523
    %525 = vmax.xlane.f32.xlu0 %v505
    %v526 = vpop.xlane.xlu0 %525
    %527 = vmax.xlane.f32.xlu0 %v506
    %v528 = vpop.xlane.xlu0 %527
    %529 = vmax.xlane.f32.xlu0 %v507
    %v530 = vpop.xlane.xlu0 %529
    %531 = vmax.xlane.f32.xlu0 %v508
    %v532 = vpop.xlane.xlu0 %531
    %533 = vmax.xlane.f32.xlu0 %v509
    %v534 = vpop.xlane.xlu0 %533
    %535 = vmax.xlane.f32.xlu0 %v510
    %v536 = vpop.xlane.xlu0 %535
    %537 = vmax.xlane.f32.xlu0 %v511
    %v538 = vpop.xlane.xlu0 %537
    %539 = vmax.xlane.f32.xlu0 %v512
    %v540 = vpop.xlane.xlu0 %539
    %541 = vmax.xlane.f32.xlu0 %v513
    %v542 = vpop.xlane.xlu0 %541
    %543 = vmax.xlane.f32.xlu0 %v514
    %v544 = vpop.xlane.xlu0 %543
    %545 = vmax.xlane.f32.xlu0 %v515
    %v546 = vpop.xlane.xlu0 %545
    %547 = vmax.xlane.f32.xlu0 %v516
    %v548 = vpop.xlane.xlu0 %547
    %v549 = vsub.f32 %v501, %v518
    %v550 = vsub.f32 %v502, %v520
    %v551 = vsub.f32 %v503, %v522
    %v552 = vsub.f32 %v504, %v524
    %v553 = vsub.f32 %v505, %v526
    %v554 = vsub.f32 %v506, %v528
    %v555 = vsub.f32 %v507, %v530
    %v556 = vsub.f32 %v508, %v532
    %v557 = vsub.f32 %v509, %v534
    %v558 = vsub.f32 %v510, %v536
    %v559 = vsub.f32 %v511, %v538
    %v560 = vsub.f32 %v512, %v540
    %v561 = vsub.f32 %v513, %v542
    %v562 = vsub.f32 %v514, %v544
    %v563 = vsub.f32 %v515, %v546
    %v564 = vsub.f32 %v516, %v548
    %v565 = vmul.f32 %v549, 1.442695
    %v566 = vpow.pop %v565
    %v567 = vmul.f32 %v550, 1.442695
    %v568 = vpow.pop %v567
    %v569 = vmul.f32 %v551, 1.442695
    %v570 = vpow.pop %v569
    %v571 = vmul.f32 %v552, 1.442695
    %v572 = vpow.pop %v571
    %v573 = vmul.f32 %v553, 1.442695
    %v574 = vpow.pop %v573
    %v575 = vmul.f32 %v554, 1.442695
    %v576 = vpow.pop %v575
    %v577 = vmul.f32 %v555, 1.442695
    %v578 = vpow.pop %v577
    %v579 = vmul.f32 %v556, 1.442695
    %v580 = vpow.pop %v579
    %v581 = vmul.f32 %v557, 1.442695
    %v582 = vpow.pop %v581
    %v583 = vmul.f32 %v558, 1.442695
    %v584 = vpow.pop %v583
    %v585 = vmul.f32 %v559, 1.442695
    %v586 = vpow.pop %v585
    %v587 = vmul.f32 %v560, 1.442695
    %v588 = vpow.pop %v587
    %v589 = vmul.f32 %v561, 1.442695
    %v590 = vpow.pop %v589
    %v591 = vmul.f32 %v562, 1.442695
    %v592 = vpow.pop %v591
    %v593 = vmul.f32 %v563, 1.442695
    %v594 = vpow.pop %v593
    %v595 = vmul.f32 %v564, 1.442695
    %v596 = vpow.pop %v595
    %597 = vadd.xlane.f32.xlu0 %v566
    %v598 = vpop.xlane.xlu0 %597
    %599 = vadd.xlane.f32.xlu0 %v568
    %v600 = vpop.xlane.xlu0 %599
    %601 = vadd.xlane.f32.xlu0 %v570
    %v602 = vpop.xlane.xlu0 %601
    %603 = vadd.xlane.f32.xlu0 %v572
    %v604 = vpop.xlane.xlu0 %603
    %605 = vadd.xlane.f32.xlu0 %v574
    %v606 = vpop.xlane.xlu0 %605
    %607 = vadd.xlane.f32.xlu0 %v576
    %v608 = vpop.xlane.xlu0 %607
    %609 = vadd.xlane.f32.xlu0 %v578
    %v610 = vpop.xlane.xlu0 %609
    %611 = vadd.xlane.f32.xlu0 %v580
    %v612 = vpop.xlane.xlu0 %611
    %613 = vadd.xlane.f32.xlu0 %v582
    %v614 = vpop.xlane.xlu0 %613
    %615 = vadd.xlane.f32.xlu0 %v584
    %v616 = vpop.xlane.xlu0 %615
    %617 = vadd.xlane.f32.xlu0 %v586
    %v618 = vpop.xlane.xlu0 %617
    %619 = vadd.xlane.f32.xlu0 %v588
    %v620 = vpop.xlane.xlu0 %619
    %621 = vadd.xlane.f32.xlu0 %v590
    %v622 = vpop.xlane.xlu0 %621
    %623 = vadd.xlane.f32.xlu0 %v592
    %v624 = vpop.xlane.xlu0 %623
    %625 = vadd.xlane.f32.xlu0 %v594
    %v626 = vpop.xlane.xlu0 %625
    %627 = vadd.xlane.f32.xlu0 %v596
    %v628 = vpop.xlane.xlu0 %627
    %v629 = vpack.c.bf16 %v568, %v566
    %v630 = vpack.c.bf16 %v572, %v570
    %v631 = vpack.c.bf16 %v576, %v574
    %v632 = vpack.c.bf16 %v580, %v578
    %v633 = vpack.c.bf16 %v584, %v582
    %v634 = vpack.c.bf16 %v588, %v586
    %v635 = vpack.c.bf16 %v592, %v590
    %v636 = vpack.c.bf16 %v596, %v594
    %637 = vmatprep.subr.bf16.mxu0 0
    %638 = vmatpush1.bf16.msra.mxu0 %v199
    %639 = vmatprep.subr.bf16.mxu0 0
    %640 = vmatpush1.bf16.msra.mxu0 %v198
    %641 = vmatprep.subr.bf16.mxu0 0
    %642 = vmatpush1.bf16.msra.mxu0 %v197
    %643 = vmatprep.subr.bf16.mxu0 0
    %644 = vmatpush1.bf16.msra.mxu0 %v196
    %645 = vmatprep.subr.bf16.mxu0 0
    %646 = vmatpush1.bf16.msra.mxu0 %v195
    %647 = vmatprep.subr.bf16.mxu0 0
    %648 = vmatpush1.bf16.msra.mxu0 %v194
    %649 = vmatprep.subr.bf16.mxu0 0
    %650 = vmatpush1.bf16.msra.mxu0 %v193
    %651 = vmatprep.subr.bf16.mxu0 0
    %652 = vmatpush1.bf16.msra.mxu0 %v192
    %653 = vmatprep.subr.bf16.mxu0 0
    %654 = vmatpush2.bf16.msra.mxu0 0
    %655 = vmatprep.subr.bf16.mxu0 0
    %656 = vmatpush2.bf16.msra.mxu0 0
    %657 = vmatprep.subr.bf16.mxu0 0
    %658 = vmatpush2.bf16.msra.mxu0 0
    %659 = vmatprep.subr.bf16.mxu0 0
    %660 = vmatpush2.bf16.msra.mxu0 0
    %661 = vmatprep.subr.bf16.mxu0 0
    %662 = vmatpush2.bf16.msra.mxu0 0
    %663 = vmatprep.subr.bf16.mxu0 0
    %664 = vmatpush2.bf16.msra.mxu0 0
    %665 = vmatprep.subr.bf16.mxu0 0
    %666 = vmatpush2.bf16.msra.mxu0 0
    %667 = vmatprep.subr.bf16.mxu0 0
    %668 = vmatpush2.bf16.msra.mxu0 0
    %669 = vmatprep.mubr.bf16.mxu0 0
    %670 = vmatmul.mubr.bf16.gmra.mxu0 %v629
    %v671 = vpop.f32.mrf.mxu0
    %v672 = vadd.f32 0.0, %v671
    %v673 = vpop.f32.mrf.mxu0
    %v674 = vpop.f32.mrf.mxu0
    %v675 = vadd.f32 0.0, %v674
    %v676 = vpop.f32.mrf.mxu0
    %677 = vmatprep.mubr.bf16.mxu0 0
    %678 = vmatmul.mubr.bf16.gmra.mxu0 %v630
    %v679 = vpop.f32.mrf.mxu0
    %v680 = vadd.f32 0.0, %v679
    %v681 = vpop.f32.mrf.mxu0
    %v682 = vpop.f32.mrf.mxu0
    %v683 = vadd.f32 0.0, %v682
    %v684 = vpop.f32.mrf.mxu0
    %685 = vmatprep.mubr.bf16.mxu0 0
    %686 = vmatmul.mubr.bf16.gmra.mxu0 %v631
    %v687 = vpop.f32.mrf.mxu0
    %v688 = vadd.f32 0.0, %v687
    %v689 = vpop.f32.mrf.mxu0
    %v690 = vpop.f32.mrf.mxu0
    %v691 = vadd.f32 0.0, %v690
    %v692 = vpop.f32.mrf.mxu0
    %693 = vmatprep.mubr.bf16.mxu0 0
    %694 = vmatmul.mubr.bf16.gmra.mxu0 %v632
    %v695 = vpop.f32.mrf.mxu0
    %v696 = vadd.f32 0.0, %v695
    %v697 = vpop.f32.mrf.mxu0
    %v698 = vpop.f32.mrf.mxu0
    %v699 = vadd.f32 0.0, %v698
    %v700 = vpop.f32.mrf.mxu0
    %701 = vmatprep.mubr.bf16.mxu0 0
    %702 = vmatmul.mubr.bf16.gmra.mxu0 %v633
    %v703 = vpop.f32.mrf.mxu0
    %v704 = vadd.f32 0.0, %v703
    %v705 = vpop.f32.mrf.mxu0
    %v706 = vpop.f32.mrf.mxu0
    %v707 = vadd.f32 0.0, %v706
    %v708 = vpop.f32.mrf.mxu0
    %709 = vmatprep.mubr.bf16.mxu0 0
    %710 = vmatmul.mubr.bf16.gmra.mxu0 %v634
    %v711 = vpop.f32.mrf.mxu0
    %v712 = vadd.f32 0.0, %v711
    %v713 = vpop.f32.mrf.mxu0
    %v714 = vpop.f32.mrf.mxu0
    %v715 = vadd.f32 0.0, %v714
    %v716 = vpop.f32.mrf.mxu0
    %717 = vmatprep.mubr.bf16.mxu0 0
    %718 = vmatmul.mubr.bf16.gmra.mxu0 %v635
    %v719 = vpop.f32.mrf.mxu0
    %v720 = vadd.f32 0.0, %v719
    %v721 = vpop.f32.mrf.mxu0
    %v722 = vpop.f32.mrf.mxu0
    %v723 = vadd.f32 0.0, %v722
    %v724 = vpop.f32.mrf.mxu0
    %725 = vmatprep.mubr.bf16.mxu0 0
    %726 = vmatmul.mubr.bf16.gmra.mxu0 %v636
    %v727 = vpop.f32.mrf.mxu0
    %v728 = vadd.f32 0.0, %v727
    %v729 = vpop.f32.mrf.mxu0
    %v730 = vpop.f32.mrf.mxu0
    %v731 = vadd.f32 0.0, %v730
    %v732 = vpop.f32.mrf.mxu0
    %733 = vdwg.mxu0
    %v734 = vrcp.pop %v598
    %v735 = vrcp.pop %v600
    %v736 = vrcp.pop %v602
    %v737 = vrcp.pop %v604
    %v738 = vrcp.pop %v606
    %v739 = vrcp.pop %v608
    %v740 = vrcp.pop %v610
    %v741 = vrcp.pop %v612
    %v742 = vrcp.pop %v614
    %v743 = vrcp.pop %v616
    %v744 = vrcp.pop %v618
    %v745 = vrcp.pop %v620
    %v746 = vrcp.pop %v622
    %v747 = vrcp.pop %v624
    %v748 = vrcp.pop %v626
    %v749 = vrcp.pop %v628
    %v750 = vmul.f32 %v672, %v734
    %v751 = vmul.f32 %v675, %v735
    %v752 = vmul.f32 %v680, %v736
    %v753 = vmul.f32 %v683, %v737
    %v754 = vmul.f32 %v688, %v738
    %v755 = vmul.f32 %v691, %v739
    %v756 = vmul.f32 %v696, %v740
    %v757 = vmul.f32 %v699, %v741
    %v758 = vmul.f32 %v704, %v742
    %v759 = vmul.f32 %v707, %v743
    %v760 = vmul.f32 %v712, %v744
    %v761 = vmul.f32 %v715, %v745
    %v762 = vmul.f32 %v720, %v746
    %v763 = vmul.f32 %v723, %v747
    %v764 = vmul.f32 %v728, %v748
    %v765 = vmul.f32 %v731, %v749
    %766 = vst.msk [vmem:[#allocation2] sm:$0xff] %vm70, %v750
    %767 = vst.msk [vmem:[#allocation2 + $0x8] sm:$0xff] %vm70, %v751
    %768 = vst.msk [vmem:[#allocation2 + $0x10] sm:$0xff] %vm70, %v752
    %769 = vst.msk [vmem:[#allocation2 + $0x18] sm:$0xff] %vm70, %v753
    %770 = vst.msk [vmem:[#allocation2 + $0x20] sm:$0xff] %vm70, %v754
    %771 = vst.msk [vmem:[#allocation2 + $0x28] sm:$0xff] %vm70, %v755
    %772 = vst.msk [vmem:[#allocation2 + $0x30] sm:$0xff] %vm70, %v756
    %773 = vst.msk [vmem:[#allocation2 + $0x38] sm:$0xff] %vm70, %v757
    %774 = vst.msk [vmem:[#allocation2 + $0x40] sm:$0xff] %vm70, %v758
    %775 = vst.msk [vmem:[#allocation2 + $0x48] sm:$0xff] %vm70, %v759
    %776 = vst.msk [vmem:[#allocation2 + $0x50] sm:$0xff] %vm70, %v760
    %777 = vst.msk [vmem:[#allocation2 + $0x58] sm:$0xff] %vm70, %v761
    %778 = vst.msk [vmem:[#allocation2 + $0x60] sm:$0xff] %vm70, %v762
    %779 = vst.msk [vmem:[#allocation2 + $0x68] sm:$0xff] %vm70, %v763
    %780 = vst.msk [vmem:[#allocation2 + $0x70] sm:$0xff] %vm70, %v764
    %781 = vst.msk [vmem:[#allocation2 + $0x78] sm:$0xff] %vm70, %v765
    %782 = vset.pattern.permute.xlu0 5
    %783 = vperm.xlu0 %782, %v259
    %v784 = vpop.permute.xlu0 %783
    %786 = vset.pattern.permute.xlu0 5
    %787 = vperm.xlu0 %786, %v262
    %v788 = vpop.permute.xlu0 %787
    %790 = vset.pattern.permute.xlu0 5
    %791 = vperm.xlu0 %790, %v267
    %v792 = vpop.permute.xlu0 %791
    %794 = vset.pattern.permute.xlu0 5
    %795 = vperm.xlu0 %794, %v270
    %v796 = vpop.permute.xlu0 %795
    %798 = vset.pattern.permute.xlu0 5
    %799 = vperm.xlu0 %798, %v275
    %v800 = vpop.permute.xlu0 %799
    %802 = vset.pattern.permute.xlu0 5
    %803 = vperm.xlu0 %802, %v278
    %v804 = vpop.permute.xlu0 %803
    %806 = vset.pattern.permute.xlu0 5
    %807 = vperm.xlu0 %806, %v283
    %v808 = vpop.permute.xlu0 %807
    %810 = vset.pattern.permute.xlu0 5
    %811 = vperm.xlu0 %810, %v286
    %v812 = vpop.permute.xlu0 %811
    %814 = vset.pattern.permute.xlu0 5
    %815 = vperm.xlu0 %814, %v291
    %v816 = vpop.permute.xlu0 %815
    %818 = vset.pattern.permute.xlu0 5
    %819 = vperm.xlu0 %818, %v294
    %v820 = vpop.permute.xlu0 %819
    %822 = vset.pattern.permute.xlu0 5
    %823 = vperm.xlu0 %822, %v299
    %v824 = vpop.permute.xlu0 %823
    %826 = vset.pattern.permute.xlu0 5
    %827 = vperm.xlu0 %826, %v302
    %v828 = vpop.permute.xlu0 %827
    %830 = vset.pattern.permute.xlu0 5
    %831 = vperm.xlu0 %830, %v307
    %v832 = vpop.permute.xlu0 %831
    %834 = vset.pattern.permute.xlu0 5
    %835 = vperm.xlu0 %834, %v310
    %v836 = vpop.permute.xlu0 %835
    %838 = vset.pattern.permute.xlu0 5
    %839 = vperm.xlu0 %838, %v315
    %v840 = vpop.permute.xlu0 %839
    %842 = vset.pattern.permute.xlu0 5
    %843 = vperm.xlu0 %842, %v318
    %v844 = vpop.permute.xlu0 %843
    %v846 = vlaneseq
    %v847 = vshrl.u32 %v846, 7
    %v848 = vsub.s32 1, %v847
    %v849 = vrot.slane %v337, %v848
    %v850 = vadd.f32 %v784, %v849
    %v851 = vadd.f32 %v788, %v849
    %v852 = vadd.f32 %v792, %v849
    %v853 = vadd.f32 %v796, %v849
    %v854 = vadd.f32 %v800, %v849
    %v855 = vadd.f32 %v804, %v849
    %v856 = vadd.f32 %v808, %v849
    %v857 = vadd.f32 %v812, %v849
    %v858 = vadd.f32 %v816, %v849
    %v859 = vadd.f32 %v820, %v849
    %v860 = vadd.f32 %v824, %v849
    %v861 = vadd.f32 %v828, %v849
    %v862 = vadd.f32 %v832, %v849
    %v863 = vadd.f32 %v836, %v849
    %v864 = vadd.f32 %v840, %v849
    %v865 = vadd.f32 %v844, %v849
    %v866 = vmul.f32 %v850, 0.2
    %v867 = vmul.f32 %v851, 0.2
    %v868 = vmul.f32 %v852, 0.2
    %v869 = vmul.f32 %v853, 0.2
    %v870 = vmul.f32 %v854, 0.2
    %v871 = vmul.f32 %v855, 0.2
    %v872 = vmul.f32 %v856, 0.2
    %v873 = vmul.f32 %v857, 0.2
    %v874 = vmul.f32 %v858, 0.2
    %v875 = vmul.f32 %v859, 0.2
    %v876 = vmul.f32 %v860, 0.2
    %v877 = vmul.f32 %v861, 0.2
    %v878 = vmul.f32 %v862, 0.2
    %v879 = vmul.f32 %v863, 0.2
    %v880 = vmul.f32 %v864, 0.2
    %v881 = vmul.f32 %v865, 0.2
    %v882 = vmax.f32 %v850, %v866
    %v883 = vmax.f32 %v851, %v867
    %v884 = vmax.f32 %v852, %v868
    %v885 = vmax.f32 %v853, %v869
    %v886 = vmax.f32 %v854, %v870
    %v887 = vmax.f32 %v855, %v871
    %v888 = vmax.f32 %v856, %v872
    %v889 = vmax.f32 %v857, %v873
    %v890 = vmax.f32 %v858, %v874
    %v891 = vmax.f32 %v859, %v875
    %v892 = vmax.f32 %v860, %v876
    %v893 = vmax.f32 %v861, %v877
    %v894 = vmax.f32 %v862, %v878
    %v895 = vmax.f32 %v863, %v879
    %v896 = vmax.f32 %v864, %v880
    %v897 = vmax.f32 %v865, %v881
    %v898 = vld [vmem:[%s1] sm:$0xff]
    %v899 = vld [vmem:[%s1 + $0x8] sm:$0xff]
    %v900 = vld [vmem:[%s1 + $0x10] sm:$0xff]
    %v901 = vld [vmem:[%s1 + $0x18] sm:$0xff]
    %v902 = vld [vmem:[%s1 + $0x20] sm:$0xff]
    %v903 = vld [vmem:[%s1 + $0x28] sm:$0xff]
    %v904 = vld [vmem:[%s1 + $0x30] sm:$0xff]
    %v905 = vld [vmem:[%s1 + $0x38] sm:$0xff]
    %v906 = vld [vmem:[%s1 + $0x40] sm:$0xff]
    %v907 = vld [vmem:[%s1 + $0x48] sm:$0xff]
    %v908 = vld [vmem:[%s1 + $0x50] sm:$0xff]
    %v909 = vld [vmem:[%s1 + $0x58] sm:$0xff]
    %v910 = vld [vmem:[%s1 + $0x60] sm:$0xff]
    %v911 = vld [vmem:[%s1 + $0x68] sm:$0xff]
    %v912 = vld [vmem:[%s1 + $0x70] sm:$0xff]
    %v913 = vld [vmem:[%s1 + $0x78] sm:$0xff]
    %v914 = vadd.f32 %v882, %v898
    %v915 = vadd.f32 %v883, %v899
    %v916 = vadd.f32 %v884, %v900
    %v917 = vadd.f32 %v885, %v901
    %v918 = vadd.f32 %v886, %v902
    %v919 = vadd.f32 %v887, %v903
    %v920 = vadd.f32 %v888, %v904
    %v921 = vadd.f32 %v889, %v905
    %v922 = vadd.f32 %v890, %v906
    %v923 = vadd.f32 %v891, %v907
    %v924 = vadd.f32 %v892, %v908
    %v925 = vadd.f32 %v893, %v909
    %v926 = vadd.f32 %v894, %v910
    %v927 = vadd.f32 %v895, %v911
    %v928 = vadd.f32 %v896, %v912
    %v929 = vadd.f32 %v897, %v913
    %930 = vmax.xlane.f32.xlu0 %v914
    %v931 = vpop.xlane.xlu0 %930
    %932 = vmax.xlane.f32.xlu0 %v915
    %v933 = vpop.xlane.xlu0 %932
    %934 = vmax.xlane.f32.xlu0 %v916
    %v935 = vpop.xlane.xlu0 %934
    %936 = vmax.xlane.f32.xlu0 %v917
    %v937 = vpop.xlane.xlu0 %936
    %938 = vmax.xlane.f32.xlu0 %v918
    %v939 = vpop.xlane.xlu0 %938
    %940 = vmax.xlane.f32.xlu0 %v919
    %v941 = vpop.xlane.xlu0 %940
    %942 = vmax.xlane.f32.xlu0 %v920
    %v943 = vpop.xlane.xlu0 %942
    %944 = vmax.xlane.f32.xlu0 %v921
    %v945 = vpop.xlane.xlu0 %944
    %946 = vmax.xlane.f32.xlu0 %v922
    %v947 = vpop.xlane.xlu0 %946
    %948 = vmax.xlane.f32.xlu0 %v923
    %v949 = vpop.xlane.xlu0 %948
    %950 = vmax.xlane.f32.xlu0 %v924
    %v951 = vpop.xlane.xlu0 %950
    %952 = vmax.xlane.f32.xlu0 %v925
    %v953 = vpop.xlane.xlu0 %952
    %954 = vmax.xlane.f32.xlu0 %v926
    %v955 = vpop.xlane.xlu0 %954
    %956 = vmax.xlane.f32.xlu0 %v927
    %v957 = vpop.xlane.xlu0 %956
    %958 = vmax.xlane.f32.xlu0 %v928
    %v959 = vpop.xlane.xlu0 %958
    %960 = vmax.xlane.f32.xlu0 %v929
    %v961 = vpop.xlane.xlu0 %960
    %v962 = vsub.f32 %v914, %v931
    %v963 = vsub.f32 %v915, %v933
    %v964 = vsub.f32 %v916, %v935
    %v965 = vsub.f32 %v917, %v937
    %v966 = vsub.f32 %v918, %v939
    %v967 = vsub.f32 %v919, %v941
    %v968 = vsub.f32 %v920, %v943
    %v969 = vsub.f32 %v921, %v945
    %v970 = vsub.f32 %v922, %v947
    %v971 = vsub.f32 %v923, %v949
    %v972 = vsub.f32 %v924, %v951
    %v973 = vsub.f32 %v925, %v953
    %v974 = vsub.f32 %v926, %v955
    %v975 = vsub.f32 %v927, %v957
    %v976 = vsub.f32 %v928, %v959
    %v977 = vsub.f32 %v929, %v961
    %v978 = vmul.f32 %v962, 1.442695
    %v979 = vpow.pop %v978
    %v980 = vmul.f32 %v963, 1.442695
    %v981 = vpow.pop %v980
    %v982 = vmul.f32 %v964, 1.442695
    %v983 = vpow.pop %v982
    %v984 = vmul.f32 %v965, 1.442695
    %v985 = vpow.pop %v984
    %v986 = vmul.f32 %v966, 1.442695
    %v987 = vpow.pop %v986
    %v988 = vmul.f32 %v967, 1.442695
    %v989 = vpow.pop %v988
    %v990 = vmul.f32 %v968, 1.442695
    %v991 = vpow.pop %v990
    %v992 = vmul.f32 %v969, 1.442695
    %v993 = vpow.pop %v992
    %v994 = vmul.f32 %v970, 1.442695
    %v995 = vpow.pop %v994
    %v996 = vmul.f32 %v971, 1.442695
    %v997 = vpow.pop %v996
    %v998 = vmul.f32 %v972, 1.442695
    %v999 = vpow.pop %v998
    %v1000 = vmul.f32 %v973, 1.442695
    %v1001 = vpow.pop %v1000
    %v1002 = vmul.f32 %v974, 1.442695
    %v1003 = vpow.pop %v1002
    %v1004 = vmul.f32 %v975, 1.442695
    %v1005 = vpow.pop %v1004
    %v1006 = vmul.f32 %v976, 1.442695
    %v1007 = vpow.pop %v1006
    %v1008 = vmul.f32 %v977, 1.442695
    %v1009 = vpow.pop %v1008
    %1010 = vadd.xlane.f32.xlu0 %v979
    %v1011 = vpop.xlane.xlu0 %1010
    %1012 = vadd.xlane.f32.xlu0 %v981
    %v1013 = vpop.xlane.xlu0 %1012
    %1014 = vadd.xlane.f32.xlu0 %v983
    %v1015 = vpop.xlane.xlu0 %1014
    %1016 = vadd.xlane.f32.xlu0 %v985
    %v1017 = vpop.xlane.xlu0 %1016
    %1018 = vadd.xlane.f32.xlu0 %v987
    %v1019 = vpop.xlane.xlu0 %1018
    %1020 = vadd.xlane.f32.xlu0 %v989
    %v1021 = vpop.xlane.xlu0 %1020
    %1022 = vadd.xlane.f32.xlu0 %v991
    %v1023 = vpop.xlane.xlu0 %1022
    %1024 = vadd.xlane.f32.xlu0 %v993
    %v1025 = vpop.xlane.xlu0 %1024
    %1026 = vadd.xlane.f32.xlu0 %v995
    %v1027 = vpop.xlane.xlu0 %1026
    %1028 = vadd.xlane.f32.xlu0 %v997
    %v1029 = vpop.xlane.xlu0 %1028
    %1030 = vadd.xlane.f32.xlu0 %v999
    %v1031 = vpop.xlane.xlu0 %1030
    %1032 = vadd.xlane.f32.xlu0 %v1001
    %v1033 = vpop.xlane.xlu0 %1032
    %1034 = vadd.xlane.f32.xlu0 %v1003
    %v1035 = vpop.xlane.xlu0 %1034
    %1036 = vadd.xlane.f32.xlu0 %v1005
    %v1037 = vpop.xlane.xlu0 %1036
    %1038 = vadd.xlane.f32.xlu0 %v1007
    %v1039 = vpop.xlane.xlu0 %1038
    %1040 = vadd.xlane.f32.xlu0 %v1009
    %v1041 = vpop.xlane.xlu0 %1040
    %v1042 = vpack.c.bf16 %v981, %v979
    %v1043 = vpack.c.bf16 %v985, %v983
    %v1044 = vpack.c.bf16 %v989, %v987
    %v1045 = vpack.c.bf16 %v993, %v991
    %v1046 = vpack.c.bf16 %v997, %v995
    %v1047 = vpack.c.bf16 %v1001, %v999
    %v1048 = vpack.c.bf16 %v1005, %v1003
    %v1049 = vpack.c.bf16 %v1009, %v1007
    %1058 = vrot.lane.b32.xlu0 %v192, 96
    %v1059 = vpop.permute.xlu0 %1058
    %1060 = vrot.lane.b32.xlu0 %v193, 96
    %v1061 = vpop.permute.xlu0 %1060
    %1062 = vrot.lane.b32.xlu0 %v194, 96
    %v1063 = vpop.permute.xlu0 %1062
    %1064 = vrot.lane.b32.xlu0 %v195, 96
    %v1065 = vpop.permute.xlu0 %1064
    %1066 = vrot.lane.b32.xlu0 %v196, 96
    %v1067 = vpop.permute.xlu0 %1066
    %1068 = vrot.lane.b32.xlu0 %v197, 96
    %v1069 = vpop.permute.xlu0 %1068
    %1070 = vrot.lane.b32.xlu0 %v198, 96
    %v1071 = vpop.permute.xlu0 %1070
    %1072 = vrot.lane.b32.xlu0 %v199, 96
    %v1073 = vpop.permute.xlu0 %1072
    %1082 = vmatprep.subr.bf16.mxu0 0
    %1083 = vmatpush1.bf16.msra.mxu0 %v1073
    %1084 = vmatprep.subr.bf16.mxu0 0
    %1085 = vmatpush1.bf16.msra.mxu0 %v1071
    %1086 = vmatprep.subr.bf16.mxu0 0
    %1087 = vmatpush1.bf16.msra.mxu0 %v1069
    %1088 = vmatprep.subr.bf16.mxu0 0
    %1089 = vmatpush1.bf16.msra.mxu0 %v1067
    %1090 = vmatprep.subr.bf16.mxu0 0
    %1091 = vmatpush1.bf16.msra.mxu0 %v1065
    %1092 = vmatprep.subr.bf16.mxu0 0
    %1093 = vmatpush1.bf16.msra.mxu0 %v1063
    %1094 = vmatprep.subr.bf16.mxu0 0
    %1095 = vmatpush1.bf16.msra.mxu0 %v1061
    %1096 = vmatprep.subr.bf16.mxu0 0
    %1097 = vmatpush1.bf16.msra.mxu0 %v1059
    %1098 = vmatprep.subr.bf16.mxu0 0
    %1099 = vmatpush2.bf16.msra.mxu0 0
    %1100 = vmatprep.subr.bf16.mxu0 0
    %1101 = vmatpush2.bf16.msra.mxu0 0
    %1102 = vmatprep.subr.bf16.mxu0 0
    %1103 = vmatpush2.bf16.msra.mxu0 0
    %1104 = vmatprep.subr.bf16.mxu0 0
    %1105 = vmatpush2.bf16.msra.mxu0 0
    %1106 = vmatprep.subr.bf16.mxu0 0
    %1107 = vmatpush2.bf16.msra.mxu0 0
    %1108 = vmatprep.subr.bf16.mxu0 0
    %1109 = vmatpush2.bf16.msra.mxu0 0
    %1110 = vmatprep.subr.bf16.mxu0 0
    %1111 = vmatpush2.bf16.msra.mxu0 0
    %1112 = vmatprep.subr.bf16.mxu0 0
    %1113 = vmatpush2.bf16.msra.mxu0 0
    %1114 = vmatprep.mubr.bf16.mxu0 0
    %1115 = vmatmul.mubr.bf16.gmra.mxu0 %v1042
    %v1116 = vpop.f32.mrf.mxu0
    %v1117 = vadd.f32 0.0, %v1116
    %v1118 = vpop.f32.mrf.mxu0
    %v1119 = vpop.f32.mrf.mxu0
    %v1120 = vadd.f32 0.0, %v1119
    %v1121 = vpop.f32.mrf.mxu0
    %1122 = vmatprep.mubr.bf16.mxu0 0
    %1123 = vmatmul.mubr.bf16.gmra.mxu0 %v1043
    %v1124 = vpop.f32.mrf.mxu0
    %v1125 = vadd.f32 0.0, %v1124
    %v1126 = vpop.f32.mrf.mxu0
    %v1127 = vpop.f32.mrf.mxu0
    %v1128 = vadd.f32 0.0, %v1127
    %v1129 = vpop.f32.mrf.mxu0
    %1130 = vmatprep.mubr.bf16.mxu0 0
    %1131 = vmatmul.mubr.bf16.gmra.mxu0 %v1044
    %v1132 = vpop.f32.mrf.mxu0
    %v1133 = vadd.f32 0.0, %v1132
    %v1134 = vpop.f32.mrf.mxu0
    %v1135 = vpop.f32.mrf.mxu0
    %v1136 = vadd.f32 0.0, %v1135
    %v1137 = vpop.f32.mrf.mxu0
    %1138 = vmatprep.mubr.bf16.mxu0 0
    %1139 = vmatmul.mubr.bf16.gmra.mxu0 %v1045
    %v1140 = vpop.f32.mrf.mxu0
    %v1141 = vadd.f32 0.0, %v1140
    %v1142 = vpop.f32.mrf.mxu0
    %v1143 = vpop.f32.mrf.mxu0
    %v1144 = vadd.f32 0.0, %v1143
    %v1145 = vpop.f32.mrf.mxu0
    %1146 = vmatprep.mubr.bf16.mxu0 0
    %1147 = vmatmul.mubr.bf16.gmra.mxu0 %v1046
    %v1148 = vpop.f32.mrf.mxu0
    %v1149 = vadd.f32 0.0, %v1148
    %v1150 = vpop.f32.mrf.mxu0
    %v1151 = vpop.f32.mrf.mxu0
    %v1152 = vadd.f32 0.0, %v1151
    %v1153 = vpop.f32.mrf.mxu0
    %1154 = vmatprep.mubr.bf16.mxu0 0
    %1155 = vmatmul.mubr.bf16.gmra.mxu0 %v1047
    %v1156 = vpop.f32.mrf.mxu0
    %v1157 = vadd.f32 0.0, %v1156
    %v1158 = vpop.f32.mrf.mxu0
    %v1159 = vpop.f32.mrf.mxu0
    %v1160 = vadd.f32 0.0, %v1159
    %v1161 = vpop.f32.mrf.mxu0
    %1162 = vmatprep.mubr.bf16.mxu0 0
    %1163 = vmatmul.mubr.bf16.gmra.mxu0 %v1048
    %v1164 = vpop.f32.mrf.mxu0
    %v1165 = vadd.f32 0.0, %v1164
    %v1166 = vpop.f32.mrf.mxu0
    %v1167 = vpop.f32.mrf.mxu0
    %v1168 = vadd.f32 0.0, %v1167
    %v1169 = vpop.f32.mrf.mxu0
    %1170 = vmatprep.mubr.bf16.mxu0 0
    %1171 = vmatmul.mubr.bf16.gmra.mxu0 %v1049
    %v1172 = vpop.f32.mrf.mxu0
    %v1173 = vadd.f32 0.0, %v1172
    %v1174 = vpop.f32.mrf.mxu0
    %v1175 = vpop.f32.mrf.mxu0
    %v1176 = vadd.f32 0.0, %v1175
    %v1177 = vpop.f32.mrf.mxu0
    %1178 = vdwg.mxu0
    %v1179 = vrcp.pop %v1011
    %v1180 = vrcp.pop %v1013
    %v1181 = vrcp.pop %v1015
    %v1182 = vrcp.pop %v1017
    %v1183 = vrcp.pop %v1019
    %v1184 = vrcp.pop %v1021
    %v1185 = vrcp.pop %v1023
    %v1186 = vrcp.pop %v1025
    %v1187 = vrcp.pop %v1027
    %v1188 = vrcp.pop %v1029
    %v1189 = vrcp.pop %v1031
    %v1190 = vrcp.pop %v1033
    %v1191 = vrcp.pop %v1035
    %v1192 = vrcp.pop %v1037
    %v1193 = vrcp.pop %v1039
    %v1194 = vrcp.pop %v1041
    %v1195 = vmul.f32 %v1117, %v1179
    %v1196 = vmul.f32 %v1120, %v1180
    %v1197 = vmul.f32 %v1125, %v1181
    %v1198 = vmul.f32 %v1128, %v1182
    %v1199 = vmul.f32 %v1133, %v1183
    %v1200 = vmul.f32 %v1136, %v1184
    %v1201 = vmul.f32 %v1141, %v1185
    %v1202 = vmul.f32 %v1144, %v1186
    %v1203 = vmul.f32 %v1149, %v1187
    %v1204 = vmul.f32 %v1152, %v1188
    %v1205 = vmul.f32 %v1157, %v1189
    %v1206 = vmul.f32 %v1160, %v1190
    %v1207 = vmul.f32 %v1165, %v1191
    %v1208 = vmul.f32 %v1168, %v1192
    %v1209 = vmul.f32 %v1173, %v1193
    %v1210 = vmul.f32 %v1176, %v1194
    %1227 = vrot.lane.b32.xlu0 %v1195, 32
    %v1228 = vpop.permute.xlu0 %1227
    %1229 = vrot.lane.b32.xlu0 %v1196, 32
    %v1230 = vpop.permute.xlu0 %1229
    %1231 = vrot.lane.b32.xlu0 %v1197, 32
    %v1232 = vpop.permute.xlu0 %1231
    %1233 = vrot.lane.b32.xlu0 %v1198, 32
    %v1234 = vpop.permute.xlu0 %1233
    %1235 = vrot.lane.b32.xlu0 %v1199, 32
    %v1236 = vpop.permute.xlu0 %1235
    %1237 = vrot.lane.b32.xlu0 %v1200, 32
    %v1238 = vpop.permute.xlu0 %1237
    %1239 = vrot.lane.b32.xlu0 %v1201, 32
    %v1240 = vpop.permute.xlu0 %1239
    %1241 = vrot.lane.b32.xlu0 %v1202, 32
    %v1242 = vpop.permute.xlu0 %1241
    %1243 = vrot.lane.b32.xlu0 %v1203, 32
    %v1244 = vpop.permute.xlu0 %1243
    %1245 = vrot.lane.b32.xlu0 %v1204, 32
    %v1246 = vpop.permute.xlu0 %1245
    %1247 = vrot.lane.b32.xlu0 %v1205, 32
    %v1248 = vpop.permute.xlu0 %1247
    %1249 = vrot.lane.b32.xlu0 %v1206, 32
    %v1250 = vpop.permute.xlu0 %1249
    %1251 = vrot.lane.b32.xlu0 %v1207, 32
    %v1252 = vpop.permute.xlu0 %1251
    %1253 = vrot.lane.b32.xlu0 %v1208, 32
    %v1254 = vpop.permute.xlu0 %1253
    %1255 = vrot.lane.b32.xlu0 %v1209, 32
    %v1256 = vpop.permute.xlu0 %1255
    %1257 = vrot.lane.b32.xlu0 %v1210, 32
    %v1258 = vpop.permute.xlu0 %1257
    %vm1275 = vcmask 523520
    %1276 = vst.msk [vmem:[#allocation2] sm:$0xff] %vm1275, %v1228
    %1277 = vst.msk [vmem:[#allocation2 + $0x8] sm:$0xff] %vm1275, %v1230
    %1278 = vst.msk [vmem:[#allocation2 + $0x10] sm:$0xff] %vm1275, %v1232
    %1279 = vst.msk [vmem:[#allocation2 + $0x18] sm:$0xff] %vm1275, %v1234
    %1280 = vst.msk [vmem:[#allocation2 + $0x20] sm:$0xff] %vm1275, %v1236
    %1281 = vst.msk [vmem:[#allocation2 + $0x28] sm:$0xff] %vm1275, %v1238
    %1282 = vst.msk [vmem:[#allocation2 + $0x30] sm:$0xff] %vm1275, %v1240
    %1283 = vst.msk [vmem:[#allocation2 + $0x38] sm:$0xff] %vm1275, %v1242
    %1284 = vst.msk [vmem:[#allocation2 + $0x40] sm:$0xff] %vm1275, %v1244
    %1285 = vst.msk [vmem:[#allocation2 + $0x48] sm:$0xff] %vm1275, %v1246
    %1286 = vst.msk [vmem:[#allocation2 + $0x50] sm:$0xff] %vm1275, %v1248
    %1287 = vst.msk [vmem:[#allocation2 + $0x58] sm:$0xff] %vm1275, %v1250
    %1288 = vst.msk [vmem:[#allocation2 + $0x60] sm:$0xff] %vm1275, %v1252
    %1289 = vst.msk [vmem:[#allocation2 + $0x68] sm:$0xff] %vm1275, %v1254
    %1290 = vst.msk [vmem:[#allocation2 + $0x70] sm:$0xff] %vm1275, %v1256
    %1291 = vst.msk [vmem:[#allocation2 + $0x78] sm:$0xff] %vm1275, %v1258
    %1292 = vset.pattern.permute.xlu0 6
    %1293 = vperm.xlu0 %1292, %v259
    %v1294 = vpop.permute.xlu0 %1293
    %1296 = vset.pattern.permute.xlu0 6
    %1297 = vperm.xlu0 %1296, %v262
    %v1298 = vpop.permute.xlu0 %1297
    %1300 = vset.pattern.permute.xlu0 6
    %1301 = vperm.xlu0 %1300, %v267
    %v1302 = vpop.permute.xlu0 %1301
    %1304 = vset.pattern.permute.xlu0 6
    %1305 = vperm.xlu0 %1304, %v270
    %v1306 = vpop.permute.xlu0 %1305
    %1308 = vset.pattern.permute.xlu0 6
    %1309 = vperm.xlu0 %1308, %v275
    %v1310 = vpop.permute.xlu0 %1309
    %1312 = vset.pattern.permute.xlu0 6
    %1313 = vperm.xlu0 %1312, %v278
    %v1314 = vpop.permute.xlu0 %1313
    %1316 = vset.pattern.permute.xlu0 6
    %1317 = vperm.xlu0 %1316, %v283
    %v1318 = vpop.permute.xlu0 %1317
    %1320 = vset.pattern.permute.xlu0 6
    %1321 = vperm.xlu0 %1320, %v286
    %v1322 = vpop.permute.xlu0 %1321
    %1324 = vset.pattern.permute.xlu0 6
    %1325 = vperm.xlu0 %1324, %v291
    %v1326 = vpop.permute.xlu0 %1325
    %1328 = vset.pattern.permute.xlu0 6
    %1329 = vperm.xlu0 %1328, %v294
    %v1330 = vpop.permute.xlu0 %1329
    %1332 = vset.pattern.permute.xlu0 6
    %1333 = vperm.xlu0 %1332, %v299
    %v1334 = vpop.permute.xlu0 %1333
    %1336 = vset.pattern.permute.xlu0 6
    %1337 = vperm.xlu0 %1336, %v302
    %v1338 = vpop.permute.xlu0 %1337
    %1340 = vset.pattern.permute.xlu0 6
    %1341 = vperm.xlu0 %1340, %v307
    %v1342 = vpop.permute.xlu0 %1341
    %1344 = vset.pattern.permute.xlu0 6
    %1345 = vperm.xlu0 %1344, %v310
    %v1346 = vpop.permute.xlu0 %1345
    %1348 = vset.pattern.permute.xlu0 6
    %1349 = vperm.xlu0 %1348, %v315
    %v1350 = vpop.permute.xlu0 %1349
    %1352 = vset.pattern.permute.xlu0 6
    %1353 = vperm.xlu0 %1352, %v318
    %v1354 = vpop.permute.xlu0 %1353
    %v1356 = vlaneseq
    %v1357 = vshrl.u32 %v1356, 7
    %v1358 = vsub.s32 2, %v1357
    %v1359 = vrot.slane %v337, %v1358
    %v1360 = vadd.f32 %v1294, %v1359
    %v1361 = vadd.f32 %v1298, %v1359
    %v1362 = vadd.f32 %v1302, %v1359
    %v1363 = vadd.f32 %v1306, %v1359
    %v1364 = vadd.f32 %v1310, %v1359
    %v1365 = vadd.f32 %v1314, %v1359
    %v1366 = vadd.f32 %v1318, %v1359
    %v1367 = vadd.f32 %v1322, %v1359
    %v1368 = vadd.f32 %v1326, %v1359
    %v1369 = vadd.f32 %v1330, %v1359
    %v1370 = vadd.f32 %v1334, %v1359
    %v1371 = vadd.f32 %v1338, %v1359
    %v1372 = vadd.f32 %v1342, %v1359
    %v1373 = vadd.f32 %v1346, %v1359
    %v1374 = vadd.f32 %v1350, %v1359
    %v1375 = vadd.f32 %v1354, %v1359
    %v1376 = vmul.f32 %v1360, 0.2
    %v1377 = vmul.f32 %v1361, 0.2
    %v1378 = vmul.f32 %v1362, 0.2
    %v1379 = vmul.f32 %v1363, 0.2
    %v1380 = vmul.f32 %v1364, 0.2
    %v1381 = vmul.f32 %v1365, 0.2
    %v1382 = vmul.f32 %v1366, 0.2
    %v1383 = vmul.f32 %v1367, 0.2
    %v1384 = vmul.f32 %v1368, 0.2
    %v1385 = vmul.f32 %v1369, 0.2
    %v1386 = vmul.f32 %v1370, 0.2
    %v1387 = vmul.f32 %v1371, 0.2
    %v1388 = vmul.f32 %v1372, 0.2
    %v1389 = vmul.f32 %v1373, 0.2
    %v1390 = vmul.f32 %v1374, 0.2
    %v1391 = vmul.f32 %v1375, 0.2
    %v1392 = vmax.f32 %v1360, %v1376
    %v1393 = vmax.f32 %v1361, %v1377
    %v1394 = vmax.f32 %v1362, %v1378
    %v1395 = vmax.f32 %v1363, %v1379
    %v1396 = vmax.f32 %v1364, %v1380
    %v1397 = vmax.f32 %v1365, %v1381
    %v1398 = vmax.f32 %v1366, %v1382
    %v1399 = vmax.f32 %v1367, %v1383
    %v1400 = vmax.f32 %v1368, %v1384
    %v1401 = vmax.f32 %v1369, %v1385
    %v1402 = vmax.f32 %v1370, %v1386
    %v1403 = vmax.f32 %v1371, %v1387
    %v1404 = vmax.f32 %v1372, %v1388
    %v1405 = vmax.f32 %v1373, %v1389
    %v1406 = vmax.f32 %v1374, %v1390
    %v1407 = vmax.f32 %v1375, %v1391
    %v1408 = vld [vmem:[%s1] sm:$0xff]
    %v1409 = vld [vmem:[%s1 + $0x8] sm:$0xff]
    %v1410 = vld [vmem:[%s1 + $0x10] sm:$0xff]
    %v1411 = vld [vmem:[%s1 + $0x18] sm:$0xff]
    %v1412 = vld [vmem:[%s1 + $0x20] sm:$0xff]
    %v1413 = vld [vmem:[%s1 + $0x28] sm:$0xff]
    %v1414 = vld [vmem:[%s1 + $0x30] sm:$0xff]
    %v1415 = vld [vmem:[%s1 + $0x38] sm:$0xff]
    %v1416 = vld [vmem:[%s1 + $0x40] sm:$0xff]
    %v1417 = vld [vmem:[%s1 + $0x48] sm:$0xff]
    %v1418 = vld [vmem:[%s1 + $0x50] sm:$0xff]
    %v1419 = vld [vmem:[%s1 + $0x58] sm:$0xff]
    %v1420 = vld [vmem:[%s1 + $0x60] sm:$0xff]
    %v1421 = vld [vmem:[%s1 + $0x68] sm:$0xff]
    %v1422 = vld [vmem:[%s1 + $0x70] sm:$0xff]
    %v1423 = vld [vmem:[%s1 + $0x78] sm:$0xff]
    %v1424 = vadd.f32 %v1392, %v1408
    %v1425 = vadd.f32 %v1393, %v1409
    %v1426 = vadd.f32 %v1394, %v1410
    %v1427 = vadd.f32 %v1395, %v1411
    %v1428 = vadd.f32 %v1396, %v1412
    %v1429 = vadd.f32 %v1397, %v1413
    %v1430 = vadd.f32 %v1398, %v1414
    %v1431 = vadd.f32 %v1399, %v1415
    %v1432 = vadd.f32 %v1400, %v1416
    %v1433 = vadd.f32 %v1401, %v1417
    %v1434 = vadd.f32 %v1402, %v1418
    %v1435 = vadd.f32 %v1403, %v1419
    %v1436 = vadd.f32 %v1404, %v1420
    %v1437 = vadd.f32 %v1405, %v1421
    %v1438 = vadd.f32 %v1406, %v1422
    %v1439 = vadd.f32 %v1407, %v1423
    %1440 = vmax.xlane.f32.xlu0 %v1424
    %v1441 = vpop.xlane.xlu0 %1440
    %1442 = vmax.xlane.f32.xlu0 %v1425
    %v1443 = vpop.xlane.xlu0 %1442
    %1444 = vmax.xlane.f32.xlu0 %v1426
    %v1445 = vpop.xlane.xlu0 %1444
    %1446 = vmax.xlane.f32.xlu0 %v1427
    %v1447 = vpop.xlane.xlu0 %1446
    %1448 = vmax.xlane.f32.xlu0 %v1428
    %v1449 = vpop.xlane.xlu0 %1448
    %1450 = vmax.xlane.f32.xlu0 %v1429
    %v1451 = vpop.xlane.xlu0 %1450
    %1452 = vmax.xlane.f32.xlu0 %v1430
    %v1453 = vpop.xlane.xlu0 %1452
    %1454 = vmax.xlane.f32.xlu0 %v1431
    %v1455 = vpop.xlane.xlu0 %1454
    %1456 = vmax.xlane.f32.xlu0 %v1432
    %v1457 = vpop.xlane.xlu0 %1456
    %1458 = vmax.xlane.f32.xlu0 %v1433
    %v1459 = vpop.xlane.xlu0 %1458
    %1460 = vmax.xlane.f32.xlu0 %v1434
    %v1461 = vpop.xlane.xlu0 %1460
    %1462 = vmax.xlane.f32.xlu0 %v1435
    %v1463 = vpop.xlane.xlu0 %1462
    %1464 = vmax.xlane.f32.xlu0 %v1436
    %v1465 = vpop.xlane.xlu0 %1464
    %1466 = vmax.xlane.f32.xlu0 %v1437
    %v1467 = vpop.xlane.xlu0 %1466
    %1468 = vmax.xlane.f32.xlu0 %v1438
    %v1469 = vpop.xlane.xlu0 %1468
    %1470 = vmax.xlane.f32.xlu0 %v1439
    %v1471 = vpop.xlane.xlu0 %1470
    %v1472 = vsub.f32 %v1424, %v1441
    %v1473 = vsub.f32 %v1425, %v1443
    %v1474 = vsub.f32 %v1426, %v1445
    %v1475 = vsub.f32 %v1427, %v1447
    %v1476 = vsub.f32 %v1428, %v1449
    %v1477 = vsub.f32 %v1429, %v1451
    %v1478 = vsub.f32 %v1430, %v1453
    %v1479 = vsub.f32 %v1431, %v1455
    %v1480 = vsub.f32 %v1432, %v1457
    %v1481 = vsub.f32 %v1433, %v1459
    %v1482 = vsub.f32 %v1434, %v1461
    %v1483 = vsub.f32 %v1435, %v1463
    %v1484 = vsub.f32 %v1436, %v1465
    %v1485 = vsub.f32 %v1437, %v1467
    %v1486 = vsub.f32 %v1438, %v1469
    %v1487 = vsub.f32 %v1439, %v1471
    %v1488 = vmul.f32 %v1472, 1.442695
    %v1489 = vpow.pop %v1488
    %v1490 = vmul.f32 %v1473, 1.442695
    %v1491 = vpow.pop %v1490
    %v1492 = vmul.f32 %v1474, 1.442695
    %v1493 = vpow.pop %v1492
    %v1494 = vmul.f32 %v1475, 1.442695
    %v1495 = vpow.pop %v1494
    %v1496 = vmul.f32 %v1476, 1.442695
    %v1497 = vpow.pop %v1496
    %v1498 = vmul.f32 %v1477, 1.442695
    %v1499 = vpow.pop %v1498
    %v1500 = vmul.f32 %v1478, 1.442695
    %v1501 = vpow.pop %v1500
    %v1502 = vmul.f32 %v1479, 1.442695
    %v1503 = vpow.pop %v1502
    %v1504 = vmul.f32 %v1480, 1.442695
    %v1505 = vpow.pop %v1504
    %v1506 = vmul.f32 %v1481, 1.442695
    %v1507 = vpow.pop %v1506
    %v1508 = vmul.f32 %v1482, 1.442695
    %v1509 = vpow.pop %v1508
    %v1510 = vmul.f32 %v1483, 1.442695
    %v1511 = vpow.pop %v1510
    %v1512 = vmul.f32 %v1484, 1.442695
    %v1513 = vpow.pop %v1512
    %v1514 = vmul.f32 %v1485, 1.442695
    %v1515 = vpow.pop %v1514
    %v1516 = vmul.f32 %v1486, 1.442695
    %v1517 = vpow.pop %v1516
    %v1518 = vmul.f32 %v1487, 1.442695
    %v1519 = vpow.pop %v1518
    %1520 = vadd.xlane.f32.xlu0 %v1489
    %v1521 = vpop.xlane.xlu0 %1520
    %1522 = vadd.xlane.f32.xlu0 %v1491
    %v1523 = vpop.xlane.xlu0 %1522
    %1524 = vadd.xlane.f32.xlu0 %v1493
    %v1525 = vpop.xlane.xlu0 %1524
    %1526 = vadd.xlane.f32.xlu0 %v1495
    %v1527 = vpop.xlane.xlu0 %1526
    %1528 = vadd.xlane.f32.xlu0 %v1497
    %v1529 = vpop.xlane.xlu0 %1528
    %1530 = vadd.xlane.f32.xlu0 %v1499
    %v1531 = vpop.xlane.xlu0 %1530
    %1532 = vadd.xlane.f32.xlu0 %v1501
    %v1533 = vpop.xlane.xlu0 %1532
    %1534 = vadd.xlane.f32.xlu0 %v1503
    %v1535 = vpop.xlane.xlu0 %1534
    %1536 = vadd.xlane.f32.xlu0 %v1505
    %v1537 = vpop.xlane.xlu0 %1536
    %1538 = vadd.xlane.f32.xlu0 %v1507
    %v1539 = vpop.xlane.xlu0 %1538
    %1540 = vadd.xlane.f32.xlu0 %v1509
    %v1541 = vpop.xlane.xlu0 %1540
    %1542 = vadd.xlane.f32.xlu0 %v1511
    %v1543 = vpop.xlane.xlu0 %1542
    %1544 = vadd.xlane.f32.xlu0 %v1513
    %v1545 = vpop.xlane.xlu0 %1544
    %1546 = vadd.xlane.f32.xlu0 %v1515
    %v1547 = vpop.xlane.xlu0 %1546
    %1548 = vadd.xlane.f32.xlu0 %v1517
    %v1549 = vpop.xlane.xlu0 %1548
    %1550 = vadd.xlane.f32.xlu0 %v1519
    %v1551 = vpop.xlane.xlu0 %1550
    %v1552 = vpack.c.bf16 %v1491, %v1489
    %v1553 = vpack.c.bf16 %v1495, %v1493
    %v1554 = vpack.c.bf16 %v1499, %v1497
    %v1555 = vpack.c.bf16 %v1503, %v1501
    %v1556 = vpack.c.bf16 %v1507, %v1505
    %v1557 = vpack.c.bf16 %v1511, %v1509
    %v1558 = vpack.c.bf16 %v1515, %v1513
    %v1559 = vpack.c.bf16 %v1519, %v1517
    %1560 = vrot.lane.b32.xlu0 %v192, 64
    %v1561 = vpop.permute.xlu0 %1560
    %1562 = vrot.lane.b32.xlu0 %v193, 64
    %v1563 = vpop.permute.xlu0 %1562
    %1564 = vrot.lane.b32.xlu0 %v194, 64
    %v1565 = vpop.permute.xlu0 %1564
    %1566 = vrot.lane.b32.xlu0 %v195, 64
    %v1567 = vpop.permute.xlu0 %1566
    %1568 = vrot.lane.b32.xlu0 %v196, 64
    %v1569 = vpop.permute.xlu0 %1568
    %1570 = vrot.lane.b32.xlu0 %v197, 64
    %v1571 = vpop.permute.xlu0 %1570
    %1572 = vrot.lane.b32.xlu0 %v198, 64
    %v1573 = vpop.permute.xlu0 %1572
    %1574 = vrot.lane.b32.xlu0 %v199, 64
    %v1575 = vpop.permute.xlu0 %1574
    %1584 = vmatprep.subr.bf16.mxu0 0
    %1585 = vmatpush1.bf16.msra.mxu0 %v1575
    %1586 = vmatprep.subr.bf16.mxu0 0
    %1587 = vmatpush1.bf16.msra.mxu0 %v1573
    %1588 = vmatprep.subr.bf16.mxu0 0
    %1589 = vmatpush1.bf16.msra.mxu0 %v1571
    %1590 = vmatprep.subr.bf16.mxu0 0
    %1591 = vmatpush1.bf16.msra.mxu0 %v1569
    %1592 = vmatprep.subr.bf16.mxu0 0
    %1593 = vmatpush1.bf16.msra.mxu0 %v1567
    %1594 = vmatprep.subr.bf16.mxu0 0
    %1595 = vmatpush1.bf16.msra.mxu0 %v1565
    %1596 = vmatprep.subr.bf16.mxu0 0
    %1597 = vmatpush1.bf16.msra.mxu0 %v1563
    %1598 = vmatprep.subr.bf16.mxu0 0
    %1599 = vmatpush1.bf16.msra.mxu0 %v1561
    %1600 = vmatprep.subr.bf16.mxu0 0
    %1601 = vmatpush2.bf16.msra.mxu0 0
    %1602 = vmatprep.subr.bf16.mxu0 0
    %1603 = vmatpush2.bf16.msra.mxu0 0
    %1604 = vmatprep.subr.bf16.mxu0 0
    %1605 = vmatpush2.bf16.msra.mxu0 0
    %1606 = vmatprep.subr.bf16.mxu0 0
    %1607 = vmatpush2.bf16.msra.mxu0 0
    %1608 = vmatprep.subr.bf16.mxu0 0
    %1609 = vmatpush2.bf16.msra.mxu0 0
    %1610 = vmatprep.subr.bf16.mxu0 0
    %1611 = vmatpush2.bf16.msra.mxu0 0
    %1612 = vmatprep.subr.bf16.mxu0 0
    %1613 = vmatpush2.bf16.msra.mxu0 0
    %1614 = vmatprep.subr.bf16.mxu0 0
    %1615 = vmatpush2.bf16.msra.mxu0 0
    %1616 = vmatprep.mubr.bf16.mxu0 0
    %1617 = vmatmul.mubr.bf16.gmra.mxu0 %v1552
    %v1618 = vpop.f32.mrf.mxu0
    %v1619 = vadd.f32 0.0, %v1618
    %v1620 = vpop.f32.mrf.mxu0
    %v1621 = vpop.f32.mrf.mxu0
    %v1622 = vadd.f32 0.0, %v1621
    %v1623 = vpop.f32.mrf.mxu0
    %1624 = vmatprep.mubr.bf16.mxu0 0
    %1625 = vmatmul.mubr.bf16.gmra.mxu0 %v1553
    %v1626 = vpop.f32.mrf.mxu0
    %v1627 = vadd.f32 0.0, %v1626
    %v1628 = vpop.f32.mrf.mxu0
    %v1629 = vpop.f32.mrf.mxu0
    %v1630 = vadd.f32 0.0, %v1629
    %v1631 = vpop.f32.mrf.mxu0
    %1632 = vmatprep.mubr.bf16.mxu0 0
    %1633 = vmatmul.mubr.bf16.gmra.mxu0 %v1554
    %v1634 = vpop.f32.mrf.mxu0
    %v1635 = vadd.f32 0.0, %v1634
    %v1636 = vpop.f32.mrf.mxu0
    %v1637 = vpop.f32.mrf.mxu0
    %v1638 = vadd.f32 0.0, %v1637
    %v1639 = vpop.f32.mrf.mxu0
    %1640 = vmatprep.mubr.bf16.mxu0 0
    %1641 = vmatmul.mubr.bf16.gmra.mxu0 %v1555
    %v1642 = vpop.f32.mrf.mxu0
    %v1643 = vadd.f32 0.0, %v1642
    %v1644 = vpop.f32.mrf.mxu0
    %v1645 = vpop.f32.mrf.mxu0
    %v1646 = vadd.f32 0.0, %v1645
    %v1647 = vpop.f32.mrf.mxu0
    %1648 = vmatprep.mubr.bf16.mxu0 0
    %1649 = vmatmul.mubr.bf16.gmra.mxu0 %v1556
    %v1650 = vpop.f32.mrf.mxu0
    %v1651 = vadd.f32 0.0, %v1650
    %v1652 = vpop.f32.mrf.mxu0
    %v1653 = vpop.f32.mrf.mxu0
    %v1654 = vadd.f32 0.0, %v1653
    %v1655 = vpop.f32.mrf.mxu0
    %1656 = vmatprep.mubr.bf16.mxu0 0
    %1657 = vmatmul.mubr.bf16.gmra.mxu0 %v1557
    %v1658 = vpop.f32.mrf.mxu0
    %v1659 = vadd.f32 0.0, %v1658
    %v1660 = vpop.f32.mrf.mxu0
    %v1661 = vpop.f32.mrf.mxu0
    %v1662 = vadd.f32 0.0, %v1661
    %v1663 = vpop.f32.mrf.mxu0
    %1664 = vmatprep.mubr.bf16.mxu0 0
    %1665 = vmatmul.mubr.bf16.gmra.mxu0 %v1558
    %v1666 = vpop.f32.mrf.mxu0
    %v1667 = vadd.f32 0.0, %v1666
    %v1668 = vpop.f32.mrf.mxu0
    %v1669 = vpop.f32.mrf.mxu0
    %v1670 = vadd.f32 0.0, %v1669
    %v1671 = vpop.f32.mrf.mxu0
    %1672 = vmatprep.mubr.bf16.mxu0 0
    %1673 = vmatmul.mubr.bf16.gmra.mxu0 %v1559
    %v1674 = vpop.f32.mrf.mxu0
    %v1675 = vadd.f32 0.0, %v1674
    %v1676 = vpop.f32.mrf.mxu0
    %v1677 = vpop.f32.mrf.mxu0
    %v1678 = vadd.f32 0.0, %v1677
    %v1679 = vpop.f32.mrf.mxu0
    %1680 = vdwg.mxu0
    %v1681 = vrcp.pop %v1521
    %v1682 = vrcp.pop %v1523
    %v1683 = vrcp.pop %v1525
    %v1684 = vrcp.pop %v1527
    %v1685 = vrcp.pop %v1529
    %v1686 = vrcp.pop %v1531
    %v1687 = vrcp.pop %v1533
    %v1688 = vrcp.pop %v1535
    %v1689 = vrcp.pop %v1537
    %v1690 = vrcp.pop %v1539
    %v1691 = vrcp.pop %v1541
    %v1692 = vrcp.pop %v1543
    %v1693 = vrcp.pop %v1545
    %v1694 = vrcp.pop %v1547
    %v1695 = vrcp.pop %v1549
    %v1696 = vrcp.pop %v1551
    %v1697 = vmul.f32 %v1619, %v1681
    %v1698 = vmul.f32 %v1622, %v1682
    %v1699 = vmul.f32 %v1627, %v1683
    %v1700 = vmul.f32 %v1630, %v1684
    %v1701 = vmul.f32 %v1635, %v1685
    %v1702 = vmul.f32 %v1638, %v1686
    %v1703 = vmul.f32 %v1643, %v1687
    %v1704 = vmul.f32 %v1646, %v1688
    %v1705 = vmul.f32 %v1651, %v1689
    %v1706 = vmul.f32 %v1654, %v1690
    %v1707 = vmul.f32 %v1659, %v1691
    %v1708 = vmul.f32 %v1662, %v1692
    %v1709 = vmul.f32 %v1667, %v1693
    %v1710 = vmul.f32 %v1670, %v1694
    %v1711 = vmul.f32 %v1675, %v1695
    %v1712 = vmul.f32 %v1678, %v1696
    %1729 = vrot.lane.b32.xlu0 %v1697, 64
    %v1730 = vpop.permute.xlu0 %1729
    %1731 = vrot.lane.b32.xlu0 %v1698, 64
    %v1732 = vpop.permute.xlu0 %1731
    %1733 = vrot.lane.b32.xlu0 %v1699, 64
    %v1734 = vpop.permute.xlu0 %1733
    %1735 = vrot.lane.b32.xlu0 %v1700, 64
    %v1736 = vpop.permute.xlu0 %1735
    %1737 = vrot.lane.b32.xlu0 %v1701, 64
    %v1738 = vpop.permute.xlu0 %1737
    %1739 = vrot.lane.b32.xlu0 %v1702, 64
    %v1740 = vpop.permute.xlu0 %1739
    %1741 = vrot.lane.b32.xlu0 %v1703, 64
    %v1742 = vpop.permute.xlu0 %1741
    %1743 = vrot.lane.b32.xlu0 %v1704, 64
    %v1744 = vpop.permute.xlu0 %1743
    %1745 = vrot.lane.b32.xlu0 %v1705, 64
    %v1746 = vpop.permute.xlu0 %1745
    %1747 = vrot.lane.b32.xlu0 %v1706, 64
    %v1748 = vpop.permute.xlu0 %1747
    %1749 = vrot.lane.b32.xlu0 %v1707, 64
    %v1750 = vpop.permute.xlu0 %1749
    %1751 = vrot.lane.b32.xlu0 %v1708, 64
    %v1752 = vpop.permute.xlu0 %1751
    %1753 = vrot.lane.b32.xlu0 %v1709, 64
    %v1754 = vpop.permute.xlu0 %1753
    %1755 = vrot.lane.b32.xlu0 %v1710, 64
    %v1756 = vpop.permute.xlu0 %1755
    %1757 = vrot.lane.b32.xlu0 %v1711, 64
    %v1758 = vpop.permute.xlu0 %1757
    %1759 = vrot.lane.b32.xlu0 %v1712, 64
    %v1760 = vpop.permute.xlu0 %1759
    %vm1777 = vcmask 785920
    %1778 = vst.msk [vmem:[#allocation2] sm:$0xff] %vm1777, %v1730
    %1779 = vst.msk [vmem:[#allocation2 + $0x8] sm:$0xff] %vm1777, %v1732
    %1780 = vst.msk [vmem:[#allocation2 + $0x10] sm:$0xff] %vm1777, %v1734
    %1781 = vst.msk [vmem:[#allocation2 + $0x18] sm:$0xff] %vm1777, %v1736
    %1782 = vst.msk [vmem:[#allocation2 + $0x20] sm:$0xff] %vm1777, %v1738
    %1783 = vst.msk [vmem:[#allocation2 + $0x28] sm:$0xff] %vm1777, %v1740
    %1784 = vst.msk [vmem:[#allocation2 + $0x30] sm:$0xff] %vm1777, %v1742
    %1785 = vst.msk [vmem:[#allocation2 + $0x38] sm:$0xff] %vm1777, %v1744
    %1786 = vst.msk [vmem:[#allocation2 + $0x40] sm:$0xff] %vm1777, %v1746
    %1787 = vst.msk [vmem:[#allocation2 + $0x48] sm:$0xff] %vm1777, %v1748
    %1788 = vst.msk [vmem:[#allocation2 + $0x50] sm:$0xff] %vm1777, %v1750
    %1789 = vst.msk [vmem:[#allocation2 + $0x58] sm:$0xff] %vm1777, %v1752
    %1790 = vst.msk [vmem:[#allocation2 + $0x60] sm:$0xff] %vm1777, %v1754
    %1791 = vst.msk [vmem:[#allocation2 + $0x68] sm:$0xff] %vm1777, %v1756
    %1792 = vst.msk [vmem:[#allocation2 + $0x70] sm:$0xff] %vm1777, %v1758
    %1793 = vst.msk [vmem:[#allocation2 + $0x78] sm:$0xff] %vm1777, %v1760
    %1794 = vset.pattern.permute.xlu0 7
    %1795 = vperm.xlu0 %1794, %v259
    %v1796 = vpop.permute.xlu0 %1795
    %1798 = vset.pattern.permute.xlu0 7
    %1799 = vperm.xlu0 %1798, %v262
    %v1800 = vpop.permute.xlu0 %1799
    %1802 = vset.pattern.permute.xlu0 7
    %1803 = vperm.xlu0 %1802, %v267
    %v1804 = vpop.permute.xlu0 %1803
    %1806 = vset.pattern.permute.xlu0 7
    %1807 = vperm.xlu0 %1806, %v270
    %v1808 = vpop.permute.xlu0 %1807
    %1810 = vset.pattern.permute.xlu0 7
    %1811 = vperm.xlu0 %1810, %v275
    %v1812 = vpop.permute.xlu0 %1811
    %1814 = vset.pattern.permute.xlu0 7
    %1815 = vperm.xlu0 %1814, %v278
    %v1816 = vpop.permute.xlu0 %1815
    %1818 = vset.pattern.permute.xlu0 7
    %1819 = vperm.xlu0 %1818, %v283
    %v1820 = vpop.permute.xlu0 %1819
    %1822 = vset.pattern.permute.xlu0 7
    %1823 = vperm.xlu0 %1822, %v286
    %v1824 = vpop.permute.xlu0 %1823
    %1826 = vset.pattern.permute.xlu0 7
    %1827 = vperm.xlu0 %1826, %v291
    %v1828 = vpop.permute.xlu0 %1827
    %1830 = vset.pattern.permute.xlu0 7
    %1831 = vperm.xlu0 %1830, %v294
    %v1832 = vpop.permute.xlu0 %1831
    %1834 = vset.pattern.permute.xlu0 7
    %1835 = vperm.xlu0 %1834, %v299
    %v1836 = vpop.permute.xlu0 %1835
    %1838 = vset.pattern.permute.xlu0 7
    %1839 = vperm.xlu0 %1838, %v302
    %v1840 = vpop.permute.xlu0 %1839
    %1842 = vset.pattern.permute.xlu0 7
    %1843 = vperm.xlu0 %1842, %v307
    %v1844 = vpop.permute.xlu0 %1843
    %1846 = vset.pattern.permute.xlu0 7
    %1847 = vperm.xlu0 %1846, %v310
    %v1848 = vpop.permute.xlu0 %1847
    %1850 = vset.pattern.permute.xlu0 7
    %1851 = vperm.xlu0 %1850, %v315
    %v1852 = vpop.permute.xlu0 %1851
    %1854 = vset.pattern.permute.xlu0 7
    %1855 = vperm.xlu0 %1854, %v318
    %v1856 = vpop.permute.xlu0 %1855
    %v1858 = vlaneseq
    %v1859 = vshrl.u32 %v1858, 7
    %v1860 = vsub.s32 3, %v1859
    %v1861 = vrot.slane %v337, %v1860
    %v1862 = vadd.f32 %v1796, %v1861
    %v1863 = vadd.f32 %v1800, %v1861
    %v1864 = vadd.f32 %v1804, %v1861
    %v1865 = vadd.f32 %v1808, %v1861
    %v1866 = vadd.f32 %v1812, %v1861
    %v1867 = vadd.f32 %v1816, %v1861
    %v1868 = vadd.f32 %v1820, %v1861
    %v1869 = vadd.f32 %v1824, %v1861
    %v1870 = vadd.f32 %v1828, %v1861
    %v1871 = vadd.f32 %v1832, %v1861
    %v1872 = vadd.f32 %v1836, %v1861
    %v1873 = vadd.f32 %v1840, %v1861
    %v1874 = vadd.f32 %v1844, %v1861
    %v1875 = vadd.f32 %v1848, %v1861
    %v1876 = vadd.f32 %v1852, %v1861
    %v1877 = vadd.f32 %v1856, %v1861
    %v1878 = vmul.f32 %v1862, 0.2
    %v1879 = vmul.f32 %v1863, 0.2
    %v1880 = vmul.f32 %v1864, 0.2
    %v1881 = vmul.f32 %v1865, 0.2
    %v1882 = vmul.f32 %v1866, 0.2
    %v1883 = vmul.f32 %v1867, 0.2
    %v1884 = vmul.f32 %v1868, 0.2
    %v1885 = vmul.f32 %v1869, 0.2
    %v1886 = vmul.f32 %v1870, 0.2
    %v1887 = vmul.f32 %v1871, 0.2
    %v1888 = vmul.f32 %v1872, 0.2
    %v1889 = vmul.f32 %v1873, 0.2
    %v1890 = vmul.f32 %v1874, 0.2
    %v1891 = vmul.f32 %v1875, 0.2
    %v1892 = vmul.f32 %v1876, 0.2
    %v1893 = vmul.f32 %v1877, 0.2
    %v1894 = vmax.f32 %v1862, %v1878
    %v1895 = vmax.f32 %v1863, %v1879
    %v1896 = vmax.f32 %v1864, %v1880
    %v1897 = vmax.f32 %v1865, %v1881
    %v1898 = vmax.f32 %v1866, %v1882
    %v1899 = vmax.f32 %v1867, %v1883
    %v1900 = vmax.f32 %v1868, %v1884
    %v1901 = vmax.f32 %v1869, %v1885
    %v1902 = vmax.f32 %v1870, %v1886
    %v1903 = vmax.f32 %v1871, %v1887
    %v1904 = vmax.f32 %v1872, %v1888
    %v1905 = vmax.f32 %v1873, %v1889
    %v1906 = vmax.f32 %v1874, %v1890
    %v1907 = vmax.f32 %v1875, %v1891
    %v1908 = vmax.f32 %v1876, %v1892
    %v1909 = vmax.f32 %v1877, %v1893
    %v1910 = vld [vmem:[%s1] sm:$0xff]
    %v1911 = vld [vmem:[%s1 + $0x8] sm:$0xff]
    %v1912 = vld [vmem:[%s1 + $0x10] sm:$0xff]
    %v1913 = vld [vmem:[%s1 + $0x18] sm:$0xff]
    %v1914 = vld [vmem:[%s1 + $0x20] sm:$0xff]
    %v1915 = vld [vmem:[%s1 + $0x28] sm:$0xff]
    %v1916 = vld [vmem:[%s1 + $0x30] sm:$0xff]
    %v1917 = vld [vmem:[%s1 + $0x38] sm:$0xff]
    %v1918 = vld [vmem:[%s1 + $0x40] sm:$0xff]
    %v1919 = vld [vmem:[%s1 + $0x48] sm:$0xff]
    %v1920 = vld [vmem:[%s1 + $0x50] sm:$0xff]
    %v1921 = vld [vmem:[%s1 + $0x58] sm:$0xff]
    %v1922 = vld [vmem:[%s1 + $0x60] sm:$0xff]
    %v1923 = vld [vmem:[%s1 + $0x68] sm:$0xff]
    %v1924 = vld [vmem:[%s1 + $0x70] sm:$0xff]
    %v1925 = vld [vmem:[%s1 + $0x78] sm:$0xff]
    %v1926 = vadd.f32 %v1894, %v1910
    %v1927 = vadd.f32 %v1895, %v1911
    %v1928 = vadd.f32 %v1896, %v1912
    %v1929 = vadd.f32 %v1897, %v1913
    %v1930 = vadd.f32 %v1898, %v1914
    %v1931 = vadd.f32 %v1899, %v1915
    %v1932 = vadd.f32 %v1900, %v1916
    %v1933 = vadd.f32 %v1901, %v1917
    %v1934 = vadd.f32 %v1902, %v1918
    %v1935 = vadd.f32 %v1903, %v1919
    %v1936 = vadd.f32 %v1904, %v1920
    %v1937 = vadd.f32 %v1905, %v1921
    %v1938 = vadd.f32 %v1906, %v1922
    %v1939 = vadd.f32 %v1907, %v1923
    %v1940 = vadd.f32 %v1908, %v1924
    %v1941 = vadd.f32 %v1909, %v1925
    %1942 = vmax.xlane.f32.xlu0 %v1926
    %v1943 = vpop.xlane.xlu0 %1942
    %1944 = vmax.xlane.f32.xlu0 %v1927
    %v1945 = vpop.xlane.xlu0 %1944
    %1946 = vmax.xlane.f32.xlu0 %v1928
    %v1947 = vpop.xlane.xlu0 %1946
    %1948 = vmax.xlane.f32.xlu0 %v1929
    %v1949 = vpop.xlane.xlu0 %1948
    %1950 = vmax.xlane.f32.xlu0 %v1930
    %v1951 = vpop.xlane.xlu0 %1950
    %1952 = vmax.xlane.f32.xlu0 %v1931
    %v1953 = vpop.xlane.xlu0 %1952
    %1954 = vmax.xlane.f32.xlu0 %v1932
    %v1955 = vpop.xlane.xlu0 %1954
    %1956 = vmax.xlane.f32.xlu0 %v1933
    %v1957 = vpop.xlane.xlu0 %1956
    %1958 = vmax.xlane.f32.xlu0 %v1934
    %v1959 = vpop.xlane.xlu0 %1958
    %1960 = vmax.xlane.f32.xlu0 %v1935
    %v1961 = vpop.xlane.xlu0 %1960
    %1962 = vmax.xlane.f32.xlu0 %v1936
    %v1963 = vpop.xlane.xlu0 %1962
    %1964 = vmax.xlane.f32.xlu0 %v1937
    %v1965 = vpop.xlane.xlu0 %1964
    %1966 = vmax.xlane.f32.xlu0 %v1938
    %v1967 = vpop.xlane.xlu0 %1966
    %1968 = vmax.xlane.f32.xlu0 %v1939
    %v1969 = vpop.xlane.xlu0 %1968
    %1970 = vmax.xlane.f32.xlu0 %v1940
    %v1971 = vpop.xlane.xlu0 %1970
    %1972 = vmax.xlane.f32.xlu0 %v1941
    %v1973 = vpop.xlane.xlu0 %1972
    %v1974 = vsub.f32 %v1926, %v1943
    %v1975 = vsub.f32 %v1927, %v1945
    %v1976 = vsub.f32 %v1928, %v1947
    %v1977 = vsub.f32 %v1929, %v1949
    %v1978 = vsub.f32 %v1930, %v1951
    %v1979 = vsub.f32 %v1931, %v1953
    %v1980 = vsub.f32 %v1932, %v1955
    %v1981 = vsub.f32 %v1933, %v1957
    %v1982 = vsub.f32 %v1934, %v1959
    %v1983 = vsub.f32 %v1935, %v1961
    %v1984 = vsub.f32 %v1936, %v1963
    %v1985 = vsub.f32 %v1937, %v1965
    %v1986 = vsub.f32 %v1938, %v1967
    %v1987 = vsub.f32 %v1939, %v1969
    %v1988 = vsub.f32 %v1940, %v1971
    %v1989 = vsub.f32 %v1941, %v1973
    %v1990 = vmul.f32 %v1974, 1.442695
    %v1991 = vpow.pop %v1990
    %v1992 = vmul.f32 %v1975, 1.442695
    %v1993 = vpow.pop %v1992
    %v1994 = vmul.f32 %v1976, 1.442695
    %v1995 = vpow.pop %v1994
    %v1996 = vmul.f32 %v1977, 1.442695
    %v1997 = vpow.pop %v1996
    %v1998 = vmul.f32 %v1978, 1.442695
    %v1999 = vpow.pop %v1998
    %v2000 = vmul.f32 %v1979, 1.442695
    %v2001 = vpow.pop %v2000
    %v2002 = vmul.f32 %v1980, 1.442695
    %v2003 = vpow.pop %v2002
    %v2004 = vmul.f32 %v1981, 1.442695
    %v2005 = vpow.pop %v2004
    %v2006 = vmul.f32 %v1982, 1.442695
    %v2007 = vpow.pop %v2006
    %v2008 = vmul.f32 %v1983, 1.442695
    %v2009 = vpow.pop %v2008
    %v2010 = vmul.f32 %v1984, 1.442695
    %v2011 = vpow.pop %v2010
    %v2012 = vmul.f32 %v1985, 1.442695
    %v2013 = vpow.pop %v2012
    %v2014 = vmul.f32 %v1986, 1.442695
    %v2015 = vpow.pop %v2014
    %v2016 = vmul.f32 %v1987, 1.442695
    %v2017 = vpow.pop %v2016
    %v2018 = vmul.f32 %v1988, 1.442695
    %v2019 = vpow.pop %v2018
    %v2020 = vmul.f32 %v1989, 1.442695
    %v2021 = vpow.pop %v2020
    %2022 = vadd.xlane.f32.xlu0 %v1991
    %v2023 = vpop.xlane.xlu0 %2022
    %2024 = vadd.xlane.f32.xlu0 %v1993
    %v2025 = vpop.xlane.xlu0 %2024
    %2026 = vadd.xlane.f32.xlu0 %v1995
    %v2027 = vpop.xlane.xlu0 %2026
    %2028 = vadd.xlane.f32.xlu0 %v1997
    %v2029 = vpop.xlane.xlu0 %2028
    %2030 = vadd.xlane.f32.xlu0 %v1999
    %v2031 = vpop.xlane.xlu0 %2030
    %2032 = vadd.xlane.f32.xlu0 %v2001
    %v2033 = vpop.xlane.xlu0 %2032
    %2034 = vadd.xlane.f32.xlu0 %v2003
    %v2035 = vpop.xlane.xlu0 %2034
    %2036 = vadd.xlane.f32.xlu0 %v2005
    %v2037 = vpop.xlane.xlu0 %2036
    %2038 = vadd.xlane.f32.xlu0 %v2007
    %v2039 = vpop.xlane.xlu0 %2038
    %2040 = vadd.xlane.f32.xlu0 %v2009
    %v2041 = vpop.xlane.xlu0 %2040
    %2042 = vadd.xlane.f32.xlu0 %v2011
    %v2043 = vpop.xlane.xlu0 %2042
    %2044 = vadd.xlane.f32.xlu0 %v2013
    %v2045 = vpop.xlane.xlu0 %2044
    %2046 = vadd.xlane.f32.xlu0 %v2015
    %v2047 = vpop.xlane.xlu0 %2046
    %2048 = vadd.xlane.f32.xlu0 %v2017
    %v2049 = vpop.xlane.xlu0 %2048
    %2050 = vadd.xlane.f32.xlu0 %v2019
    %v2051 = vpop.xlane.xlu0 %2050
    %2052 = vadd.xlane.f32.xlu0 %v2021
    %v2053 = vpop.xlane.xlu0 %2052
    %v2054 = vpack.c.bf16 %v1993, %v1991
    %v2055 = vpack.c.bf16 %v1997, %v1995
    %v2056 = vpack.c.bf16 %v2001, %v1999
    %v2057 = vpack.c.bf16 %v2005, %v2003
    %v2058 = vpack.c.bf16 %v2009, %v2007
    %v2059 = vpack.c.bf16 %v2013, %v2011
    %v2060 = vpack.c.bf16 %v2017, %v2015
    %v2061 = vpack.c.bf16 %v2021, %v2019
    %2062 = vrot.lane.b32.xlu0 %v192, 32
    %v2063 = vpop.permute.xlu0 %2062
    %2064 = vrot.lane.b32.xlu0 %v193, 32
    %v2065 = vpop.permute.xlu0 %2064
    %2066 = vrot.lane.b32.xlu0 %v194, 32
    %v2067 = vpop.permute.xlu0 %2066
    %2068 = vrot.lane.b32.xlu0 %v195, 32
    %v2069 = vpop.permute.xlu0 %2068
    %2070 = vrot.lane.b32.xlu0 %v196, 32
    %v2071 = vpop.permute.xlu0 %2070
    %2072 = vrot.lane.b32.xlu0 %v197, 32
    %v2073 = vpop.permute.xlu0 %2072
    %2074 = vrot.lane.b32.xlu0 %v198, 32
    %v2075 = vpop.permute.xlu0 %2074
    %2076 = vrot.lane.b32.xlu0 %v199, 32
    %v2077 = vpop.permute.xlu0 %2076
    %2086 = vmatprep.subr.bf16.mxu0 0
    %2087 = vmatpush1.bf16.msra.mxu0 %v2077
    %2088 = vmatprep.subr.bf16.mxu0 0
    %2089 = vmatpush1.bf16.msra.mxu0 %v2075
    %2090 = vmatprep.subr.bf16.mxu0 0
    %2091 = vmatpush1.bf16.msra.mxu0 %v2073
    %2092 = vmatprep.subr.bf16.mxu0 0
    %2093 = vmatpush1.bf16.msra.mxu0 %v2071
    %2094 = vmatprep.subr.bf16.mxu0 0
    %2095 = vmatpush1.bf16.msra.mxu0 %v2069
    %2096 = vmatprep.subr.bf16.mxu0 0
    %2097 = vmatpush1.bf16.msra.mxu0 %v2067
    %2098 = vmatprep.subr.bf16.mxu0 0
    %2099 = vmatpush1.bf16.msra.mxu0 %v2065
    %2100 = vmatprep.subr.bf16.mxu0 0
    %2101 = vmatpush1.bf16.msra.mxu0 %v2063
    %2102 = vmatprep.subr.bf16.mxu0 0
    %2103 = vmatpush2.bf16.msra.mxu0 0
    %2104 = vmatprep.subr.bf16.mxu0 0
    %2105 = vmatpush2.bf16.msra.mxu0 0
    %2106 = vmatprep.subr.bf16.mxu0 0
    %2107 = vmatpush2.bf16.msra.mxu0 0
    %2108 = vmatprep.subr.bf16.mxu0 0
    %2109 = vmatpush2.bf16.msra.mxu0 0
    %2110 = vmatprep.subr.bf16.mxu0 0
    %2111 = vmatpush2.bf16.msra.mxu0 0
    %2112 = vmatprep.subr.bf16.mxu0 0
    %2113 = vmatpush2.bf16.msra.mxu0 0
    %2114 = vmatprep.subr.bf16.mxu0 0
    %2115 = vmatpush2.bf16.msra.mxu0 0
    %2116 = vmatprep.subr.bf16.mxu0 0
    %2117 = vmatpush2.bf16.msra.mxu0 0
    %2118 = vmatprep.mubr.bf16.mxu0 0
    %2119 = vmatmul.mubr.bf16.gmra.mxu0 %v2054
    %v2120 = vpop.f32.mrf.mxu0
    %v2121 = vadd.f32 0.0, %v2120
    %v2122 = vpop.f32.mrf.mxu0
    %v2123 = vpop.f32.mrf.mxu0
    %v2124 = vadd.f32 0.0, %v2123
    %v2125 = vpop.f32.mrf.mxu0
    %2126 = vmatprep.mubr.bf16.mxu0 0
    %2127 = vmatmul.mubr.bf16.gmra.mxu0 %v2055
    %v2128 = vpop.f32.mrf.mxu0
    %v2129 = vadd.f32 0.0, %v2128
    %v2130 = vpop.f32.mrf.mxu0
    %v2131 = vpop.f32.mrf.mxu0
    %v2132 = vadd.f32 0.0, %v2131
    %v2133 = vpop.f32.mrf.mxu0
    %2134 = vmatprep.mubr.bf16.mxu0 0
    %2135 = vmatmul.mubr.bf16.gmra.mxu0 %v2056
    %v2136 = vpop.f32.mrf.mxu0
    %v2137 = vadd.f32 0.0, %v2136
    %v2138 = vpop.f32.mrf.mxu0
    %v2139 = vpop.f32.mrf.mxu0
    %v2140 = vadd.f32 0.0, %v2139
    %v2141 = vpop.f32.mrf.mxu0
    %2142 = vmatprep.mubr.bf16.mxu0 0
    %2143 = vmatmul.mubr.bf16.gmra.mxu0 %v2057
    %v2144 = vpop.f32.mrf.mxu0
    %v2145 = vadd.f32 0.0, %v2144
    %v2146 = vpop.f32.mrf.mxu0
    %v2147 = vpop.f32.mrf.mxu0
    %v2148 = vadd.f32 0.0, %v2147
    %v2149 = vpop.f32.mrf.mxu0
    %2150 = vmatprep.mubr.bf16.mxu0 0
    %2151 = vmatmul.mubr.bf16.gmra.mxu0 %v2058
    %v2152 = vpop.f32.mrf.mxu0
    %v2153 = vadd.f32 0.0, %v2152
    %v2154 = vpop.f32.mrf.mxu0
    %v2155 = vpop.f32.mrf.mxu0
    %v2156 = vadd.f32 0.0, %v2155
    %v2157 = vpop.f32.mrf.mxu0
    %2158 = vmatprep.mubr.bf16.mxu0 0
    %2159 = vmatmul.mubr.bf16.gmra.mxu0 %v2059
    %v2160 = vpop.f32.mrf.mxu0
    %v2161 = vadd.f32 0.0, %v2160
    %v2162 = vpop.f32.mrf.mxu0
    %v2163 = vpop.f32.mrf.mxu0
    %v2164 = vadd.f32 0.0, %v2163
    %v2165 = vpop.f32.mrf.mxu0
    %2166 = vmatprep.mubr.bf16.mxu0 0
    %2167 = vmatmul.mubr.bf16.gmra.mxu0 %v2060
    %v2168 = vpop.f32.mrf.mxu0
    %v2169 = vadd.f32 0.0, %v2168
    %v2170 = vpop.f32.mrf.mxu0
    %v2171 = vpop.f32.mrf.mxu0
    %v2172 = vadd.f32 0.0, %v2171
    %v2173 = vpop.f32.mrf.mxu0
    %2174 = vmatprep.mubr.bf16.mxu0 0
    %2175 = vmatmul.mubr.bf16.gmra.mxu0 %v2061
    %v2176 = vpop.f32.mrf.mxu0
    %v2177 = vadd.f32 0.0, %v2176
    %v2178 = vpop.f32.mrf.mxu0
    %v2179 = vpop.f32.mrf.mxu0
    %v2180 = vadd.f32 0.0, %v2179
    %v2181 = vpop.f32.mrf.mxu0
    %2182 = vdwg.mxu0
    %v2183 = vrcp.pop %v2023
    %v2184 = vrcp.pop %v2025
    %v2185 = vrcp.pop %v2027
    %v2186 = vrcp.pop %v2029
    %v2187 = vrcp.pop %v2031
    %v2188 = vrcp.pop %v2033
    %v2189 = vrcp.pop %v2035
    %v2190 = vrcp.pop %v2037
    %v2191 = vrcp.pop %v2039
    %v2192 = vrcp.pop %v2041
    %v2193 = vrcp.pop %v2043
    %v2194 = vrcp.pop %v2045
    %v2195 = vrcp.pop %v2047
    %v2196 = vrcp.pop %v2049
    %v2197 = vrcp.pop %v2051
    %v2198 = vrcp.pop %v2053
    %v2199 = vmul.f32 %v2121, %v2183
    %v2200 = vmul.f32 %v2124, %v2184
    %v2201 = vmul.f32 %v2129, %v2185
    %v2202 = vmul.f32 %v2132, %v2186
    %v2203 = vmul.f32 %v2137, %v2187
    %v2204 = vmul.f32 %v2140, %v2188
    %v2205 = vmul.f32 %v2145, %v2189
    %v2206 = vmul.f32 %v2148, %v2190
    %v2207 = vmul.f32 %v2153, %v2191
    %v2208 = vmul.f32 %v2156, %v2192
    %v2209 = vmul.f32 %v2161, %v2193
    %v2210 = vmul.f32 %v2164, %v2194
    %v2211 = vmul.f32 %v2169, %v2195
    %v2212 = vmul.f32 %v2172, %v2196
    %v2213 = vmul.f32 %v2177, %v2197
    %v2214 = vmul.f32 %v2180, %v2198
    %2231 = vrot.lane.b32.xlu0 %v2199, 96
    %v2232 = vpop.permute.xlu0 %2231
    %2233 = vrot.lane.b32.xlu0 %v2200, 96
    %v2234 = vpop.permute.xlu0 %2233
    %2235 = vrot.lane.b32.xlu0 %v2201, 96
    %v2236 = vpop.permute.xlu0 %2235
    %2237 = vrot.lane.b32.xlu0 %v2202, 96
    %v2238 = vpop.permute.xlu0 %2237
    %2239 = vrot.lane.b32.xlu0 %v2203, 96
    %v2240 = vpop.permute.xlu0 %2239
    %2241 = vrot.lane.b32.xlu0 %v2204, 96
    %v2242 = vpop.permute.xlu0 %2241
    %2243 = vrot.lane.b32.xlu0 %v2205, 96
    %v2244 = vpop.permute.xlu0 %2243
    %2245 = vrot.lane.b32.xlu0 %v2206, 96
    %v2246 = vpop.permute.xlu0 %2245
    %2247 = vrot.lane.b32.xlu0 %v2207, 96
    %v2248 = vpop.permute.xlu0 %2247
    %2249 = vrot.lane.b32.xlu0 %v2208, 96
    %v2250 = vpop.permute.xlu0 %2249
    %2251 = vrot.lane.b32.xlu0 %v2209, 96
    %v2252 = vpop.permute.xlu0 %2251
    %2253 = vrot.lane.b32.xlu0 %v2210, 96
    %v2254 = vpop.permute.xlu0 %2253
    %2255 = vrot.lane.b32.xlu0 %v2211, 96
    %v2256 = vpop.permute.xlu0 %2255
    %2257 = vrot.lane.b32.xlu0 %v2212, 96
    %v2258 = vpop.permute.xlu0 %2257
    %2259 = vrot.lane.b32.xlu0 %v2213, 96
    %v2260 = vpop.permute.xlu0 %2259
    %2261 = vrot.lane.b32.xlu0 %v2214, 96
    %v2262 = vpop.permute.xlu0 %2261
    %vm2279 = vcmask 1048320
    %2280 = vst.msk [vmem:[#allocation2] sm:$0xff] %vm2279, %v2232
    %2281 = vst.msk [vmem:[#allocation2 + $0x8] sm:$0xff] %vm2279, %v2234
    %2282 = vst.msk [vmem:[#allocation2 + $0x10] sm:$0xff] %vm2279, %v2236
    %2283 = vst.msk [vmem:[#allocation2 + $0x18] sm:$0xff] %vm2279, %v2238
    %2284 = vst.msk [vmem:[#allocation2 + $0x20] sm:$0xff] %vm2279, %v2240
    %2285 = vst.msk [vmem:[#allocation2 + $0x28] sm:$0xff] %vm2279, %v2242
    %2286 = vst.msk [vmem:[#allocation2 + $0x30] sm:$0xff] %vm2279, %v2244
    %2287 = vst.msk [vmem:[#allocation2 + $0x38] sm:$0xff] %vm2279, %v2246
    %2288 = vst.msk [vmem:[#allocation2 + $0x40] sm:$0xff] %vm2279, %v2248
    %2289 = vst.msk [vmem:[#allocation2 + $0x48] sm:$0xff] %vm2279, %v2250
    %2290 = vst.msk [vmem:[#allocation2 + $0x50] sm:$0xff] %vm2279, %v2252
    %2291 = vst.msk [vmem:[#allocation2 + $0x58] sm:$0xff] %vm2279, %v2254
    %2292 = vst.msk [vmem:[#allocation2 + $0x60] sm:$0xff] %vm2279, %v2256
    %2293 = vst.msk [vmem:[#allocation2 + $0x68] sm:$0xff] %vm2279, %v2258
    %2294 = vst.msk [vmem:[#allocation2 + $0x70] sm:$0xff] %vm2279, %v2260
    %2295 = vst.msk [vmem:[#allocation2 + $0x78] sm:$0xff] %vm2279, %v2262
    %v2296 = vld [vmem:[#allocation2] sm:$0xff]
    %v2297 = vld [vmem:[#allocation2 + $0x8] sm:$0xff]
    %v2298 = vld [vmem:[#allocation2 + $0x10] sm:$0xff]
    %v2299 = vld [vmem:[#allocation2 + $0x18] sm:$0xff]
    %v2300 = vld [vmem:[#allocation2 + $0x20] sm:$0xff]
    %v2301 = vld [vmem:[#allocation2 + $0x28] sm:$0xff]
    %v2302 = vld [vmem:[#allocation2 + $0x30] sm:$0xff]
    %v2303 = vld [vmem:[#allocation2 + $0x38] sm:$0xff]
    %v2304 = vld [vmem:[#allocation2 + $0x40] sm:$0xff]
    %v2305 = vld [vmem:[#allocation2 + $0x48] sm:$0xff]
    %v2306 = vld [vmem:[#allocation2 + $0x50] sm:$0xff]
    %v2307 = vld [vmem:[#allocation2 + $0x58] sm:$0xff]
    %v2308 = vld [vmem:[#allocation2 + $0x60] sm:$0xff]
    %v2309 = vld [vmem:[#allocation2 + $0x68] sm:$0xff]
    %v2310 = vld [vmem:[#allocation2 + $0x70] sm:$0xff]
    %v2311 = vld [vmem:[#allocation2 + $0x78] sm:$0xff]
    %v2312 = vld [vmem:[%s4] sm:$0x1]
    %v2314 = vlaneseq
    %v2315 = vshrl.u32 %v2314, 7
    %v2316 = vsub.s32 0, %v2315
    %v2317 = vrot.slane %v2312, %v2316
    %v2319 = vadd.f32 %v2296, %v2317
    %v2320 = vadd.f32 %v2297, %v2317
    %v2321 = vadd.f32 %v2298, %v2317
    %v2322 = vadd.f32 %v2299, %v2317
    %v2323 = vadd.f32 %v2300, %v2317
    %v2324 = vadd.f32 %v2301, %v2317
    %v2325 = vadd.f32 %v2302, %v2317
    %v2326 = vadd.f32 %v2303, %v2317
    %v2327 = vadd.f32 %v2304, %v2317
    %v2328 = vadd.f32 %v2305, %v2317
    %v2329 = vadd.f32 %v2306, %v2317
    %v2330 = vadd.f32 %v2307, %v2317
    %v2331 = vadd.f32 %v2308, %v2317
    %v2332 = vadd.f32 %v2309, %v2317
    %v2333 = vadd.f32 %v2310, %v2317
    %v2334 = vadd.f32 %v2311, %v2317
    %v2335 = vmin.f32 %v2319, 0.0
    %v2336 = vmin.f32 %v2320, 0.0
    %v2337 = vmin.f32 %v2321, 0.0
    %v2338 = vmin.f32 %v2322, 0.0
    %v2339 = vmin.f32 %v2323, 0.0
    %v2340 = vmin.f32 %v2324, 0.0
    %v2341 = vmin.f32 %v2325, 0.0
    %v2342 = vmin.f32 %v2326, 0.0
    %v2343 = vmin.f32 %v2327, 0.0
    %v2344 = vmin.f32 %v2328, 0.0
    %v2345 = vmin.f32 %v2329, 0.0
    %v2346 = vmin.f32 %v2330, 0.0
    %v2347 = vmin.f32 %v2331, 0.0
    %v2348 = vmin.f32 %v2332, 0.0
    %v2349 = vmin.f32 %v2333, 0.0
    %v2350 = vmin.f32 %v2334, 0.0
    %v2351 = vmul.f32 %v2335, 1.442695
    %v2352 = vpow.pop %v2351
    %v2353 = vmul.f32 %v2336, 1.442695
    %v2354 = vpow.pop %v2353
    %v2355 = vmul.f32 %v2337, 1.442695
    %v2356 = vpow.pop %v2355
    %v2357 = vmul.f32 %v2338, 1.442695
    %v2358 = vpow.pop %v2357
    %v2359 = vmul.f32 %v2339, 1.442695
    %v2360 = vpow.pop %v2359
    %v2361 = vmul.f32 %v2340, 1.442695
    %v2362 = vpow.pop %v2361
    %v2363 = vmul.f32 %v2341, 1.442695
    %v2364 = vpow.pop %v2363
    %v2365 = vmul.f32 %v2342, 1.442695
    %v2366 = vpow.pop %v2365
    %v2367 = vmul.f32 %v2343, 1.442695
    %v2368 = vpow.pop %v2367
    %v2369 = vmul.f32 %v2344, 1.442695
    %v2370 = vpow.pop %v2369
    %v2371 = vmul.f32 %v2345, 1.442695
    %v2372 = vpow.pop %v2371
    %v2373 = vmul.f32 %v2346, 1.442695
    %v2374 = vpow.pop %v2373
    %v2375 = vmul.f32 %v2347, 1.442695
    %v2376 = vpow.pop %v2375
    %v2377 = vmul.f32 %v2348, 1.442695
    %v2378 = vpow.pop %v2377
    %v2379 = vmul.f32 %v2349, 1.442695
    %v2380 = vpow.pop %v2379
    %v2381 = vmul.f32 %v2350, 1.442695
    %v2382 = vpow.pop %v2381
    %v2383 = vsub.f32 %v2352, 1.0
    %v2384 = vsub.f32 %v2354, 1.0
    %v2385 = vsub.f32 %v2356, 1.0
    %v2386 = vsub.f32 %v2358, 1.0
    %v2387 = vsub.f32 %v2360, 1.0
    %v2388 = vsub.f32 %v2362, 1.0
    %v2389 = vsub.f32 %v2364, 1.0
    %v2390 = vsub.f32 %v2366, 1.0
    %v2391 = vsub.f32 %v2368, 1.0
    %v2392 = vsub.f32 %v2370, 1.0
    %v2393 = vsub.f32 %v2372, 1.0
    %v2394 = vsub.f32 %v2374, 1.0
    %v2395 = vsub.f32 %v2376, 1.0
    %v2396 = vsub.f32 %v2378, 1.0
    %v2397 = vsub.f32 %v2380, 1.0
    %v2398 = vsub.f32 %v2382, 1.0
    %vm2399 = vcmp.gt.f32.partialorder %v2319, 0.0
    %vm2400 = vcmp.gt.f32.partialorder %v2320, 0.0
    %vm2401 = vcmp.gt.f32.partialorder %v2321, 0.0
    %vm2402 = vcmp.gt.f32.partialorder %v2322, 0.0
    %vm2403 = vcmp.gt.f32.partialorder %v2323, 0.0
    %vm2404 = vcmp.gt.f32.partialorder %v2324, 0.0
    %vm2405 = vcmp.gt.f32.partialorder %v2325, 0.0
    %vm2406 = vcmp.gt.f32.partialorder %v2326, 0.0
    %vm2407 = vcmp.gt.f32.partialorder %v2327, 0.0
    %vm2408 = vcmp.gt.f32.partialorder %v2328, 0.0
    %vm2409 = vcmp.gt.f32.partialorder %v2329, 0.0
    %vm2410 = vcmp.gt.f32.partialorder %v2330, 0.0
    %vm2411 = vcmp.gt.f32.partialorder %v2331, 0.0
    %vm2412 = vcmp.gt.f32.partialorder %v2332, 0.0
    %vm2413 = vcmp.gt.f32.partialorder %v2333, 0.0
    %vm2414 = vcmp.gt.f32.partialorder %v2334, 0.0
    %v2415 = vsel %vm2399, %v2319, %v2383
    %v2416 = vsel %vm2400, %v2320, %v2384
    %v2417 = vsel %vm2401, %v2321, %v2385
    %v2418 = vsel %vm2402, %v2322, %v2386
    %v2419 = vsel %vm2403, %v2323, %v2387
    %v2420 = vsel %vm2404, %v2324, %v2388
    %v2421 = vsel %vm2405, %v2325, %v2389
    %v2422 = vsel %vm2406, %v2326, %v2390
    %v2423 = vsel %vm2407, %v2327, %v2391
    %v2424 = vsel %vm2408, %v2328, %v2392
    %v2425 = vsel %vm2409, %v2329, %v2393
    %v2426 = vsel %vm2410, %v2330, %v2394
    %v2427 = vsel %vm2411, %v2331, %v2395
    %v2428 = vsel %vm2412, %v2332, %v2396
    %v2429 = vsel %vm2413, %v2333, %v2397
    %v2430 = vsel %vm2414, %v2334, %v2398
    %v2431 = vpack.c.bf16 %v2416, %v2415
    %v2432 = vpack.c.bf16 %v2418, %v2417
    %v2433 = vpack.c.bf16 %v2420, %v2419
    %v2434 = vpack.c.bf16 %v2422, %v2421
    %v2435 = vpack.c.bf16 %v2424, %v2423
    %v2436 = vpack.c.bf16 %v2426, %v2425
    %v2437 = vpack.c.bf16 %v2428, %v2427
    %v2438 = vpack.c.bf16 %v2430, %v2429
    %v2439 = vld [vmem:[%s5] sm:$0xff]
    %v2440 = vld [vmem:[%s5 + $0x8] sm:$0xff]
    %v2441 = vld [vmem:[%s5 + $0x10] sm:$0xff]
    %v2442 = vld [vmem:[%s5 + $0x18] sm:$0xff]
    %v2443 = vld [vmem:[%s5 + $0x20] sm:$0xff]
    %v2444 = vld [vmem:[%s5 + $0x28] sm:$0xff]
    %v2445 = vld [vmem:[%s5 + $0x30] sm:$0xff]
    %v2446 = vld [vmem:[%s5 + $0x38] sm:$0xff]
    %v2447 = vld [vmem:[%s5 + $0x40] sm:$0xff]
    %v2448 = vld [vmem:[%s5 + $0x48] sm:$0xff]
    %v2449 = vld [vmem:[%s5 + $0x50] sm:$0xff]
    %v2450 = vld [vmem:[%s5 + $0x58] sm:$0xff]
    %v2451 = vld [vmem:[%s5 + $0x60] sm:$0xff]
    %v2452 = vld [vmem:[%s5 + $0x68] sm:$0xff]
    %v2453 = vld [vmem:[%s5 + $0x70] sm:$0xff]
    %v2454 = vld [vmem:[%s5 + $0x78] sm:$0xff]
    %v2455 = vpack.c.bf16 %v2440, %v2439
    %v2456 = vpack.c.bf16 %v2442, %v2441
    %v2457 = vpack.c.bf16 %v2444, %v2443
    %v2458 = vpack.c.bf16 %v2446, %v2445
    %v2459 = vpack.c.bf16 %v2448, %v2447
    %v2460 = vpack.c.bf16 %v2450, %v2449
    %v2461 = vpack.c.bf16 %v2452, %v2451
    %v2462 = vpack.c.bf16 %v2454, %v2453
    %2463 = vmatprep.subr.bf16.mxu0 0
    %2464 = vmatpush1.bf16.msra.mxu0 %v2462
    %2465 = vmatprep.subr.bf16.mxu0 0
    %2466 = vmatpush1.bf16.msra.mxu0 %v2461
    %2467 = vmatprep.subr.bf16.mxu0 0
    %2468 = vmatpush1.bf16.msra.mxu0 %v2460
    %2469 = vmatprep.subr.bf16.mxu0 0
    %2470 = vmatpush1.bf16.msra.mxu0 %v2459
    %2471 = vmatprep.subr.bf16.mxu0 0
    %2472 = vmatpush1.bf16.msra.mxu0 %v2458
    %2473 = vmatprep.subr.bf16.mxu0 0
    %2474 = vmatpush1.bf16.msra.mxu0 %v2457
    %2475 = vmatprep.subr.bf16.mxu0 0
    %2476 = vmatpush1.bf16.msra.mxu0 %v2456
    %2477 = vmatprep.subr.bf16.mxu0 0
    %2478 = vmatpush1.bf16.msra.mxu0 %v2455
    %2479 = vmatprep.subr.bf16.mxu0 0
    %2480 = vmatpush2.bf16.msra.mxu0 0
    %2481 = vmatprep.subr.bf16.mxu0 0
    %2482 = vmatpush2.bf16.msra.mxu0 0
    %2483 = vmatprep.subr.bf16.mxu0 0
    %2484 = vmatpush2.bf16.msra.mxu0 0
    %2485 = vmatprep.subr.bf16.mxu0 0
    %2486 = vmatpush2.bf16.msra.mxu0 0
    %2487 = vmatprep.subr.bf16.mxu0 0
    %2488 = vmatpush2.bf16.msra.mxu0 0
    %2489 = vmatprep.subr.bf16.mxu0 0
    %2490 = vmatpush2.bf16.msra.mxu0 0
    %2491 = vmatprep.subr.bf16.mxu0 0
    %2492 = vmatpush2.bf16.msra.mxu0 0
    %2493 = vmatprep.subr.bf16.mxu0 0
    %2494 = vmatpush2.bf16.msra.mxu0 0
    %2495 = vmatprep.mubr.bf16.mxu0 0
    %2496 = vmatmul.mubr.bf16.gmra.mxu0 %v2431
    %v2497 = vpop.f32.mrf.mxu0
    %v2498 = vadd.f32 0.0, %v2497
    %v2499 = vpop.f32.mrf.mxu0
    %v2500 = vpop.f32.mrf.mxu0
    %v2501 = vadd.f32 0.0, %v2500
    %v2502 = vpop.f32.mrf.mxu0
    %2503 = vmatprep.mubr.bf16.mxu0 0
    %2504 = vmatmul.mubr.bf16.gmra.mxu0 %v2432
    %v2505 = vpop.f32.mrf.mxu0
    %v2506 = vadd.f32 0.0, %v2505
    %v2507 = vpop.f32.mrf.mxu0
    %v2508 = vpop.f32.mrf.mxu0
    %v2509 = vadd.f32 0.0, %v2508
    %v2510 = vpop.f32.mrf.mxu0
    %2511 = vmatprep.mubr.bf16.mxu0 0
    %2512 = vmatmul.mubr.bf16.gmra.mxu0 %v2433
    %v2513 = vpop.f32.mrf.mxu0
    %v2514 = vadd.f32 0.0, %v2513
    %v2515 = vpop.f32.mrf.mxu0
    %v2516 = vpop.f32.mrf.mxu0
    %v2517 = vadd.f32 0.0, %v2516
    %v2518 = vpop.f32.mrf.mxu0
    %2519 = vmatprep.mubr.bf16.mxu0 0
    %2520 = vmatmul.mubr.bf16.gmra.mxu0 %v2434
    %v2521 = vpop.f32.mrf.mxu0
    %v2522 = vadd.f32 0.0, %v2521
    %v2523 = vpop.f32.mrf.mxu0
    %v2524 = vpop.f32.mrf.mxu0
    %v2525 = vadd.f32 0.0, %v2524
    %v2526 = vpop.f32.mrf.mxu0
    %2527 = vmatprep.mubr.bf16.mxu0 0
    %2528 = vmatmul.mubr.bf16.gmra.mxu0 %v2435
    %v2529 = vpop.f32.mrf.mxu0
    %v2530 = vadd.f32 0.0, %v2529
    %v2531 = vpop.f32.mrf.mxu0
    %v2532 = vpop.f32.mrf.mxu0
    %v2533 = vadd.f32 0.0, %v2532
    %v2534 = vpop.f32.mrf.mxu0
    %2535 = vmatprep.mubr.bf16.mxu0 0
    %2536 = vmatmul.mubr.bf16.gmra.mxu0 %v2436
    %v2537 = vpop.f32.mrf.mxu0
    %v2538 = vadd.f32 0.0, %v2537
    %v2539 = vpop.f32.mrf.mxu0
    %v2540 = vpop.f32.mrf.mxu0
    %v2541 = vadd.f32 0.0, %v2540
    %v2542 = vpop.f32.mrf.mxu0
    %2543 = vmatprep.mubr.bf16.mxu0 0
    %2544 = vmatmul.mubr.bf16.gmra.mxu0 %v2437
    %v2545 = vpop.f32.mrf.mxu0
    %v2546 = vadd.f32 0.0, %v2545
    %v2547 = vpop.f32.mrf.mxu0
    %v2548 = vpop.f32.mrf.mxu0
    %v2549 = vadd.f32 0.0, %v2548
    %v2550 = vpop.f32.mrf.mxu0
    %2551 = vmatprep.mubr.bf16.mxu0 0
    %2552 = vmatmul.mubr.bf16.gmra.mxu0 %v2438
    %v2553 = vpop.f32.mrf.mxu0
    %v2554 = vadd.f32 0.0, %v2553
    %v2555 = vpop.f32.mrf.mxu0
    %v2556 = vpop.f32.mrf.mxu0
    %v2557 = vadd.f32 0.0, %v2556
    %v2558 = vpop.f32.mrf.mxu0
    %2559 = vdwg.mxu0
    %v2560 = vpack.c.bf16 %v2501, %v2498
    %v2561 = vpack.c.bf16 %v2509, %v2506
    %v2562 = vpack.c.bf16 %v2517, %v2514
    %v2563 = vpack.c.bf16 %v2525, %v2522
    %v2564 = vpack.c.bf16 %v2533, %v2530
    %v2565 = vpack.c.bf16 %v2541, %v2538
    %v2566 = vpack.c.bf16 %v2549, %v2546
    %v2567 = vpack.c.bf16 %v2557, %v2554
    %v2568 = vld [vmem:[%s6] sm:$0xff]
    %v2569 = vld [vmem:[%s6 + $0x8] sm:$0xff]
    %v2570 = vld [vmem:[%s6 + $0x10] sm:$0xff]
    %v2571 = vld [vmem:[%s6 + $0x18] sm:$0xff]
    %v2572 = vpack.c.bf16 %v2569, %v2568
    %v2573 = vpack.c.bf16 %v2571, %v2570
    %v2575 = vsel %vm70, %v2560, 0
    %v2578 = vsel %vm70, %v2561, 0
    %v2581 = vsel %vm70, %v2562, 0
    %v2584 = vsel %vm70, %v2563, 0
    %v2587 = vsel %vm70, %v2564, 0
    %v2590 = vsel %vm70, %v2565, 0
    %v2593 = vsel %vm70, %v2566, 0
    %v2596 = vsel %vm70, %v2567, 0
    %2598 = vmatprep.subr.bf16.mxu0 0
    %2599 = vmatpush1.bf16.msra.mxu0 0
    %2600 = vmatprep.subr.bf16.mxu0 0
    %2601 = vmatpush1.bf16.msra.mxu0 0
    %2602 = vmatprep.subr.bf16.mxu0 0
    %2603 = vmatpush1.bf16.msra.mxu0 0
    %2604 = vmatprep.subr.bf16.mxu0 0
    %2605 = vmatpush1.bf16.msra.mxu0 0
    %2606 = vmatprep.subr.bf16.mxu0 0
    %2607 = vmatpush1.bf16.msra.mxu0 0
    %2608 = vmatprep.subr.bf16.mxu0 0
    %2609 = vmatpush1.bf16.msra.mxu0 0
    %2610 = vmatprep.subr.bf16.mxu0 0
    %2611 = vmatpush1.bf16.msra.mxu0 %v2573
    %2612 = vmatprep.subr.bf16.mxu0 0
    %2613 = vmatpush1.bf16.msra.mxu0 %v2572
    %2614 = vmatprep.subr.bf16.mxu0 0
    %2615 = vmatpush2.bf16.msra.mxu0 0
    %2616 = vmatprep.subr.bf16.mxu0 0
    %2617 = vmatpush2.bf16.msra.mxu0 0
    %2618 = vmatprep.subr.bf16.mxu0 0
    %2619 = vmatpush2.bf16.msra.mxu0 0
    %2620 = vmatprep.subr.bf16.mxu0 0
    %2621 = vmatpush2.bf16.msra.mxu0 0
    %2622 = vmatprep.subr.bf16.mxu0 0
    %2623 = vmatpush2.bf16.msra.mxu0 0
    %2624 = vmatprep.subr.bf16.mxu0 0
    %2625 = vmatpush2.bf16.msra.mxu0 0
    %2626 = vmatprep.subr.bf16.mxu0 0
    %2627 = vmatpush2.bf16.msra.mxu0 0
    %2628 = vmatprep.subr.bf16.mxu0 0
    %2629 = vmatpush2.bf16.msra.mxu0 0
    %2630 = vmatprep.mubr.bf16.mxu0 0
    %2631 = vmatmul.mubr.bf16.gmra.mxu0 %v2575
    %v2632 = vpop.f32.mrf.mxu0
    %v2633 = vadd.f32 0.0, %v2632
    %v2634 = vpop.f32.mrf.mxu0
    %v2635 = vpop.f32.mrf.mxu0
    %v2636 = vadd.f32 0.0, %v2635
    %v2637 = vpop.f32.mrf.mxu0
    %2638 = vmatprep.mubr.bf16.mxu0 0
    %2639 = vmatmul.mubr.bf16.gmra.mxu0 %v2578
    %v2640 = vpop.f32.mrf.mxu0
    %v2641 = vadd.f32 0.0, %v2640
    %v2642 = vpop.f32.mrf.mxu0
    %v2643 = vpop.f32.mrf.mxu0
    %v2644 = vadd.f32 0.0, %v2643
    %v2645 = vpop.f32.mrf.mxu0
    %2646 = vmatprep.mubr.bf16.mxu0 0
    %2647 = vmatmul.mubr.bf16.gmra.mxu0 %v2581
    %v2648 = vpop.f32.mrf.mxu0
    %v2649 = vadd.f32 0.0, %v2648
    %v2650 = vpop.f32.mrf.mxu0
    %v2651 = vpop.f32.mrf.mxu0
    %v2652 = vadd.f32 0.0, %v2651
    %v2653 = vpop.f32.mrf.mxu0
    %2654 = vmatprep.mubr.bf16.mxu0 0
    %2655 = vmatmul.mubr.bf16.gmra.mxu0 %v2584
    %v2656 = vpop.f32.mrf.mxu0
    %v2657 = vadd.f32 0.0, %v2656
    %v2658 = vpop.f32.mrf.mxu0
    %v2659 = vpop.f32.mrf.mxu0
    %v2660 = vadd.f32 0.0, %v2659
    %v2661 = vpop.f32.mrf.mxu0
    %2662 = vmatprep.mubr.bf16.mxu0 0
    %2663 = vmatmul.mubr.bf16.gmra.mxu0 %v2587
    %v2664 = vpop.f32.mrf.mxu0
    %v2665 = vadd.f32 0.0, %v2664
    %v2666 = vpop.f32.mrf.mxu0
    %v2667 = vpop.f32.mrf.mxu0
    %v2668 = vadd.f32 0.0, %v2667
    %v2669 = vpop.f32.mrf.mxu0
    %2670 = vmatprep.mubr.bf16.mxu0 0
    %2671 = vmatmul.mubr.bf16.gmra.mxu0 %v2590
    %v2672 = vpop.f32.mrf.mxu0
    %v2673 = vadd.f32 0.0, %v2672
    %v2674 = vpop.f32.mrf.mxu0
    %v2675 = vpop.f32.mrf.mxu0
    %v2676 = vadd.f32 0.0, %v2675
    %v2677 = vpop.f32.mrf.mxu0
    %2678 = vmatprep.mubr.bf16.mxu0 0
    %2679 = vmatmul.mubr.bf16.gmra.mxu0 %v2593
    %v2680 = vpop.f32.mrf.mxu0
    %v2681 = vadd.f32 0.0, %v2680
    %v2682 = vpop.f32.mrf.mxu0
    %v2683 = vpop.f32.mrf.mxu0
    %v2684 = vadd.f32 0.0, %v2683
    %v2685 = vpop.f32.mrf.mxu0
    %2686 = vmatprep.mubr.bf16.mxu0 0
    %2687 = vmatmul.mubr.bf16.gmra.mxu0 %v2596
    %v2688 = vpop.f32.mrf.mxu0
    %v2689 = vadd.f32 0.0, %v2688
    %v2690 = vpop.f32.mrf.mxu0
    %v2691 = vpop.f32.mrf.mxu0
    %v2692 = vadd.f32 0.0, %v2691
    %v2693 = vpop.f32.mrf.mxu0
    %2694 = vdwg.mxu0
    %2695 = vxpose.xlu0.b32.start [1/16] %v2633, 128
    %2696 = vxpose.xlu0.b32.cont [2/16] %v2636, 128
    %2697 = vxpose.xlu0.b32.cont [3/16] %v2641, 128
    %2698 = vxpose.xlu0.b32.cont [4/16] %v2644, 128
    %2699 = vxpose.xlu0.b32.cont [5/16] %v2649, 128
    %2700 = vxpose.xlu0.b32.cont [6/16] %v2652, 128
    %2701 = vxpose.xlu0.b32.cont [7/16] %v2657, 128
    %2702 = vxpose.xlu0.b32.cont [8/16] %v2660, 128
    %2703 = vxpose.xlu0.b32.cont [9/16] %v2665, 128
    %2704 = vxpose.xlu0.b32.cont [10/16] %v2668, 128
    %2705 = vxpose.xlu0.b32.cont [11/16] %v2673, 128
    %2706 = vxpose.xlu0.b32.cont [12/16] %v2676, 128
    %2707 = vxpose.xlu0.b32.cont [13/16] %v2681, 128
    %2708 = vxpose.xlu0.b32.cont [14/16] %v2684, 128
    %2709 = vxpose.xlu0.b32.cont [15/16] %v2689, 128
    %2710 = vxpose.xlu0.b32.end [16/16] %v2692, 128
    %v2711 = vpop.trf.xlu0
    %v2712 = vpop.trf.xlu0
    %v2713 = vpop.trf.xlu0
    %v2714 = vpop.trf.xlu0
    %v2715 = vpop.trf.xlu0
    %v2716 = vpop.trf.xlu0
    %v2717 = vpop.trf.xlu0
    %v2718 = vpop.trf.xlu0
    %v2719 = vpop.trf.xlu0
    %v2720 = vpop.trf.xlu0
    %v2721 = vpop.trf.xlu0
    %v2722 = vpop.trf.xlu0
    %v2723 = vpop.trf.xlu0
    %v2724 = vpop.trf.xlu0
    %v2725 = vpop.trf.xlu0
    %v2726 = vpop.trf.xlu0
    %2728 = vset.pattern.permute.xlu0 1
    %2729 = vperm.xlu0 %2728, %v2633
    %v2730 = vpop.permute.xlu0 %2729
    %2733 = vset.pattern.permute.xlu0 1
    %2734 = vperm.xlu0 %2733, %v2636
    %v2735 = vpop.permute.xlu0 %2734
    %2738 = vset.pattern.permute.xlu0 1
    %2739 = vperm.xlu0 %2738, %v2641
    %v2740 = vpop.permute.xlu0 %2739
    %2743 = vset.pattern.permute.xlu0 1
    %2744 = vperm.xlu0 %2743, %v2644
    %v2745 = vpop.permute.xlu0 %2744
    %2748 = vset.pattern.permute.xlu0 1
    %2749 = vperm.xlu0 %2748, %v2649
    %v2750 = vpop.permute.xlu0 %2749
    %2753 = vset.pattern.permute.xlu0 1
    %2754 = vperm.xlu0 %2753, %v2652
    %v2755 = vpop.permute.xlu0 %2754
    %2758 = vset.pattern.permute.xlu0 1
    %2759 = vperm.xlu0 %2758, %v2657
    %v2760 = vpop.permute.xlu0 %2759
    %2763 = vset.pattern.permute.xlu0 1
    %2764 = vperm.xlu0 %2763, %v2660
    %v2765 = vpop.permute.xlu0 %2764
    %2768 = vset.pattern.permute.xlu0 1
    %2769 = vperm.xlu0 %2768, %v2665
    %v2770 = vpop.permute.xlu0 %2769
    %2773 = vset.pattern.permute.xlu0 1
    %2774 = vperm.xlu0 %2773, %v2668
    %v2775 = vpop.permute.xlu0 %2774
    %2778 = vset.pattern.permute.xlu0 1
    %2779 = vperm.xlu0 %2778, %v2673
    %v2780 = vpop.permute.xlu0 %2779
    %2783 = vset.pattern.permute.xlu0 1
    %2784 = vperm.xlu0 %2783, %v2676
    %v2785 = vpop.permute.xlu0 %2784
    %2788 = vset.pattern.permute.xlu0 1
    %2789 = vperm.xlu0 %2788, %v2681
    %v2790 = vpop.permute.xlu0 %2789
    %2793 = vset.pattern.permute.xlu0 1
    %2794 = vperm.xlu0 %2793, %v2684
    %v2795 = vpop.permute.xlu0 %2794
    %2798 = vset.pattern.permute.xlu0 1
    %2799 = vperm.xlu0 %2798, %v2689
    %v2800 = vpop.permute.xlu0 %2799
    %2803 = vset.pattern.permute.xlu0 1
    %2804 = vperm.xlu0 %2803, %v2692
    %v2805 = vpop.permute.xlu0 %2804
    %v2807 = vlaneseq
    %v2808 = vshrl.u32 %v2807, 7
    %v2809 = vsub.s32 0, %v2808
    %v2810 = vrot.slane %v2711, %v2809
    %v2811 = vadd.f32 %v2730, %v2810
    %v2812 = vadd.f32 %v2735, %v2810
    %v2813 = vadd.f32 %v2740, %v2810
    %v2814 = vadd.f32 %v2745, %v2810
    %v2815 = vadd.f32 %v2750, %v2810
    %v2816 = vadd.f32 %v2755, %v2810
    %v2817 = vadd.f32 %v2760, %v2810
    %v2818 = vadd.f32 %v2765, %v2810
    %v2819 = vadd.f32 %v2770, %v2810
    %v2820 = vadd.f32 %v2775, %v2810
    %v2821 = vadd.f32 %v2780, %v2810
    %v2822 = vadd.f32 %v2785, %v2810
    %v2823 = vadd.f32 %v2790, %v2810
    %v2824 = vadd.f32 %v2795, %v2810
    %v2825 = vadd.f32 %v2800, %v2810
    %v2826 = vadd.f32 %v2805, %v2810
    %v2827 = vmul.f32 %v2811, 0.2
    %v2828 = vmul.f32 %v2812, 0.2
    %v2829 = vmul.f32 %v2813, 0.2
    %v2830 = vmul.f32 %v2814, 0.2
    %v2831 = vmul.f32 %v2815, 0.2
    %v2832 = vmul.f32 %v2816, 0.2
    %v2833 = vmul.f32 %v2817, 0.2
    %v2834 = vmul.f32 %v2818, 0.2
    %v2835 = vmul.f32 %v2819, 0.2
    %v2836 = vmul.f32 %v2820, 0.2
    %v2837 = vmul.f32 %v2821, 0.2
    %v2838 = vmul.f32 %v2822, 0.2
    %v2839 = vmul.f32 %v2823, 0.2
    %v2840 = vmul.f32 %v2824, 0.2
    %v2841 = vmul.f32 %v2825, 0.2
    %v2842 = vmul.f32 %v2826, 0.2
    %v2843 = vmax.f32 %v2811, %v2827
    %v2844 = vmax.f32 %v2812, %v2828
    %v2845 = vmax.f32 %v2813, %v2829
    %v2846 = vmax.f32 %v2814, %v2830
    %v2847 = vmax.f32 %v2815, %v2831
    %v2848 = vmax.f32 %v2816, %v2832
    %v2849 = vmax.f32 %v2817, %v2833
    %v2850 = vmax.f32 %v2818, %v2834
    %v2851 = vmax.f32 %v2819, %v2835
    %v2852 = vmax.f32 %v2820, %v2836
    %v2853 = vmax.f32 %v2821, %v2837
    %v2854 = vmax.f32 %v2822, %v2838
    %v2855 = vmax.f32 %v2823, %v2839
    %v2856 = vmax.f32 %v2824, %v2840
    %v2857 = vmax.f32 %v2825, %v2841
    %v2858 = vmax.f32 %v2826, %v2842
    %v2859 = vld [vmem:[%s1] sm:$0xff]
    %v2860 = vld [vmem:[%s1 + $0x8] sm:$0xff]
    %v2861 = vld [vmem:[%s1 + $0x10] sm:$0xff]
    %v2862 = vld [vmem:[%s1 + $0x18] sm:$0xff]
    %v2863 = vld [vmem:[%s1 + $0x20] sm:$0xff]
    %v2864 = vld [vmem:[%s1 + $0x28] sm:$0xff]
    %v2865 = vld [vmem:[%s1 + $0x30] sm:$0xff]
    %v2866 = vld [vmem:[%s1 + $0x38] sm:$0xff]
    %v2867 = vld [vmem:[%s1 + $0x40] sm:$0xff]
    %v2868 = vld [vmem:[%s1 + $0x48] sm:$0xff]
    %v2869 = vld [vmem:[%s1 + $0x50] sm:$0xff]
    %v2870 = vld [vmem:[%s1 + $0x58] sm:$0xff]
    %v2871 = vld [vmem:[%s1 + $0x60] sm:$0xff]
    %v2872 = vld [vmem:[%s1 + $0x68] sm:$0xff]
    %v2873 = vld [vmem:[%s1 + $0x70] sm:$0xff]
    %v2874 = vld [vmem:[%s1 + $0x78] sm:$0xff]
    %v2875 = vadd.f32 %v2843, %v2859
    %v2876 = vadd.f32 %v2844, %v2860
    %v2877 = vadd.f32 %v2845, %v2861
    %v2878 = vadd.f32 %v2846, %v2862
    %v2879 = vadd.f32 %v2847, %v2863
    %v2880 = vadd.f32 %v2848, %v2864
    %v2881 = vadd.f32 %v2849, %v2865
    %v2882 = vadd.f32 %v2850, %v2866
    %v2883 = vadd.f32 %v2851, %v2867
    %v2884 = vadd.f32 %v2852, %v2868
    %v2885 = vadd.f32 %v2853, %v2869
    %v2886 = vadd.f32 %v2854, %v2870
    %v2887 = vadd.f32 %v2855, %v2871
    %v2888 = vadd.f32 %v2856, %v2872
    %v2889 = vadd.f32 %v2857, %v2873
    %v2890 = vadd.f32 %v2858, %v2874
    %2891 = vmax.xlane.f32.xlu0 %v2875
    %v2892 = vpop.xlane.xlu0 %2891
    %2893 = vmax.xlane.f32.xlu0 %v2876
    %v2894 = vpop.xlane.xlu0 %2893
    %2895 = vmax.xlane.f32.xlu0 %v2877
    %v2896 = vpop.xlane.xlu0 %2895
    %2897 = vmax.xlane.f32.xlu0 %v2878
    %v2898 = vpop.xlane.xlu0 %2897
    %2899 = vmax.xlane.f32.xlu0 %v2879
    %v2900 = vpop.xlane.xlu0 %2899
    %2901 = vmax.xlane.f32.xlu0 %v2880
    %v2902 = vpop.xlane.xlu0 %2901
    %2903 = vmax.xlane.f32.xlu0 %v2881
    %v2904 = vpop.xlane.xlu0 %2903
    %2905 = vmax.xlane.f32.xlu0 %v2882
    %v2906 = vpop.xlane.xlu0 %2905
    %2907 = vmax.xlane.f32.xlu0 %v2883
    %v2908 = vpop.xlane.xlu0 %2907
    %2909 = vmax.xlane.f32.xlu0 %v2884
    %v2910 = vpop.xlane.xlu0 %2909
    %2911 = vmax.xlane.f32.xlu0 %v2885
    %v2912 = vpop.xlane.xlu0 %2911
    %2913 = vmax.xlane.f32.xlu0 %v2886
    %v2914 = vpop.xlane.xlu0 %2913
    %2915 = vmax.xlane.f32.xlu0 %v2887
    %v2916 = vpop.xlane.xlu0 %2915
    %2917 = vmax.xlane.f32.xlu0 %v2888
    %v2918 = vpop.xlane.xlu0 %2917
    %2919 = vmax.xlane.f32.xlu0 %v2889
    %v2920 = vpop.xlane.xlu0 %2919
    %2921 = vmax.xlane.f32.xlu0 %v2890
    %v2922 = vpop.xlane.xlu0 %2921
    %v2923 = vsub.f32 %v2875, %v2892
    %v2924 = vsub.f32 %v2876, %v2894
    %v2925 = vsub.f32 %v2877, %v2896
    %v2926 = vsub.f32 %v2878, %v2898
    %v2927 = vsub.f32 %v2879, %v2900
    %v2928 = vsub.f32 %v2880, %v2902
    %v2929 = vsub.f32 %v2881, %v2904
    %v2930 = vsub.f32 %v2882, %v2906
    %v2931 = vsub.f32 %v2883, %v2908
    %v2932 = vsub.f32 %v2884, %v2910
    %v2933 = vsub.f32 %v2885, %v2912
    %v2934 = vsub.f32 %v2886, %v2914
    %v2935 = vsub.f32 %v2887, %v2916
    %v2936 = vsub.f32 %v2888, %v2918
    %v2937 = vsub.f32 %v2889, %v2920
    %v2938 = vsub.f32 %v2890, %v2922
    %v2939 = vmul.f32 %v2923, 1.442695
    %v2940 = vpow.pop %v2939
    %v2941 = vmul.f32 %v2924, 1.442695
    %v2942 = vpow.pop %v2941
    %v2943 = vmul.f32 %v2925, 1.442695
    %v2944 = vpow.pop %v2943
    %v2945 = vmul.f32 %v2926, 1.442695
    %v2946 = vpow.pop %v2945
    %v2947 = vmul.f32 %v2927, 1.442695
    %v2948 = vpow.pop %v2947
    %v2949 = vmul.f32 %v2928, 1.442695
    %v2950 = vpow.pop %v2949
    %v2951 = vmul.f32 %v2929, 1.442695
    %v2952 = vpow.pop %v2951
    %v2953 = vmul.f32 %v2930, 1.442695
    %v2954 = vpow.pop %v2953
    %v2955 = vmul.f32 %v2931, 1.442695
    %v2956 = vpow.pop %v2955
    %v2957 = vmul.f32 %v2932, 1.442695
    %v2958 = vpow.pop %v2957
    %v2959 = vmul.f32 %v2933, 1.442695
    %v2960 = vpow.pop %v2959
    %v2961 = vmul.f32 %v2934, 1.442695
    %v2962 = vpow.pop %v2961
    %v2963 = vmul.f32 %v2935, 1.442695
    %v2964 = vpow.pop %v2963
    %v2965 = vmul.f32 %v2936, 1.442695
    %v2966 = vpow.pop %v2965
    %v2967 = vmul.f32 %v2937, 1.442695
    %v2968 = vpow.pop %v2967
    %v2969 = vmul.f32 %v2938, 1.442695
    %v2970 = vpow.pop %v2969
    %2971 = vadd.xlane.f32.xlu0 %v2940
    %v2972 = vpop.xlane.xlu0 %2971
    %2973 = vadd.xlane.f32.xlu0 %v2942
    %v2974 = vpop.xlane.xlu0 %2973
    %2975 = vadd.xlane.f32.xlu0 %v2944
    %v2976 = vpop.xlane.xlu0 %2975
    %2977 = vadd.xlane.f32.xlu0 %v2946
    %v2978 = vpop.xlane.xlu0 %2977
    %2979 = vadd.xlane.f32.xlu0 %v2948
    %v2980 = vpop.xlane.xlu0 %2979
    %2981 = vadd.xlane.f32.xlu0 %v2950
    %v2982 = vpop.xlane.xlu0 %2981
    %2983 = vadd.xlane.f32.xlu0 %v2952
    %v2984 = vpop.xlane.xlu0 %2983
    %2985 = vadd.xlane.f32.xlu0 %v2954
    %v2986 = vpop.xlane.xlu0 %2985
    %2987 = vadd.xlane.f32.xlu0 %v2956
    %v2988 = vpop.xlane.xlu0 %2987
    %2989 = vadd.xlane.f32.xlu0 %v2958
    %v2990 = vpop.xlane.xlu0 %2989
    %2991 = vadd.xlane.f32.xlu0 %v2960
    %v2992 = vpop.xlane.xlu0 %2991
    %2993 = vadd.xlane.f32.xlu0 %v2962
    %v2994 = vpop.xlane.xlu0 %2993
    %2995 = vadd.xlane.f32.xlu0 %v2964
    %v2996 = vpop.xlane.xlu0 %2995
    %2997 = vadd.xlane.f32.xlu0 %v2966
    %v2998 = vpop.xlane.xlu0 %2997
    %2999 = vadd.xlane.f32.xlu0 %v2968
    %v3000 = vpop.xlane.xlu0 %2999
    %3001 = vadd.xlane.f32.xlu0 %v2970
    %v3002 = vpop.xlane.xlu0 %3001
    %v3003 = vpack.c.bf16 %v2942, %v2940
    %v3004 = vpack.c.bf16 %v2946, %v2944
    %v3005 = vpack.c.bf16 %v2950, %v2948
    %v3006 = vpack.c.bf16 %v2954, %v2952
    %v3007 = vpack.c.bf16 %v2958, %v2956
    %v3008 = vpack.c.bf16 %v2962, %v2960
    %v3009 = vpack.c.bf16 %v2966, %v2964
    %v3010 = vpack.c.bf16 %v2970, %v2968
    %3011 = vmatprep.subr.bf16.mxu0 0
    %3012 = vmatpush1.bf16.msra.mxu0 %v2567
    %3013 = vmatprep.subr.bf16.mxu0 0
    %3014 = vmatpush1.bf16.msra.mxu0 %v2566
    %3015 = vmatprep.subr.bf16.mxu0 0
    %3016 = vmatpush1.bf16.msra.mxu0 %v2565
    %3017 = vmatprep.subr.bf16.mxu0 0
    %3018 = vmatpush1.bf16.msra.mxu0 %v2564
    %3019 = vmatprep.subr.bf16.mxu0 0
    %3020 = vmatpush1.bf16.msra.mxu0 %v2563
    %3021 = vmatprep.subr.bf16.mxu0 0
    %3022 = vmatpush1.bf16.msra.mxu0 %v2562
    %3023 = vmatprep.subr.bf16.mxu0 0
    %3024 = vmatpush1.bf16.msra.mxu0 %v2561
    %3025 = vmatprep.subr.bf16.mxu0 0
    %3026 = vmatpush1.bf16.msra.mxu0 %v2560
    %3027 = vmatprep.subr.bf16.mxu0 0
    %3028 = vmatpush2.bf16.msra.mxu0 0
    %3029 = vmatprep.subr.bf16.mxu0 0
    %3030 = vmatpush2.bf16.msra.mxu0 0
    %3031 = vmatprep.subr.bf16.mxu0 0
    %3032 = vmatpush2.bf16.msra.mxu0 0
    %3033 = vmatprep.subr.bf16.mxu0 0
    %3034 = vmatpush2.bf16.msra.mxu0 0
    %3035 = vmatprep.subr.bf16.mxu0 0
    %3036 = vmatpush2.bf16.msra.mxu0 0
    %3037 = vmatprep.subr.bf16.mxu0 0
    %3038 = vmatpush2.bf16.msra.mxu0 0
    %3039 = vmatprep.subr.bf16.mxu0 0
    %3040 = vmatpush2.bf16.msra.mxu0 0
    %3041 = vmatprep.subr.bf16.mxu0 0
    %3042 = vmatpush2.bf16.msra.mxu0 0
    %3043 = vmatprep.mubr.bf16.mxu0 0
    %3044 = vmatmul.mubr.bf16.gmra.mxu0 %v3003
    %v3045 = vpop.f32.mrf.mxu0
    %v3046 = vadd.f32 0.0, %v3045
    %v3047 = vpop.f32.mrf.mxu0
    %v3048 = vpop.f32.mrf.mxu0
    %v3049 = vadd.f32 0.0, %v3048
    %v3050 = vpop.f32.mrf.mxu0
    %3051 = vmatprep.mubr.bf16.mxu0 0
    %3052 = vmatmul.mubr.bf16.gmra.mxu0 %v3004
    %v3053 = vpop.f32.mrf.mxu0
    %v3054 = vadd.f32 0.0, %v3053
    %v3055 = vpop.f32.mrf.mxu0
    %v3056 = vpop.f32.mrf.mxu0
    %v3057 = vadd.f32 0.0, %v3056
    %v3058 = vpop.f32.mrf.mxu0
    %3059 = vmatprep.mubr.bf16.mxu0 0
    %3060 = vmatmul.mubr.bf16.gmra.mxu0 %v3005
    %v3061 = vpop.f32.mrf.mxu0
    %v3062 = vadd.f32 0.0, %v3061
    %v3063 = vpop.f32.mrf.mxu0
    %v3064 = vpop.f32.mrf.mxu0
    %v3065 = vadd.f32 0.0, %v3064
    %v3066 = vpop.f32.mrf.mxu0
    %3067 = vmatprep.mubr.bf16.mxu0 0
    %3068 = vmatmul.mubr.bf16.gmra.mxu0 %v3006
    %v3069 = vpop.f32.mrf.mxu0
    %v3070 = vadd.f32 0.0, %v3069
    %v3071 = vpop.f32.mrf.mxu0
    %v3072 = vpop.f32.mrf.mxu0
    %v3073 = vadd.f32 0.0, %v3072
    %v3074 = vpop.f32.mrf.mxu0
    %3075 = vmatprep.mubr.bf16.mxu0 0
    %3076 = vmatmul.mubr.bf16.gmra.mxu0 %v3007
    %v3077 = vpop.f32.mrf.mxu0
    %v3078 = vadd.f32 0.0, %v3077
    %v3079 = vpop.f32.mrf.mxu0
    %v3080 = vpop.f32.mrf.mxu0
    %v3081 = vadd.f32 0.0, %v3080
    %v3082 = vpop.f32.mrf.mxu0
    %3083 = vmatprep.mubr.bf16.mxu0 0
    %3084 = vmatmul.mubr.bf16.gmra.mxu0 %v3008
    %v3085 = vpop.f32.mrf.mxu0
    %v3086 = vadd.f32 0.0, %v3085
    %v3087 = vpop.f32.mrf.mxu0
    %v3088 = vpop.f32.mrf.mxu0
    %v3089 = vadd.f32 0.0, %v3088
    %v3090 = vpop.f32.mrf.mxu0
    %3091 = vmatprep.mubr.bf16.mxu0 0
    %3092 = vmatmul.mubr.bf16.gmra.mxu0 %v3009
    %v3093 = vpop.f32.mrf.mxu0
    %v3094 = vadd.f32 0.0, %v3093
    %v3095 = vpop.f32.mrf.mxu0
    %v3096 = vpop.f32.mrf.mxu0
    %v3097 = vadd.f32 0.0, %v3096
    %v3098 = vpop.f32.mrf.mxu0
    %3099 = vmatprep.mubr.bf16.mxu0 0
    %3100 = vmatmul.mubr.bf16.gmra.mxu0 %v3010
    %v3101 = vpop.f32.mrf.mxu0
    %v3102 = vadd.f32 0.0, %v3101
    %v3103 = vpop.f32.mrf.mxu0
    %v3104 = vpop.f32.mrf.mxu0
    %v3105 = vadd.f32 0.0, %v3104
    %v3106 = vpop.f32.mrf.mxu0
    %3107 = vdwg.mxu0
    %v3108 = vrcp.pop %v2972
    %v3109 = vrcp.pop %v2974
    %v3110 = vrcp.pop %v2976
    %v3111 = vrcp.pop %v2978
    %v3112 = vrcp.pop %v2980
    %v3113 = vrcp.pop %v2982
    %v3114 = vrcp.pop %v2984
    %v3115 = vrcp.pop %v2986
    %v3116 = vrcp.pop %v2988
    %v3117 = vrcp.pop %v2990
    %v3118 = vrcp.pop %v2992
    %v3119 = vrcp.pop %v2994
    %v3120 = vrcp.pop %v2996
    %v3121 = vrcp.pop %v2998
    %v3122 = vrcp.pop %v3000
    %v3123 = vrcp.pop %v3002
    %v3124 = vmul.f32 %v3046, %v3108
    %v3125 = vmul.f32 %v3049, %v3109
    %v3126 = vmul.f32 %v3054, %v3110
    %v3127 = vmul.f32 %v3057, %v3111
    %v3128 = vmul.f32 %v3062, %v3112
    %v3129 = vmul.f32 %v3065, %v3113
    %v3130 = vmul.f32 %v3070, %v3114
    %v3131 = vmul.f32 %v3073, %v3115
    %v3132 = vmul.f32 %v3078, %v3116
    %v3133 = vmul.f32 %v3081, %v3117
    %v3134 = vmul.f32 %v3086, %v3118
    %v3135 = vmul.f32 %v3089, %v3119
    %v3136 = vmul.f32 %v3094, %v3120
    %v3137 = vmul.f32 %v3097, %v3121
    %v3138 = vmul.f32 %v3102, %v3122
    %v3139 = vmul.f32 %v3105, %v3123
    %v3140 = vld [vmem:[%s7] sm:$0x1]
    %v3142 = vlaneseq
    %v3143 = vshrl.u32 %v3142, 7
    %v3144 = vsub.s32 0, %v3143
    %v3145 = vrot.slane %v3140, %v3144
    %v3147 = vadd.f32 %v3124, %v3145
    %v3148 = vadd.f32 %v3125, %v3145
    %v3149 = vadd.f32 %v3126, %v3145
    %v3150 = vadd.f32 %v3127, %v3145
    %v3151 = vadd.f32 %v3128, %v3145
    %v3152 = vadd.f32 %v3129, %v3145
    %v3153 = vadd.f32 %v3130, %v3145
    %v3154 = vadd.f32 %v3131, %v3145
    %v3155 = vadd.f32 %v3132, %v3145
    %v3156 = vadd.f32 %v3133, %v3145
    %v3157 = vadd.f32 %v3134, %v3145
    %v3158 = vadd.f32 %v3135, %v3145
    %v3159 = vadd.f32 %v3136, %v3145
    %v3160 = vadd.f32 %v3137, %v3145
    %v3161 = vadd.f32 %v3138, %v3145
    %v3162 = vadd.f32 %v3139, %v3145
    %v3163 = vmin.f32 %v3147, 0.0
    %v3164 = vmin.f32 %v3148, 0.0
    %v3165 = vmin.f32 %v3149, 0.0
    %v3166 = vmin.f32 %v3150, 0.0
    %v3167 = vmin.f32 %v3151, 0.0
    %v3168 = vmin.f32 %v3152, 0.0
    %v3169 = vmin.f32 %v3153, 0.0
    %v3170 = vmin.f32 %v3154, 0.0
    %v3171 = vmin.f32 %v3155, 0.0
    %v3172 = vmin.f32 %v3156, 0.0
    %v3173 = vmin.f32 %v3157, 0.0
    %v3174 = vmin.f32 %v3158, 0.0
    %v3175 = vmin.f32 %v3159, 0.0
    %v3176 = vmin.f32 %v3160, 0.0
    %v3177 = vmin.f32 %v3161, 0.0
    %v3178 = vmin.f32 %v3162, 0.0
    %v3179 = vmul.f32 %v3163, 1.442695
    %v3180 = vpow.pop %v3179
    %v3181 = vmul.f32 %v3164, 1.442695
    %v3182 = vpow.pop %v3181
    %v3183 = vmul.f32 %v3165, 1.442695
    %v3184 = vpow.pop %v3183
    %v3185 = vmul.f32 %v3166, 1.442695
    %v3186 = vpow.pop %v3185
    %v3187 = vmul.f32 %v3167, 1.442695
    %v3188 = vpow.pop %v3187
    %v3189 = vmul.f32 %v3168, 1.442695
    %v3190 = vpow.pop %v3189
    %v3191 = vmul.f32 %v3169, 1.442695
    %v3192 = vpow.pop %v3191
    %v3193 = vmul.f32 %v3170, 1.442695
    %v3194 = vpow.pop %v3193
    %v3195 = vmul.f32 %v3171, 1.442695
    %v3196 = vpow.pop %v3195
    %v3197 = vmul.f32 %v3172, 1.442695
    %v3198 = vpow.pop %v3197
    %v3199 = vmul.f32 %v3173, 1.442695
    %v3200 = vpow.pop %v3199
    %v3201 = vmul.f32 %v3174, 1.442695
    %v3202 = vpow.pop %v3201
    %v3203 = vmul.f32 %v3175, 1.442695
    %v3204 = vpow.pop %v3203
    %v3205 = vmul.f32 %v3176, 1.442695
    %v3206 = vpow.pop %v3205
    %v3207 = vmul.f32 %v3177, 1.442695
    %v3208 = vpow.pop %v3207
    %v3209 = vmul.f32 %v3178, 1.442695
    %v3210 = vpow.pop %v3209
    %v3211 = vsub.f32 %v3180, 1.0
    %v3212 = vsub.f32 %v3182, 1.0
    %v3213 = vsub.f32 %v3184, 1.0
    %v3214 = vsub.f32 %v3186, 1.0
    %v3215 = vsub.f32 %v3188, 1.0
    %v3216 = vsub.f32 %v3190, 1.0
    %v3217 = vsub.f32 %v3192, 1.0
    %v3218 = vsub.f32 %v3194, 1.0
    %v3219 = vsub.f32 %v3196, 1.0
    %v3220 = vsub.f32 %v3198, 1.0
    %v3221 = vsub.f32 %v3200, 1.0
    %v3222 = vsub.f32 %v3202, 1.0
    %v3223 = vsub.f32 %v3204, 1.0
    %v3224 = vsub.f32 %v3206, 1.0
    %v3225 = vsub.f32 %v3208, 1.0
    %v3226 = vsub.f32 %v3210, 1.0
    %vm3227 = vcmp.gt.f32.partialorder %v3147, 0.0
    %vm3228 = vcmp.gt.f32.partialorder %v3148, 0.0
    %vm3229 = vcmp.gt.f32.partialorder %v3149, 0.0
    %vm3230 = vcmp.gt.f32.partialorder %v3150, 0.0
    %vm3231 = vcmp.gt.f32.partialorder %v3151, 0.0
    %vm3232 = vcmp.gt.f32.partialorder %v3152, 0.0
    %vm3233 = vcmp.gt.f32.partialorder %v3153, 0.0
    %vm3234 = vcmp.gt.f32.partialorder %v3154, 0.0
    %vm3235 = vcmp.gt.f32.partialorder %v3155, 0.0
    %vm3236 = vcmp.gt.f32.partialorder %v3156, 0.0
    %vm3237 = vcmp.gt.f32.partialorder %v3157, 0.0
    %vm3238 = vcmp.gt.f32.partialorder %v3158, 0.0
    %vm3239 = vcmp.gt.f32.partialorder %v3159, 0.0
    %vm3240 = vcmp.gt.f32.partialorder %v3160, 0.0
    %vm3241 = vcmp.gt.f32.partialorder %v3161, 0.0
    %vm3242 = vcmp.gt.f32.partialorder %v3162, 0.0
    %v3243 = vsel %vm3227, %v3147, %v3211
    %v3244 = vsel %vm3228, %v3148, %v3212
    %v3245 = vsel %vm3229, %v3149, %v3213
    %v3246 = vsel %vm3230, %v3150, %v3214
    %v3247 = vsel %vm3231, %v3151, %v3215
    %v3248 = vsel %vm3232, %v3152, %v3216
    %v3249 = vsel %vm3233, %v3153, %v3217
    %v3250 = vsel %vm3234, %v3154, %v3218
    %v3251 = vsel %vm3235, %v3155, %v3219
    %v3252 = vsel %vm3236, %v3156, %v3220
    %v3253 = vsel %vm3237, %v3157, %v3221
    %v3254 = vsel %vm3238, %v3158, %v3222
    %v3255 = vsel %vm3239, %v3159, %v3223
    %v3256 = vsel %vm3240, %v3160, %v3224
    %v3257 = vsel %vm3241, %v3161, %v3225
    %v3258 = vsel %vm3242, %v3162, %v3226
    %v3259 = vld [vmem:[%s8] sm:$0x3]
    %3260 = vmatprep.subr.mxu0 0.0
    %3261 = vmatpush1.msra.mxu0 %v3258
    %3262 = vmatprep.subr.mxu0 0.0
    %3263 = vmatpush1.msra.mxu0 %v3257
    %3264 = vmatprep.subr.mxu0 0.0
    %3265 = vmatpush1.msra.mxu0 %v3256
    %3266 = vmatprep.subr.mxu0 0.0
    %3267 = vmatpush1.msra.mxu0 %v3255
    %3268 = vmatprep.subr.mxu0 0.0
    %3269 = vmatpush1.msra.mxu0 %v3254
    %3270 = vmatprep.subr.mxu0 0.0
    %3271 = vmatpush1.msra.mxu0 %v3253
    %3272 = vmatprep.subr.mxu0 0.0
    %3273 = vmatpush1.msra.mxu0 %v3252
    %3274 = vmatprep.subr.mxu0 0.0
    %3275 = vmatpush1.msra.mxu0 %v3251
    %3276 = vmatprep.subr.mxu0 0.0
    %3277 = vmatpush1.msra.mxu0 %v3250
    %3278 = vmatprep.subr.mxu0 0.0
    %3279 = vmatpush1.msra.mxu0 %v3249
    %3280 = vmatprep.subr.mxu0 0.0
    %3281 = vmatpush1.msra.mxu0 %v3248
    %3282 = vmatprep.subr.mxu0 0.0
    %3283 = vmatpush1.msra.mxu0 %v3247
    %3284 = vmatprep.subr.mxu0 0.0
    %3285 = vmatpush1.msra.mxu0 %v3246
    %3286 = vmatprep.subr.mxu0 0.0
    %3287 = vmatpush1.msra.mxu0 %v3245
    %3288 = vmatprep.subr.mxu0 0.0
    %3289 = vmatpush1.msra.mxu0 %v3244
    %3290 = vmatprep.subr.mxu0 0.0
    %3291 = vmatpush1.msra.mxu0 %v3243
    %3292 = vmatprep.subr.mxu0 0.0
    %3293 = vmatpush2.msra.mxu0 0.0
    %3294 = vmatprep.subr.mxu0 0.0
    %3295 = vmatpush2.msra.mxu0 0.0
    %3296 = vmatprep.subr.mxu0 0.0
    %3297 = vmatpush2.msra.mxu0 0.0
    %3298 = vmatprep.subr.mxu0 0.0
    %3299 = vmatpush2.msra.mxu0 0.0
    %3300 = vmatprep.subr.mxu0 0.0
    %3301 = vmatpush2.msra.mxu0 0.0
    %3302 = vmatprep.subr.mxu0 0.0
    %3303 = vmatpush2.msra.mxu0 0.0
    %3304 = vmatprep.subr.mxu0 0.0
    %3305 = vmatpush2.msra.mxu0 0.0
    %3306 = vmatprep.subr.mxu0 0.0
    %3307 = vmatpush2.msra.mxu0 0.0
    %3308 = vmatprep.subr.mxu0 0.0
    %3309 = vmatpush2.msra.mxu0 0.0
    %3310 = vmatprep.subr.mxu0 0.0
    %3311 = vmatpush2.msra.mxu0 0.0
    %3312 = vmatprep.subr.mxu0 0.0
    %3313 = vmatpush2.msra.mxu0 0.0
    %3314 = vmatprep.subr.mxu0 0.0
    %3315 = vmatpush2.msra.mxu0 0.0
    %3316 = vmatprep.subr.mxu0 0.0
    %3317 = vmatpush2.msra.mxu0 0.0
    %3318 = vmatprep.subr.mxu0 0.0
    %3319 = vmatpush2.msra.mxu0 0.0
    %3320 = vmatprep.subr.mxu0 0.0
    %3321 = vmatpush2.msra.mxu0 0.0
    %3322 = vmatprep.subr.mxu0 0.0
    %3323 = vmatpush2.msra.mxu0 0.0
    %3324 = vmatprep.mubr.f32.mxu0 0.0
    %3325 = vmatmul.mubr.f32.gmra.mxu0 %v3259
    %v3326 = vpop.f32.mrf.mxu0
    %v3327 = vadd.f32 0.0, %v3326
    %v3328 = vpop.f32.mrf.mxu0
    %3329 = vdwg.mxu0
    %v3330 = vld [vmem:[%s9] sm:$0xff]
    %v3331 = vld [vmem:[%s9 + $0x8] sm:$0xff]
    %v3332 = vld [vmem:[%s9 + $0x10] sm:$0xff]
    %v3333 = vld [vmem:[%s9 + $0x18] sm:$0xff]
    %v3334 = vld [vmem:[%s10] sm:$0x1]
    %v3336 = vlaneseq
    %v3337 = vshrl.u32 %v3336, 7
    %v3338 = vsub.s32 0, %v3337
    %v3339 = vrot.slane %v3334, %v3338
    %v3342 = vsel %vm70, %v3327, 0
    %3344 = vmatprep.subr.mxu0 0.0
    %3345 = vmatpush1.msra.mxu0 0.0
    %3346 = vmatprep.subr.mxu0 0.0
    %3347 = vmatpush1.msra.mxu0 0.0
    %3348 = vmatprep.subr.mxu0 0.0
    %3349 = vmatpush1.msra.mxu0 0.0
    %3350 = vmatprep.subr.mxu0 0.0
    %3351 = vmatpush1.msra.mxu0 0.0
    %3352 = vmatprep.subr.mxu0 0.0
    %3353 = vmatpush1.msra.mxu0 0.0
    %3354 = vmatprep.subr.mxu0 0.0
    %3355 = vmatpush1.msra.mxu0 0.0
    %3356 = vmatprep.subr.mxu0 0.0
    %3357 = vmatpush1.msra.mxu0 0.0
    %3358 = vmatprep.subr.mxu0 0.0
    %3359 = vmatpush1.msra.mxu0 0.0
    %3360 = vmatprep.subr.mxu0 0.0
    %3361 = vmatpush1.msra.mxu0 0.0
    %3362 = vmatprep.subr.mxu0 0.0
    %3363 = vmatpush1.msra.mxu0 0.0
    %3364 = vmatprep.subr.mxu0 0.0
    %3365 = vmatpush1.msra.mxu0 0.0
    %3366 = vmatprep.subr.mxu0 0.0
    %3367 = vmatpush1.msra.mxu0 0.0
    %3368 = vmatprep.subr.mxu0 0.0
    %3369 = vmatpush1.msra.mxu0 %v3333
    %3370 = vmatprep.subr.mxu0 0.0
    %3371 = vmatpush1.msra.mxu0 %v3332
    %3372 = vmatprep.subr.mxu0 0.0
    %3373 = vmatpush1.msra.mxu0 %v3331
    %3374 = vmatprep.subr.mxu0 0.0
    %3375 = vmatpush1.msra.mxu0 %v3330
    %3376 = vmatprep.subr.mxu0 0.0
    %3377 = vmatpush2.msra.mxu0 0.0
    %3378 = vmatprep.subr.mxu0 0.0
    %3379 = vmatpush2.msra.mxu0 0.0
    %3380 = vmatprep.subr.mxu0 0.0
    %3381 = vmatpush2.msra.mxu0 0.0
    %3382 = vmatprep.subr.mxu0 0.0
    %3383 = vmatpush2.msra.mxu0 0.0
    %3384 = vmatprep.subr.mxu0 0.0
    %3385 = vmatpush2.msra.mxu0 0.0
    %3386 = vmatprep.subr.mxu0 0.0
    %3387 = vmatpush2.msra.mxu0 0.0
    %3388 = vmatprep.subr.mxu0 0.0
    %3389 = vmatpush2.msra.mxu0 0.0
    %3390 = vmatprep.subr.mxu0 0.0
    %3391 = vmatpush2.msra.mxu0 0.0
    %3392 = vmatprep.subr.mxu0 0.0
    %3393 = vmatpush2.msra.mxu0 0.0
    %3394 = vmatprep.subr.mxu0 0.0
    %3395 = vmatpush2.msra.mxu0 0.0
    %3396 = vmatprep.subr.mxu0 0.0
    %3397 = vmatpush2.msra.mxu0 0.0
    %3398 = vmatprep.subr.mxu0 0.0
    %3399 = vmatpush2.msra.mxu0 0.0
    %3400 = vmatprep.subr.mxu0 0.0
    %3401 = vmatpush2.msra.mxu0 0.0
    %3402 = vmatprep.subr.mxu0 0.0
    %3403 = vmatpush2.msra.mxu0 0.0
    %3404 = vmatprep.subr.mxu0 0.0
    %3405 = vmatpush2.msra.mxu0 0.0
    %3406 = vmatprep.subr.mxu0 0.0
    %3407 = vmatpush2.msra.mxu0 0.0
    %3408 = vmatprep.mubr.f32.mxu0 0.0
    %3409 = vmatmul.mubr.f32.gmra.mxu0 %v3342
    %v3410 = vpop.f32.mrf.mxu0
    %v3411 = vadd.f32 %v3339, %v3410
    %v3412 = vpop.f32.mrf.mxu0
    %3413 = vdwg.mxu0
    %vm3414 = vcmask 58368
    %3415 = vst.msk [vmem:[#allocation3] sm:$0x3] %vm3414, %v3411
    // Predicated region
    $region46: #{tpu_custom_call.1} parent=1 // pred_check
      _
    $region47: #{tpu_custom_call.1} parent=1 // pred_check_branch
      %3417 = sbr.rel (0) target = $region49
    $region48: #{tpu_custom_call.1} parent=1 // pred_region
      %s3419 = ssub.s32 32, 32
      %3420 = vsyncadd [#allocation4], %s3419
      %s3422 = sshll.u32 [#allocation3], 4
      %s3423 = int_to_ptr.vmem [resolvable:$true] %s3422
      %3425 = dma.vmem_to_hbm [thread:$0]  %s3423, 32, %s11, [#allocation4]
    $region49: #{tpu_custom_call.1} parent=1 // pred_fallthru
      _
    // Predicated region
    $region50: #{tpu_custom_call.1} parent=1 // pred_check
      _
    $region51: #{tpu_custom_call.1} parent=1 // pred_check_branch
      %3427 = sbr.rel (0) target = $region53
    $region52: #{tpu_custom_call.1} parent=1 // pred_region
      %3428 = dma.done [#allocation4], 32
    $region53: #{tpu_custom_call.1} parent=1 // pred_fallthru
      _
    %3429 = vsyncpa [#allocation4], 1

</llo_original>
